<compile_context>
chip_gen: v6e
topology: v6e:2x2x1
jax: 0.10.0
libtpu: 0.0.40
codegen_flags: <defaults>
</compile_context>

<pallas_src>
import functools

import numpy as np
import jax
import jax.numpy as jnp
from jax import lax
from jax.experimental import pallas as pl
from jax.experimental.pallas import tpu as pltpu  # noqa: F401  (kept for completeness)


class Args:
    nKnovel = 5
    nExemplars = 1
    train_nTestNovel = 2   # num_queries (Q)
    train_batch = 2        # B
    alpha = 0.5
    miu = 1.0
    drop_rate = 0.0        # dropout treated as eval-mode identity


def _ceil8(x):
    return ((x + 7) // 8) * 8


# ----------------------------------------------------------------------------
# Constant 0/±1 selection matrices, packed into ONE (rows, NP) f32 slab.
# Cached so they are built (and uploaded, as a jit constant) only once.
# ----------------------------------------------------------------------------
@functools.lru_cache(maxsize=None)
def build_constant_slab(B, Q, S, N):
    BQ = B * Q
    BN = BQ * N
    NP = BQ * N * N                       # all ordered pairs (i, j) incl. diagonal

    PD = np.zeros((NP, BN), np.float32)   # pair difference: row (bq,i,j) = e_i - e_j
    LM = np.zeros((NP, 1), np.float32)    # loss-row mask (query-0 samples, i!=j, i,j<S)
    RS = np.zeros((BN, NP), np.float32)   # row-select: (bq,i) <- pair rows (bq,i,*)
    CS = np.zeros((NP, N), np.float32)    # col-select: pair row (.,.,j) -> lane j
    RP = np.zeros((BN, N), np.float32)    # per-block identity / diagonal pick
    TC2 = np.zeros((2 * N, BN), np.float32)  # picks binv half of [m|binv] into block-diag
    BM = np.zeros((BN, BN), np.float32)   # same-block mask
    WS = np.zeros((BN, BQ * S), np.float32)  # scatter support word embeddings (query=0)

    for r in range(NP):
        bq, i, j = r // (N * N), (r // N) % N, r % N
        PD[r, bq * N + i] += 1.0
        PD[r, bq * N + j] -= 1.0
        RS[r // N, r] = 1.0
        CS[r, j] = 1.0
        if (bq % Q == 0) and (i < S) and (j < S) and (i != j):
            LM[r, 0] = 1.0
    for q in range(BN):
        bq, i = q // N, q % N
        RP[q, i] = 1.0
        TC2[N + i, q] = 1.0
        if i < S:
            WS[q, bq * S + i] = 1.0
        for p in range(BN):
            if p // N == bq:
                BM[q, p] = 1.0

    names = ["PD", "RS", "CS", "RP", "TC2", "BM", "WS", "LM"]
    blocks = [PD, RS, CS, RP, TC2, BM, WS, LM]
    width = NP
    offs = {}
    padded = []
    rows = 0
    for name, blk in zip(names, blocks):
        offs[name] = rows
        rpad = _ceil8(blk.shape[0])
        pb = np.zeros((rpad, width), np.float32)
        pb[:blk.shape[0], :blk.shape[1]] = blk
        padded.append(pb)
        rows += rpad
    slab = np.concatenate(padded, axis=0)
    return slab, offs


# ----------------------------------------------------------------------------
# Weight slab layout / packing (one f32 slab for all weights and biases).
# ----------------------------------------------------------------------------
def weight_layout(D, word_dim, H, HM):
    wc = max(HM, D, H, word_dim, 2)
    offs = {}
    r = 0
    offs['we'] = r;  r += _ceil8(word_dim)
    offs['rw1'] = r; r += _ceil8(D)
    offs['rw2'] = r; r += _ceil8(H)
    offs['mw1'] = r; r += _ceil8(2 * D)
    offs['bias'] = r; r += 8
    return r, wc, offs


def pack_weight_slab(params, w_rows, w_cols, w_off):
    def place(slab, r0, mat):
        mat = jnp.asarray(mat, jnp.float32)
        if mat.ndim == 1:
            mat = mat.reshape(1, -1)
        return lax.dynamic_update_slice(slab, mat, (r0, 0))

    slab = jnp.zeros((w_rows, w_cols), jnp.float32)
    slab = place(slab, w_off['we'], params['we'])
    slab = place(slab, w_off['rw1'], params['rw1'])
    slab = place(slab, w_off['rw2'], params['rw2'])
    slab = place(slab, w_off['mw1'], params['mw1'])
    b = w_off['bias']
    slab = place(slab, b + 0, params['be'].reshape(1, -1))
    slab = place(slab, b + 1, params['rb1'].reshape(1, -1))
    slab = place(slab, b + 2, params['rb2'].reshape(1, -1))
    slab = place(slab, b + 3, jnp.mean(params['rw2'], axis=1).reshape(1, -1))  # rw2_bar
    slab = place(slab, b + 4, jnp.mean(params['rb2']).reshape(1, 1))           # rb2_bar
    slab = place(slab, b + 5, params['mb1'].reshape(1, -1))
    slab = place(slab, b + 6, params['mw2'].reshape(1, -1))                    # (1, HM)
    slab = place(slab, b + 7, params['mb2'].reshape(1, 1))
    return slab


# ----------------------------------------------------------------------------
# Fused, grid-less kernel: word encoder -> pairwise relation (+ MSE loss) ->
# similarity graph -> per-block Gauss-Jordan inverse -> propagation -> gating MLP.
# ----------------------------------------------------------------------------
def propagation_kernel(
    x_ref, sw_ref, c_ref, w_ref, out_ref, *,
    D, H, HM, word_dim, N, BN, NP, BQS, OUT_ROWS,
    c_off, w_off, alpha, loss_scale, inv_n2, inv_n2m1, slope):
    f32 = jnp.float32
    x = x_ref[...]                                       # (BN, D)
    sw = sw_ref[...]                                     # (BQS, word_dim)

    # --- constants (single packed slab, static ref slices) -------------------
    co = c_off
    PD = c_ref[co['PD']:co['PD'] + NP, 0:BN]
    RS = c_ref[co['RS']:co['RS'] + BN, 0:NP]
    CS = c_ref[co['CS']:co['CS'] + NP, 0:N]
    RP = c_ref[co['RP']:co['RP'] + BN, 0:N]
    TC2 = c_ref[co['TC2']:co['TC2'] + 2 * N, 0:BN]
    BMk = c_ref[co['BM']:co['BM'] + BN, 0:BN]
    WSk = c_ref[co['WS']:co['WS'] + BN, 0:BQS]
    LM = c_ref[co['LM']:co['LM'] + NP, 0:1]

    # --- weights (single packed slab) ----------------------------------------
    wo = w_off
    WE = w_ref[wo['we']:wo['we'] + word_dim, 0:D]
    RW1 = w_ref[wo['rw1']:wo['rw1'] + D, 0:H]
    RW2 = w_ref[wo['rw2']:wo['rw2'] + H, 0:D]
    MW1 = w_ref[wo['mw1']:wo['mw1'] + 2 * D, 0:HM]
    b = wo['bias']
    BE = w_ref[b + 0:b + 1, 0:D]
    RB1 = w_ref[b + 1:b + 2, 0:H]
    RB2 = w_ref[b + 2:b + 3, 0:D]
    RW2B = w_ref[b + 3:b + 4, 0:H]
    RB2B = w_ref[b + 4:b + 5, 0:1]
    MB1 = w_ref[b + 5:b + 6, 0:HM]
    MW2R = w_ref[b + 6:b + 7, 0:HM]
    MB2 = w_ref[b + 7:b + 8, 0:1]

    # ---- 1) word encoder -----------------------------------------------------
    # TODO(synk): EmbeddingWord is not defined in the reference source; modeled as Linear+ReLU.
    sw_emb = jnp.maximum(
        jnp.dot(sw, WE, preferred_element_type=f32) + BE, 0.0)          # (BQS, D)
    wemb = jnp.dot(WSk, sw_emb, preferred_element_type=f32)             # (BN, D), query row = 0

    # ---- 2) all pairwise diffs; relation layer1 shared by graph + loss -------
    dx = jnp.dot(PD, x, preferred_element_type=f32)                     # (NP, D)
    dw = jnp.dot(PD, wemb, preferred_element_type=f32)                  # (NP, D)
    sx = dx * dx
    sw2 = dw * dw
    h = jnp.dot(sx, RW1, preferred_element_type=f32) + RB1              # (NP, H)
    h = jnp.where(h > 0, h, slope * h)                                  # LeakyReLU
    # graph branch: mean-over-D of layer2 folded into RW2B/RB2B
    ycol = jnp.sum(h * RW2B, axis=1, keepdims=True) + RB2B              # (NP, 1)
    # loss branch: full layer2, masked MSE on support pairs of query-0 samples
    rm = jnp.dot(h, RW2, preferred_element_type=f32) + RB2              # (NP, D)
    err = rm - sw2
    per_row = jnp.sum(err * err, axis=1, keepdims=True)                 # (NP, 1)
    loss = jnp.sum(per_row * LM, axis=0, keepdims=True) * loss_scale    # (1, 1)

    # column -> lane-dense (BN, N) similarity rows via constant matmul
    y_all = jnp.dot(RS, CS * ycol, preferred_element_type=f32)          # (BN, N)

    # ---- 3) per-sample unbiased std over all N*N entries, exp(-y*inv_sigma), zero diag
    grp = jnp.dot(BMk, y_all, preferred_element_type=f32)               # (BN, N)
    mu = jnp.sum(grp, axis=1, keepdims=True) * inv_n2                   # (BN, 1)
    dev = y_all - mu
    gvar = jnp.dot(BMk, dev * dev, preferred_element_type=f32)          # (BN, N)
    var = jnp.sum(gvar, axis=1, keepdims=True) * inv_n2m1               # (BN, 1)
    inv_sig = lax.rsqrt(var)
    e_all = jnp.exp(-y_all * inv_sig) * (1.0 - RP)                      # zero diagonal

    # ---- 4) symmetric normalization S = D^-1/2 W D^-1/2 ----------------------
    colsum = jnp.dot(BMk, e_all, preferred_element_type=f32)            # (BN, N) per-block col sums
    dsi = lax.rsqrt(colsum + 1e-6)                                      # dsi[b, j]
    row_dsi = jnp.sum(dsi * RP, axis=1, keepdims=True)                  # dsi[b, i]
    s_all = row_dsi * e_all * dsi                                       # (BN, N)

    # ---- 5) Pi = (1-alpha) * inv(I - alpha*S): per-block Gauss-Jordan, N pivots
    mb = jnp.concatenate([RP - alpha * s_all, RP], axis=1)              # (BN, 2N) = [M | I]
    ek_base = lax.broadcasted_iota(jnp.int32, (1, 2 * N), 1)
    ekN_base = lax.broadcasted_iota(jnp.int32, (1, N), 1)
    for k in range(N):                                                  # static unroll, N small
        ekN = (ekN_base == k).astype(f32)                               # (1, N)
        ek2 = (ek_base == k).astype(f32)                                # (1, 2N)
        is_piv = jnp.sum(RP * ekN, axis=1, keepdims=True)               # (BN, 1): 1 on pivot rows
        piv_rows = jnp.dot(BMk, mb * is_piv, preferred_element_type=f32)  # (BN, 2N): own block's pivot row
        piv_val = jnp.sum(piv_rows * ek2, axis=1, keepdims=True)        # (BN, 1): block pivot element
        col = jnp.sum(mb * ek2, axis=1, keepdims=True)                  # (BN, 1): own column-k entry
        scaled = piv_rows * (1.0 / piv_val)                             # exact reciprocal (pivot)
        mb = jnp.where(is_piv > 0.5, scaled, mb - col * scaled)
    pi_bd = (1.0 - alpha) * jnp.dot(mb, TC2, preferred_element_type=f32) * BMk   # (BN, BN)

    # ---- 6) propagation (single block-diag matmul on [x | wemb]) + gating MLP
    cat = jnp.concatenate([x, wemb], axis=1)                            # (BN, 2D)
    prop = jnp.dot(pi_bd, cat, preferred_element_type=f32)              # (BN, 2D)
    hid = jnp.maximum(
        jnp.dot(prop, MW1, preferred_element_type=f32) + MB1, 0.0)      # (BN, HM); dropout = identity (eval)
    logit = jnp.sum(hid * MW2R, axis=1, keepdims=True) + MB2            # (BN, 1)
    gate = jax.nn.sigmoid(logit)
    pimg = prop[:, 0:D]
    pwrd = prop[:, D:2 * D]
    out = gate * pimg + (1.0 - gate) * pwrd                             # (BN, D)

    out_ref[0:BN, :] = out
    out_ref[BN:OUT_ROWS, :] = jnp.broadcast_to(loss, (OUT_ROWS - BN, D))


# ----------------------------------------------------------------------------
# Jitted wrapper (static config; constants become compile-time constants).
# ----------------------------------------------------------------------------
@functools.partial(jax.jit, static_argnames=(
    "B", "Q", "S", "N", "D", "word_dim", "HM", "H", "alpha", "miu"))
def _forward(full_images, full_words, params, *, B, Q, S, N, D, word_dim, HM, H,
             alpha, miu):
    BQ = B * Q
    BN = BQ * N
    NP = BQ * N * N
    BQS = BQ * S
    P = S * (S - 1) // 2

    slab_np, c_off = build_constant_slab(B, Q, S, N)
    c_slab = jnp.asarray(slab_np)                       # jit constant, uploaded once

    w_rows, w_cols, w_off = weight_layout(D, word_dim, H, HM)
    w_slab = pack_weight_slab(params, w_rows, w_cols, w_off)

    x_flat = full_images.reshape(BN, D).astype(jnp.float32)
    sw_flat = full_words[:, :S].reshape(BQS, word_dim).astype(jnp.float32)

    OUT_ROWS = BN + 8                                   # last 8 rows carry the scalar loss

    kernel = functools.partial(
        propagation_kernel,
        D=D, H=H, HM=HM, word_dim=word_dim, N=N, BN=BN, NP=NP, BQS=BQS,
        OUT_ROWS=OUT_ROWS, c_off=c_off, w_off=w_off,
        alpha=float(alpha),
        loss_scale=float(miu) / float(2 * B * P * D),   # both pair orders counted -> /2
        inv_n2=1.0 / float(N * N), inv_n2m1=1.0 / float(N * N - 1), slope=0.01)

    out = pl.pallas_call(
        kernel,
        out_shape=jax.ShapeDtypeStruct((OUT_ROWS, D), jnp.float32),
    )(x_flat, sw_flat, c_slab, w_slab)

    full_data = out[:BN].reshape(BQ, N, D)
    addition_loss = out[BN, 0]
    return full_data, addition_loss


def propagation_forward(full_images, full_words, full_words_real, params, args):
    del full_words_real                                 # unused in the reference forward
    B, Q = int(args.train_batch), int(args.train_nTestNovel)
    S = int(args.nKnovel * args.nExemplars)
    N = S + 1
    BQ, num_samples, D = full_images.shape
    assert BQ == B * Q and num_samples == N
    word_dim = int(full_words.shape[-1])
    HM = int(params['mw1'].shape[1])
    H = int(params['rw1'].shape[1])
    return _forward(full_images, full_words, params,
                    B=B, Q=Q, S=S, N=N, D=int(D), word_dim=word_dim, HM=HM, H=H,
                    alpha=float(args.alpha), miu=float(args.miu))


# ----------------------------------------------------------------------------
# Deterministic parameter initialization (PyTorch-Linear-style uniform)
# ----------------------------------------------------------------------------
def init_params(key, word_dim, D, mlp_hidden=300):
    H = D // 2
    ks = jax.random.split(key, 12)

    def lin(k, fan_in, shape):
        bound = 1.0 / float(fan_in) ** 0.5
        return jax.random.uniform(k, shape, jnp.float32, -bound, bound)

    return {
        # EmbeddingWord (modeled): Linear(word_dim -> D) + ReLU
        'we': lin(ks[0], word_dim, (word_dim, D)),
        'be': lin(ks[1], word_dim, (1, D)),
        # RelationModify: Linear(D -> D/2) + LeakyReLU, Linear(D/2 -> D)
        'rw1': lin(ks[2], D, (D, H)),
        'rb1': lin(ks[3], D, (1, H)),
        'rw2': lin(ks[4], H, (H, D)),
        'rb2': lin(ks[5], H, (1, D)),
        # MLP: Linear(2D -> 300) + ReLU, Linear(300 -> 1) + sigmoid
        'mw1': lin(ks[6], 2 * D, (2 * D, mlp_hidden)),
        'mb1': lin(ks[7], 2 * D, (1, mlp_hidden)),
        'mw2': lin(ks[8], mlp_hidden, (mlp_hidden, 1)),
        'mb2': lin(ks[9], mlp_hidden, (1, 1)),
    }


if __name__ == "__main__":
    args = Args()
    B, Q = args.train_batch, args.train_nTestNovel
    S = args.nKnovel * args.nExemplars
    N = S + 1
    D = 32         # feat_dim == out_channels (required by the module's semantics)
    word_dim = 32

    key = jax.random.PRNGKey(0)
    k1, k2, k3, kp = jax.random.split(key, 4)
    full_images = jax.random.normal(k1, (B * Q, N, D), jnp.float32)
    full_words = jax.random.normal(k2, (B * Q, S, word_dim), jnp.float32)
    full_words_real = jax.random.normal(k3, (B * Q, S, word_dim), jnp.float32)  # unused
    params = init_params(kp, word_dim, D)

    full_data, addition_loss = propagation_forward(
        full_images, full_words, full_words_real, params, args)
    jax.block_until_ready((full_data, addition_loss))
    assert full_data.shape == (B * Q, N, D)
    assert addition_loss.shape == ()
    assert bool(jnp.isfinite(full_data).all()) and bool(jnp.isfinite(addition_loss))
    print("KERNEL_OK")
</pallas_src>

<mosaic_0001>
module attributes {stable_mosaic.version = 11 : i64} {
  func.func @propagation_kernel(%arg0: memref<24x32xf32, #tpu.memory_space<vmem>>, %arg1: memref<20x32xf32, #tpu.memory_space<vmem>>, %arg2: memref<544x144xf32, #tpu.memory_space<vmem>>, %arg3: memref<152x300xf32, #tpu.memory_space<vmem>>, %arg4: memref<32x32xf32, #tpu.memory_space<vmem>>) attributes {dimension_semantics = [], scalar_prefetch = 0 : i64, scratch_operands = 0 : i64, tpu.core_type = #tpu.core_type<tc>} {
    %c0 = arith.constant 0 : index
    %c0_0 = arith.constant 0 : index
    %0 = vector.load %arg0[%c0, %c0_0] : memref<24x32xf32, #tpu.memory_space<vmem>>, vector<24x32xf32>
    %c0_1 = arith.constant 0 : index
    %c0_2 = arith.constant 0 : index
    %1 = vector.load %arg1[%c0_1, %c0_2] : memref<20x32xf32, #tpu.memory_space<vmem>>, vector<20x32xf32>
    %c0_3 = arith.constant 0 : index
    %c0_4 = arith.constant 0 : index
    %2 = vector.load %arg2[%c0_3, %c0_4] : memref<544x144xf32, #tpu.memory_space<vmem>>, vector<144x24xf32>
    %c144 = arith.constant 144 : index
    %c0_5 = arith.constant 0 : index
    %3 = vector.load %arg2[%c144, %c0_5] : memref<544x144xf32, #tpu.memory_space<vmem>>, vector<24x144xf32>
    %c168 = arith.constant 168 : index
    %c0_6 = arith.constant 0 : index
    %4 = vector.load %arg2[%c168, %c0_6] : memref<544x144xf32, #tpu.memory_space<vmem>>, vector<144x6xf32>
    %c312 = arith.constant 312 : index
    %c0_7 = arith.constant 0 : index
    %5 = vector.load %arg2[%c312, %c0_7] : memref<544x144xf32, #tpu.memory_space<vmem>>, vector<24x6xf32>
    %c336 = arith.constant 336 : index
    %c0_8 = arith.constant 0 : index
    %6 = vector.load %arg2[%c336, %c0_8] : memref<544x144xf32, #tpu.memory_space<vmem>>, vector<12x24xf32>
    %c352 = arith.constant 352 : index
    %c0_9 = arith.constant 0 : index
    %7 = vector.load %arg2[%c352, %c0_9] : memref<544x144xf32, #tpu.memory_space<vmem>>, vector<24x24xf32>
    %c376 = arith.constant 376 : index
    %c0_10 = arith.constant 0 : index
    %8 = vector.load %arg2[%c376, %c0_10] : memref<544x144xf32, #tpu.memory_space<vmem>>, vector<24x20xf32>
    %c400 = arith.constant 400 : index
    %c0_11 = arith.constant 0 : index
    %9 = vector.load %arg2[%c400, %c0_11] : memref<544x144xf32, #tpu.memory_space<vmem>>, vector<144x1xf32>
    %c0_12 = arith.constant 0 : index
    %c0_13 = arith.constant 0 : index
    %10 = vector.load %arg3[%c0_12, %c0_13] : memref<152x300xf32, #tpu.memory_space<vmem>>, vector<32x32xf32>
    %c32 = arith.constant 32 : index
    %c0_14 = arith.constant 0 : index
    %11 = vector.load %arg3[%c32, %c0_14] : memref<152x300xf32, #tpu.memory_space<vmem>>, vector<32x16xf32>
    %c64 = arith.constant 64 : index
    %c0_15 = arith.constant 0 : index
    %12 = vector.load %arg3[%c64, %c0_15] : memref<152x300xf32, #tpu.memory_space<vmem>>, vector<16x32xf32>
    %c80 = arith.constant 80 : index
    %c0_16 = arith.constant 0 : index
    %13 = vector.load %arg3[%c80, %c0_16] : memref<152x300xf32, #tpu.memory_space<vmem>>, vector<64x300xf32>
    %c144_17 = arith.constant 144 : index
    %c0_18 = arith.constant 0 : index
    %14 = vector.load %arg3[%c144_17, %c0_18] : memref<152x300xf32, #tpu.memory_space<vmem>>, vector<1x32xf32>
    %c145 = arith.constant 145 : index
    %c0_19 = arith.constant 0 : index
    %15 = vector.load %arg3[%c145, %c0_19] : memref<152x300xf32, #tpu.memory_space<vmem>>, vector<1x16xf32>
    %c146 = arith.constant 146 : index
    %c0_20 = arith.constant 0 : index
    %16 = vector.load %arg3[%c146, %c0_20] : memref<152x300xf32, #tpu.memory_space<vmem>>, vector<1x32xf32>
    %c147 = arith.constant 147 : index
    %c0_21 = arith.constant 0 : index
    %17 = vector.load %arg3[%c147, %c0_21] : memref<152x300xf32, #tpu.memory_space<vmem>>, vector<1x16xf32>
    %c148 = arith.constant 148 : index
    %c0_22 = arith.constant 0 : index
    %18 = vector.load %arg3[%c148, %c0_22] : memref<152x300xf32, #tpu.memory_space<vmem>>, vector<1x1xf32>
    %c149 = arith.constant 149 : index
    %c0_23 = arith.constant 0 : index
    %19 = vector.load %arg3[%c149, %c0_23] : memref<152x300xf32, #tpu.memory_space<vmem>>, vector<1x300xf32>
    %c150 = arith.constant 150 : index
    %c0_24 = arith.constant 0 : index
    %20 = vector.load %arg3[%c150, %c0_24] : memref<152x300xf32, #tpu.memory_space<vmem>>, vector<1x300xf32>
    %c151 = arith.constant 151 : index
    %c0_25 = arith.constant 0 : index
    %21 = vector.load %arg3[%c151, %c0_25] : memref<152x300xf32, #tpu.memory_space<vmem>>, vector<1x1xf32>
    %cst = arith.constant dense<0.000000e+00> : vector<20x32xf32>
    %22 = tpu.matmul %1, %10, %cst {dimension_numbers = #tpu.dot_dimension_numbers<[1], [0], [0], [1], [0, 0, 1, 1], [], []>} : vector<20x32xf32>, vector<32x32xf32>, vector<20x32xf32> -> vector<20x32xf32>
    %23 = vector.broadcast %14 : vector<1x32xf32> to vector<20x32xf32>
    %24 = arith.addf %22, %23 : vector<20x32xf32>
    %cst_26 = arith.constant 0.000000e+00 : f32
    %25 = vector.broadcast %cst_26 : f32 to vector<20x32xf32>
    %26 = arith.maximumf %24, %25 : vector<20x32xf32>
    %cst_27 = arith.constant dense<0.000000e+00> : vector<24x32xf32>
    %27 = tpu.matmul %8, %26, %cst_27 {dimension_numbers = #tpu.dot_dimension_numbers<[1], [0], [0], [1], [0, 0, 1, 1], [], []>} : vector<24x20xf32>, vector<20x32xf32>, vector<24x32xf32> -> vector<24x32xf32>
    %cst_28 = arith.constant dense<0.000000e+00> : vector<144x32xf32>
    %28 = tpu.matmul %2, %0, %cst_28 {dimension_numbers = #tpu.dot_dimension_numbers<[1], [0], [0], [1], [0, 0, 1, 1], [], []>} : vector<144x24xf32>, vector<24x32xf32>, vector<144x32xf32> -> vector<144x32xf32>
    %cst_29 = arith.constant dense<0.000000e+00> : vector<144x32xf32>
    %29 = tpu.matmul %2, %27, %cst_29 {dimension_numbers = #tpu.dot_dimension_numbers<[1], [0], [0], [1], [0, 0, 1, 1], [], []>} : vector<144x24xf32>, vector<24x32xf32>, vector<144x32xf32> -> vector<144x32xf32>
    %30 = arith.mulf %28, %28 : vector<144x32xf32>
    %31 = arith.mulf %29, %29 : vector<144x32xf32>
    %cst_30 = arith.constant dense<0.000000e+00> : vector<144x16xf32>
    %32 = tpu.matmul %30, %11, %cst_30 {dimension_numbers = #tpu.dot_dimension_numbers<[1], [0], [0], [1], [0, 0, 1, 1], [], []>} : vector<144x32xf32>, vector<32x16xf32>, vector<144x16xf32> -> vector<144x16xf32>
    %33 = vector.broadcast %15 : vector<1x16xf32> to vector<144x16xf32>
    %34 = arith.addf %32, %33 : vector<144x16xf32>
    %cst_31 = arith.constant 0.000000e+00 : f32
    %35 = vector.broadcast %cst_31 : f32 to vector<144x16xf32>
    %36 = arith.cmpf ogt, %34, %35 : vector<144x16xf32>
    %cst_32 = arith.constant 0.00999999977 : f32
    %37 = vector.broadcast %cst_32 : f32 to vector<144x16xf32>
    %38 = arith.mulf %37, %34 : vector<144x16xf32>
    %39 = arith.select %36, %34, %38 : vector<144x16xi1>, vector<144x16xf32>
    %40 = vector.broadcast %17 : vector<1x16xf32> to vector<144x16xf32>
    %41 = arith.mulf %39, %40 : vector<144x16xf32>
    %cst_33 = arith.constant dense<0.000000e+00> : vector<144xf32>
    %42 = vector.multi_reduction <add>, %41, %cst_33 [1] : vector<144x16xf32> to vector<144xf32>
    %43 = vector.shape_cast %42 : vector<144xf32> to vector<144x1xf32>
    %44 = vector.broadcast %18 : vector<1x1xf32> to vector<144x1xf32>
    %45 = arith.addf %43, %44 : vector<144x1xf32>
    %cst_34 = arith.constant dense<0.000000e+00> : vector<144x32xf32>
    %46 = tpu.matmul %39, %12, %cst_34 {dimension_numbers = #tpu.dot_dimension_numbers<[1], [0], [0], [1], [0, 0, 1, 1], [], []>} : vector<144x16xf32>, vector<16x32xf32>, vector<144x32xf32> -> vector<144x32xf32>
    %47 = vector.broadcast %16 : vector<1x32xf32> to vector<144x32xf32>
    %48 = arith.addf %46, %47 : vector<144x32xf32>
    %49 = arith.subf %48, %31 : vector<144x32xf32>
    %50 = arith.mulf %49, %49 : vector<144x32xf32>
    %cst_35 = arith.constant dense<0.000000e+00> : vector<144xf32>
    %51 = vector.multi_reduction <add>, %50, %cst_35 [1] : vector<144x32xf32> to vector<144xf32>
    %52 = vector.shape_cast %51 : vector<144xf32> to vector<144x1xf32>
    %53 = arith.mulf %52, %9 : vector<144x1xf32>
    %cst_36 = arith.constant dense<0.000000e+00> : vector<1xf32>
    %54 = vector.multi_reduction <add>, %53, %cst_36 [0] : vector<144x1xf32> to vector<1xf32>
    %55 = vector.shape_cast %54 : vector<1xf32> to vector<1x1xf32>
    %cst_37 = arith.constant 7.812500e-04 : f32
    %56 = vector.broadcast %cst_37 : f32 to vector<1x1xf32>
    %57 = arith.mulf %55, %56 : vector<1x1xf32>
    %58 = vector.broadcast %45 : vector<144x1xf32> to vector<144x6xf32>
    %59 = arith.mulf %4, %58 : vector<144x6xf32>
    %cst_38 = arith.constant dense<0.000000e+00> : vector<24x6xf32>
    %60 = tpu.matmul %3, %59, %cst_38 {dimension_numbers = #tpu.dot_dimension_numbers<[1], [0], [0], [1], [0, 0, 1, 1], [], []>} : vector<24x144xf32>, vector<144x6xf32>, vector<24x6xf32> -> vector<24x6xf32>
    %cst_39 = arith.constant dense<0.000000e+00> : vector<24x6xf32>
    %61 = tpu.matmul %7, %60, %cst_39 {dimension_numbers = #tpu.dot_dimension_numbers<[1], [0], [0], [1], [0, 0, 1, 1], [], []>} : vector<24x24xf32>, vector<24x6xf32>, vector<24x6xf32> -> vector<24x6xf32>
    %cst_40 = arith.constant dense<0.000000e+00> : vector<24xf32>
    %62 = vector.multi_reduction <add>, %61, %cst_40 [1] : vector<24x6xf32> to vector<24xf32>
    %63 = vector.shape_cast %62 : vector<24xf32> to vector<24x1xf32>
    %cst_41 = arith.constant 0.027777778 : f32
    %64 = vector.broadcast %cst_41 : f32 to vector<24x1xf32>
    %65 = arith.mulf %63, %64 : vector<24x1xf32>
    %66 = vector.broadcast %65 : vector<24x1xf32> to vector<24x6xf32>
    %67 = arith.subf %60, %66 : vector<24x6xf32>
    %68 = arith.mulf %67, %67 : vector<24x6xf32>
    %cst_42 = arith.constant dense<0.000000e+00> : vector<24x6xf32>
    %69 = tpu.matmul %7, %68, %cst_42 {dimension_numbers = #tpu.dot_dimension_numbers<[1], [0], [0], [1], [0, 0, 1, 1], [], []>} : vector<24x24xf32>, vector<24x6xf32>, vector<24x6xf32> -> vector<24x6xf32>
    %cst_43 = arith.constant dense<0.000000e+00> : vector<24xf32>
    %70 = vector.multi_reduction <add>, %69, %cst_43 [1] : vector<24x6xf32> to vector<24xf32>
    %71 = vector.shape_cast %70 : vector<24xf32> to vector<24x1xf32>
    %cst_44 = arith.constant 0.0285714287 : f32
    %72 = vector.broadcast %cst_44 : f32 to vector<24x1xf32>
    %73 = arith.mulf %71, %72 : vector<24x1xf32>
    %74 = math.rsqrt %73 : vector<24x1xf32>
    %cst_45 = arith.constant 0.000000e+00 : f32
    %75 = vector.broadcast %cst_45 : f32 to vector<24x6xf32>
    %76 = arith.subf %75, %60 : vector<24x6xf32>
    %77 = vector.broadcast %74 : vector<24x1xf32> to vector<24x6xf32>
    %78 = arith.mulf %76, %77 : vector<24x6xf32>
    %79 = math.exp %78 : vector<24x6xf32>
    %cst_46 = arith.constant 1.000000e+00 : f32
    %80 = vector.broadcast %cst_46 : f32 to vector<24x6xf32>
    %81 = arith.subf %80, %5 : vector<24x6xf32>
    %82 = arith.mulf %79, %81 : vector<24x6xf32>
    %cst_47 = arith.constant dense<0.000000e+00> : vector<24x6xf32>
    %83 = tpu.matmul %7, %82, %cst_47 {dimension_numbers = #tpu.dot_dimension_numbers<[1], [0], [0], [1], [0, 0, 1, 1], [], []>} : vector<24x24xf32>, vector<24x6xf32>, vector<24x6xf32> -> vector<24x6xf32>
    %cst_48 = arith.constant 9.99999997E-7 : f32
    %84 = vector.broadcast %cst_48 : f32 to vector<24x6xf32>
    %85 = arith.addf %83, %84 : vector<24x6xf32>
    %86 = math.rsqrt %85 : vector<24x6xf32>
    %87 = arith.mulf %86, %5 : vector<24x6xf32>
    %cst_49 = arith.constant dense<0.000000e+00> : vector<24xf32>
    %88 = vector.multi_reduction <add>, %87, %cst_49 [1] : vector<24x6xf32> to vector<24xf32>
    %89 = vector.shape_cast %88 : vector<24xf32> to vector<24x1xf32>
    %90 = vector.broadcast %89 : vector<24x1xf32> to vector<24x6xf32>
    %91 = arith.mulf %90, %82 : vector<24x6xf32>
    %92 = arith.mulf %91, %86 : vector<24x6xf32>
    %cst_50 = arith.constant 5.000000e-01 : f32
    %93 = vector.broadcast %cst_50 : f32 to vector<24x6xf32>
    %94 = arith.mulf %93, %92 : vector<24x6xf32>
    %95 = arith.subf %5, %94 : vector<24x6xf32>
    %96 = tpu.concatenate %95, %5 in 1 : vector<24x6xf32>, vector<24x6xf32> -> vector<24x12xf32>
    %97 = tpu.iota {dimensions = array<i32: 1>} : vector<1x12xi32>
    %98 = tpu.iota {dimensions = array<i32: 1>} : vector<1x6xi32>
    %c0_i32 = arith.constant 0 : i32
    %99 = vector.broadcast %c0_i32 : i32 to vector<1x6xi32>
    %100 = arith.cmpi eq, %98, %99 : vector<1x6xi32>
    %101 = arith.extui %100 : vector<1x6xi1> to vector<1x6xi32>
    %102 = arith.sitofp %101 : vector<1x6xi32> to vector<1x6xf32>
    %c0_i32_51 = arith.constant 0 : i32
    %103 = vector.broadcast %c0_i32_51 : i32 to vector<1x12xi32>
    %104 = arith.cmpi eq, %97, %103 : vector<1x12xi32>
    %105 = arith.extui %104 : vector<1x12xi1> to vector<1x12xi32>
    %106 = arith.sitofp %105 : vector<1x12xi32> to vector<1x12xf32>
    %107 = vector.broadcast %102 : vector<1x6xf32> to vector<24x6xf32>
    %108 = arith.mulf %5, %107 : vector<24x6xf32>
    %cst_52 = arith.constant dense<0.000000e+00> : vector<24xf32>
    %109 = vector.multi_reduction <add>, %108, %cst_52 [1] : vector<24x6xf32> to vector<24xf32>
    %110 = vector.shape_cast %109 : vector<24xf32> to vector<24x1xf32>
    %111 = vector.broadcast %110 : vector<24x1xf32> to vector<24x12xf32>
    %112 = arith.mulf %96, %111 : vector<24x12xf32>
    %cst_53 = arith.constant dense<0.000000e+00> : vector<24x12xf32>
    %113 = tpu.matmul %7, %112, %cst_53 {dimension_numbers = #tpu.dot_dimension_numbers<[1], [0], [0], [1], [0, 0, 1, 1], [], []>} : vector<24x24xf32>, vector<24x12xf32>, vector<24x12xf32> -> vector<24x12xf32>
    %114 = vector.broadcast %106 : vector<1x12xf32> to vector<24x12xf32>
    %115 = arith.mulf %113, %114 : vector<24x12xf32>
    %cst_54 = arith.constant dense<0.000000e+00> : vector<24xf32>
    %116 = vector.multi_reduction <add>, %115, %cst_54 [1] : vector<24x12xf32> to vector<24xf32>
    %117 = vector.shape_cast %116 : vector<24xf32> to vector<24x1xf32>
    %118 = vector.broadcast %106 : vector<1x12xf32> to vector<24x12xf32>
    %119 = arith.mulf %96, %118 : vector<24x12xf32>
    %cst_55 = arith.constant dense<0.000000e+00> : vector<24xf32>
    %120 = vector.multi_reduction <add>, %119, %cst_55 [1] : vector<24x12xf32> to vector<24xf32>
    %121 = vector.shape_cast %120 : vector<24xf32> to vector<24x1xf32>
    %cst_56 = arith.constant 1.000000e+00 : f32
    %122 = vector.broadcast %cst_56 : f32 to vector<24x1xf32>
    %123 = arith.divf %122, %117 : vector<24x1xf32>
    %124 = vector.broadcast %123 : vector<24x1xf32> to vector<24x12xf32>
    %125 = arith.mulf %113, %124 : vector<24x12xf32>
    %cst_57 = arith.constant 5.000000e-01 : f32
    %126 = vector.broadcast %cst_57 : f32 to vector<24x1xf32>
    %127 = arith.cmpf ogt, %110, %126 : vector<24x1xf32>
    %128 = vector.broadcast %121 : vector<24x1xf32> to vector<24x12xf32>
    %129 = arith.mulf %128, %125 : vector<24x12xf32>
    %130 = arith.subf %96, %129 : vector<24x12xf32>
    %131 = vector.shape_cast %127 : vector<24x1xi1> to vector<24x1xi1>
    %132 = vector.broadcast %131 : vector<24x1xi1> to vector<24x12xi1>
    %133 = arith.select %132, %125, %130 : vector<24x12xi1>, vector<24x12xf32>
    %c1_i32 = arith.constant 1 : i32
    %134 = vector.broadcast %c1_i32 : i32 to vector<1x6xi32>
    %135 = arith.cmpi eq, %98, %134 : vector<1x6xi32>
    %136 = arith.extui %135 : vector<1x6xi1> to vector<1x6xi32>
    %137 = arith.sitofp %136 : vector<1x6xi32> to vector<1x6xf32>
    %c1_i32_58 = arith.constant 1 : i32
    %138 = vector.broadcast %c1_i32_58 : i32 to vector<1x12xi32>
    %139 = arith.cmpi eq, %97, %138 : vector<1x12xi32>
    %140 = arith.extui %139 : vector<1x12xi1> to vector<1x12xi32>
    %141 = arith.sitofp %140 : vector<1x12xi32> to vector<1x12xf32>
    %142 = vector.broadcast %137 : vector<1x6xf32> to vector<24x6xf32>
    %143 = arith.mulf %5, %142 : vector<24x6xf32>
    %cst_59 = arith.constant dense<0.000000e+00> : vector<24xf32>
    %144 = vector.multi_reduction <add>, %143, %cst_59 [1] : vector<24x6xf32> to vector<24xf32>
    %145 = vector.shape_cast %144 : vector<24xf32> to vector<24x1xf32>
    %146 = vector.broadcast %145 : vector<24x1xf32> to vector<24x12xf32>
    %147 = arith.mulf %133, %146 : vector<24x12xf32>
    %cst_60 = arith.constant dense<0.000000e+00> : vector<24x12xf32>
    %148 = tpu.matmul %7, %147, %cst_60 {dimension_numbers = #tpu.dot_dimension_numbers<[1], [0], [0], [1], [0, 0, 1, 1], [], []>} : vector<24x24xf32>, vector<24x12xf32>, vector<24x12xf32> -> vector<24x12xf32>
    %149 = vector.broadcast %141 : vector<1x12xf32> to vector<24x12xf32>
    %150 = arith.mulf %148, %149 : vector<24x12xf32>
    %cst_61 = arith.constant dense<0.000000e+00> : vector<24xf32>
    %151 = vector.multi_reduction <add>, %150, %cst_61 [1] : vector<24x12xf32> to vector<24xf32>
    %152 = vector.shape_cast %151 : vector<24xf32> to vector<24x1xf32>
    %153 = vector.broadcast %141 : vector<1x12xf32> to vector<24x12xf32>
    %154 = arith.mulf %133, %153 : vector<24x12xf32>
    %cst_62 = arith.constant dense<0.000000e+00> : vector<24xf32>
    %155 = vector.multi_reduction <add>, %154, %cst_62 [1] : vector<24x12xf32> to vector<24xf32>
    %156 = vector.shape_cast %155 : vector<24xf32> to vector<24x1xf32>
    %cst_63 = arith.constant 1.000000e+00 : f32
    %157 = vector.broadcast %cst_63 : f32 to vector<24x1xf32>
    %158 = arith.divf %157, %152 : vector<24x1xf32>
    %159 = vector.broadcast %158 : vector<24x1xf32> to vector<24x12xf32>
    %160 = arith.mulf %148, %159 : vector<24x12xf32>
    %cst_64 = arith.constant 5.000000e-01 : f32
    %161 = vector.broadcast %cst_64 : f32 to vector<24x1xf32>
    %162 = arith.cmpf ogt, %145, %161 : vector<24x1xf32>
    %163 = vector.broadcast %156 : vector<24x1xf32> to vector<24x12xf32>
    %164 = arith.mulf %163, %160 : vector<24x12xf32>
    %165 = arith.subf %133, %164 : vector<24x12xf32>
    %166 = vector.shape_cast %162 : vector<24x1xi1> to vector<24x1xi1>
    %167 = vector.broadcast %166 : vector<24x1xi1> to vector<24x12xi1>
    %168 = arith.select %167, %160, %165 : vector<24x12xi1>, vector<24x12xf32>
    %c2_i32 = arith.constant 2 : i32
    %169 = vector.broadcast %c2_i32 : i32 to vector<1x6xi32>
    %170 = arith.cmpi eq, %98, %169 : vector<1x6xi32>
    %171 = arith.extui %170 : vector<1x6xi1> to vector<1x6xi32>
    %172 = arith.sitofp %171 : vector<1x6xi32> to vector<1x6xf32>
    %c2_i32_65 = arith.constant 2 : i32
    %173 = vector.broadcast %c2_i32_65 : i32 to vector<1x12xi32>
    %174 = arith.cmpi eq, %97, %173 : vector<1x12xi32>
    %175 = arith.extui %174 : vector<1x12xi1> to vector<1x12xi32>
    %176 = arith.sitofp %175 : vector<1x12xi32> to vector<1x12xf32>
    %177 = vector.broadcast %172 : vector<1x6xf32> to vector<24x6xf32>
    %178 = arith.mulf %5, %177 : vector<24x6xf32>
    %cst_66 = arith.constant dense<0.000000e+00> : vector<24xf32>
    %179 = vector.multi_reduction <add>, %178, %cst_66 [1] : vector<24x6xf32> to vector<24xf32>
    %180 = vector.shape_cast %179 : vector<24xf32> to vector<24x1xf32>
    %181 = vector.broadcast %180 : vector<24x1xf32> to vector<24x12xf32>
    %182 = arith.mulf %168, %181 : vector<24x12xf32>
    %cst_67 = arith.constant dense<0.000000e+00> : vector<24x12xf32>
    %183 = tpu.matmul %7, %182, %cst_67 {dimension_numbers = #tpu.dot_dimension_numbers<[1], [0], [0], [1], [0, 0, 1, 1], [], []>} : vector<24x24xf32>, vector<24x12xf32>, vector<24x12xf32> -> vector<24x12xf32>
    %184 = vector.broadcast %176 : vector<1x12xf32> to vector<24x12xf32>
    %185 = arith.mulf %183, %184 : vector<24x12xf32>
    %cst_68 = arith.constant dense<0.000000e+00> : vector<24xf32>
    %186 = vector.multi_reduction <add>, %185, %cst_68 [1] : vector<24x12xf32> to vector<24xf32>
    %187 = vector.shape_cast %186 : vector<24xf32> to vector<24x1xf32>
    %188 = vector.broadcast %176 : vector<1x12xf32> to vector<24x12xf32>
    %189 = arith.mulf %168, %188 : vector<24x12xf32>
    %cst_69 = arith.constant dense<0.000000e+00> : vector<24xf32>
    %190 = vector.multi_reduction <add>, %189, %cst_69 [1] : vector<24x12xf32> to vector<24xf32>
    %191 = vector.shape_cast %190 : vector<24xf32> to vector<24x1xf32>
    %cst_70 = arith.constant 1.000000e+00 : f32
    %192 = vector.broadcast %cst_70 : f32 to vector<24x1xf32>
    %193 = arith.divf %192, %187 : vector<24x1xf32>
    %194 = vector.broadcast %193 : vector<24x1xf32> to vector<24x12xf32>
    %195 = arith.mulf %183, %194 : vector<24x12xf32>
    %cst_71 = arith.constant 5.000000e-01 : f32
    %196 = vector.broadcast %cst_71 : f32 to vector<24x1xf32>
    %197 = arith.cmpf ogt, %180, %196 : vector<24x1xf32>
    %198 = vector.broadcast %191 : vector<24x1xf32> to vector<24x12xf32>
    %199 = arith.mulf %198, %195 : vector<24x12xf32>
    %200 = arith.subf %168, %199 : vector<24x12xf32>
    %201 = vector.shape_cast %197 : vector<24x1xi1> to vector<24x1xi1>
    %202 = vector.broadcast %201 : vector<24x1xi1> to vector<24x12xi1>
    %203 = arith.select %202, %195, %200 : vector<24x12xi1>, vector<24x12xf32>
    %c3_i32 = arith.constant 3 : i32
    %204 = vector.broadcast %c3_i32 : i32 to vector<1x6xi32>
    %205 = arith.cmpi eq, %98, %204 : vector<1x6xi32>
    %206 = arith.extui %205 : vector<1x6xi1> to vector<1x6xi32>
    %207 = arith.sitofp %206 : vector<1x6xi32> to vector<1x6xf32>
    %c3_i32_72 = arith.constant 3 : i32
    %208 = vector.broadcast %c3_i32_72 : i32 to vector<1x12xi32>
    %209 = arith.cmpi eq, %97, %208 : vector<1x12xi32>
    %210 = arith.extui %209 : vector<1x12xi1> to vector<1x12xi32>
    %211 = arith.sitofp %210 : vector<1x12xi32> to vector<1x12xf32>
    %212 = vector.broadcast %207 : vector<1x6xf32> to vector<24x6xf32>
    %213 = arith.mulf %5, %212 : vector<24x6xf32>
    %cst_73 = arith.constant dense<0.000000e+00> : vector<24xf32>
    %214 = vector.multi_reduction <add>, %213, %cst_73 [1] : vector<24x6xf32> to vector<24xf32>
    %215 = vector.shape_cast %214 : vector<24xf32> to vector<24x1xf32>
    %216 = vector.broadcast %215 : vector<24x1xf32> to vector<24x12xf32>
    %217 = arith.mulf %203, %216 : vector<24x12xf32>
    %cst_74 = arith.constant dense<0.000000e+00> : vector<24x12xf32>
    %218 = tpu.matmul %7, %217, %cst_74 {dimension_numbers = #tpu.dot_dimension_numbers<[1], [0], [0], [1], [0, 0, 1, 1], [], []>} : vector<24x24xf32>, vector<24x12xf32>, vector<24x12xf32> -> vector<24x12xf32>
    %219 = vector.broadcast %211 : vector<1x12xf32> to vector<24x12xf32>
    %220 = arith.mulf %218, %219 : vector<24x12xf32>
    %cst_75 = arith.constant dense<0.000000e+00> : vector<24xf32>
    %221 = vector.multi_reduction <add>, %220, %cst_75 [1] : vector<24x12xf32> to vector<24xf32>
    %222 = vector.shape_cast %221 : vector<24xf32> to vector<24x1xf32>
    %223 = vector.broadcast %211 : vector<1x12xf32> to vector<24x12xf32>
    %224 = arith.mulf %203, %223 : vector<24x12xf32>
    %cst_76 = arith.constant dense<0.000000e+00> : vector<24xf32>
    %225 = vector.multi_reduction <add>, %224, %cst_76 [1] : vector<24x12xf32> to vector<24xf32>
    %226 = vector.shape_cast %225 : vector<24xf32> to vector<24x1xf32>
    %cst_77 = arith.constant 1.000000e+00 : f32
    %227 = vector.broadcast %cst_77 : f32 to vector<24x1xf32>
    %228 = arith.divf %227, %222 : vector<24x1xf32>
    %229 = vector.broadcast %228 : vector<24x1xf32> to vector<24x12xf32>
    %230 = arith.mulf %218, %229 : vector<24x12xf32>
    %cst_78 = arith.constant 5.000000e-01 : f32
    %231 = vector.broadcast %cst_78 : f32 to vector<24x1xf32>
    %232 = arith.cmpf ogt, %215, %231 : vector<24x1xf32>
    %233 = vector.broadcast %226 : vector<24x1xf32> to vector<24x12xf32>
    %234 = arith.mulf %233, %230 : vector<24x12xf32>
    %235 = arith.subf %203, %234 : vector<24x12xf32>
    %236 = vector.shape_cast %232 : vector<24x1xi1> to vector<24x1xi1>
    %237 = vector.broadcast %236 : vector<24x1xi1> to vector<24x12xi1>
    %238 = arith.select %237, %230, %235 : vector<24x12xi1>, vector<24x12xf32>
    %c4_i32 = arith.constant 4 : i32
    %239 = vector.broadcast %c4_i32 : i32 to vector<1x6xi32>
    %240 = arith.cmpi eq, %98, %239 : vector<1x6xi32>
    %241 = arith.extui %240 : vector<1x6xi1> to vector<1x6xi32>
    %242 = arith.sitofp %241 : vector<1x6xi32> to vector<1x6xf32>
    %c4_i32_79 = arith.constant 4 : i32
    %243 = vector.broadcast %c4_i32_79 : i32 to vector<1x12xi32>
    %244 = arith.cmpi eq, %97, %243 : vector<1x12xi32>
    %245 = arith.extui %244 : vector<1x12xi1> to vector<1x12xi32>
    %246 = arith.sitofp %245 : vector<1x12xi32> to vector<1x12xf32>
    %247 = vector.broadcast %242 : vector<1x6xf32> to vector<24x6xf32>
    %248 = arith.mulf %5, %247 : vector<24x6xf32>
    %cst_80 = arith.constant dense<0.000000e+00> : vector<24xf32>
    %249 = vector.multi_reduction <add>, %248, %cst_80 [1] : vector<24x6xf32> to vector<24xf32>
    %250 = vector.shape_cast %249 : vector<24xf32> to vector<24x1xf32>
    %251 = vector.broadcast %250 : vector<24x1xf32> to vector<24x12xf32>
    %252 = arith.mulf %238, %251 : vector<24x12xf32>
    %cst_81 = arith.constant dense<0.000000e+00> : vector<24x12xf32>
    %253 = tpu.matmul %7, %252, %cst_81 {dimension_numbers = #tpu.dot_dimension_numbers<[1], [0], [0], [1], [0, 0, 1, 1], [], []>} : vector<24x24xf32>, vector<24x12xf32>, vector<24x12xf32> -> vector<24x12xf32>
    %254 = vector.broadcast %246 : vector<1x12xf32> to vector<24x12xf32>
    %255 = arith.mulf %253, %254 : vector<24x12xf32>
    %cst_82 = arith.constant dense<0.000000e+00> : vector<24xf32>
    %256 = vector.multi_reduction <add>, %255, %cst_82 [1] : vector<24x12xf32> to vector<24xf32>
    %257 = vector.shape_cast %256 : vector<24xf32> to vector<24x1xf32>
    %258 = vector.broadcast %246 : vector<1x12xf32> to vector<24x12xf32>
    %259 = arith.mulf %238, %258 : vector<24x12xf32>
    %cst_83 = arith.constant dense<0.000000e+00> : vector<24xf32>
    %260 = vector.multi_reduction <add>, %259, %cst_83 [1] : vector<24x12xf32> to vector<24xf32>
    %261 = vector.shape_cast %260 : vector<24xf32> to vector<24x1xf32>
    %cst_84 = arith.constant 1.000000e+00 : f32
    %262 = vector.broadcast %cst_84 : f32 to vector<24x1xf32>
    %263 = arith.divf %262, %257 : vector<24x1xf32>
    %264 = vector.broadcast %263 : vector<24x1xf32> to vector<24x12xf32>
    %265 = arith.mulf %253, %264 : vector<24x12xf32>
    %cst_85 = arith.constant 5.000000e-01 : f32
    %266 = vector.broadcast %cst_85 : f32 to vector<24x1xf32>
    %267 = arith.cmpf ogt, %250, %266 : vector<24x1xf32>
    %268 = vector.broadcast %261 : vector<24x1xf32> to vector<24x12xf32>
    %269 = arith.mulf %268, %265 : vector<24x12xf32>
    %270 = arith.subf %238, %269 : vector<24x12xf32>
    %271 = vector.shape_cast %267 : vector<24x1xi1> to vector<24x1xi1>
    %272 = vector.broadcast %271 : vector<24x1xi1> to vector<24x12xi1>
    %273 = arith.select %272, %265, %270 : vector<24x12xi1>, vector<24x12xf32>
    %c5_i32 = arith.constant 5 : i32
    %274 = vector.broadcast %c5_i32 : i32 to vector<1x6xi32>
    %275 = arith.cmpi eq, %98, %274 : vector<1x6xi32>
    %276 = arith.extui %275 : vector<1x6xi1> to vector<1x6xi32>
    %277 = arith.sitofp %276 : vector<1x6xi32> to vector<1x6xf32>
    %c5_i32_86 = arith.constant 5 : i32
    %278 = vector.broadcast %c5_i32_86 : i32 to vector<1x12xi32>
    %279 = arith.cmpi eq, %97, %278 : vector<1x12xi32>
    %280 = arith.extui %279 : vector<1x12xi1> to vector<1x12xi32>
    %281 = arith.sitofp %280 : vector<1x12xi32> to vector<1x12xf32>
    %282 = vector.broadcast %277 : vector<1x6xf32> to vector<24x6xf32>
    %283 = arith.mulf %5, %282 : vector<24x6xf32>
    %cst_87 = arith.constant dense<0.000000e+00> : vector<24xf32>
    %284 = vector.multi_reduction <add>, %283, %cst_87 [1] : vector<24x6xf32> to vector<24xf32>
    %285 = vector.shape_cast %284 : vector<24xf32> to vector<24x1xf32>
    %286 = vector.broadcast %285 : vector<24x1xf32> to vector<24x12xf32>
    %287 = arith.mulf %273, %286 : vector<24x12xf32>
    %cst_88 = arith.constant dense<0.000000e+00> : vector<24x12xf32>
    %288 = tpu.matmul %7, %287, %cst_88 {dimension_numbers = #tpu.dot_dimension_numbers<[1], [0], [0], [1], [0, 0, 1, 1], [], []>} : vector<24x24xf32>, vector<24x12xf32>, vector<24x12xf32> -> vector<24x12xf32>
    %289 = vector.broadcast %281 : vector<1x12xf32> to vector<24x12xf32>
    %290 = arith.mulf %288, %289 : vector<24x12xf32>
    %cst_89 = arith.constant dense<0.000000e+00> : vector<24xf32>
    %291 = vector.multi_reduction <add>, %290, %cst_89 [1] : vector<24x12xf32> to vector<24xf32>
    %292 = vector.shape_cast %291 : vector<24xf32> to vector<24x1xf32>
    %293 = vector.broadcast %281 : vector<1x12xf32> to vector<24x12xf32>
    %294 = arith.mulf %273, %293 : vector<24x12xf32>
    %cst_90 = arith.constant dense<0.000000e+00> : vector<24xf32>
    %295 = vector.multi_reduction <add>, %294, %cst_90 [1] : vector<24x12xf32> to vector<24xf32>
    %296 = vector.shape_cast %295 : vector<24xf32> to vector<24x1xf32>
    %cst_91 = arith.constant 1.000000e+00 : f32
    %297 = vector.broadcast %cst_91 : f32 to vector<24x1xf32>
    %298 = arith.divf %297, %292 : vector<24x1xf32>
    %299 = vector.broadcast %298 : vector<24x1xf32> to vector<24x12xf32>
    %300 = arith.mulf %288, %299 : vector<24x12xf32>
    %cst_92 = arith.constant 5.000000e-01 : f32
    %301 = vector.broadcast %cst_92 : f32 to vector<24x1xf32>
    %302 = arith.cmpf ogt, %285, %301 : vector<24x1xf32>
    %303 = vector.broadcast %296 : vector<24x1xf32> to vector<24x12xf32>
    %304 = arith.mulf %303, %300 : vector<24x12xf32>
    %305 = arith.subf %273, %304 : vector<24x12xf32>
    %306 = vector.shape_cast %302 : vector<24x1xi1> to vector<24x1xi1>
    %307 = vector.broadcast %306 : vector<24x1xi1> to vector<24x12xi1>
    %308 = arith.select %307, %300, %305 : vector<24x12xi1>, vector<24x12xf32>
    %cst_93 = arith.constant dense<0.000000e+00> : vector<24x24xf32>
    %309 = tpu.matmul %308, %6, %cst_93 {dimension_numbers = #tpu.dot_dimension_numbers<[1], [0], [0], [1], [0, 0, 1, 1], [], []>} : vector<24x12xf32>, vector<12x24xf32>, vector<24x24xf32> -> vector<24x24xf32>
    %cst_94 = arith.constant 5.000000e-01 : f32
    %310 = vector.broadcast %cst_94 : f32 to vector<24x24xf32>
    %311 = arith.mulf %310, %309 : vector<24x24xf32>
    %312 = arith.mulf %311, %7 : vector<24x24xf32>
    %313 = tpu.concatenate %0, %27 in 1 : vector<24x32xf32>, vector<24x32xf32> -> vector<24x64xf32>
    %cst_95 = arith.constant dense<0.000000e+00> : vector<24x64xf32>
    %314 = tpu.matmul %312, %313, %cst_95 {dimension_numbers = #tpu.dot_dimension_numbers<[1], [0], [0], [1], [0, 0, 1, 1], [], []>} : vector<24x24xf32>, vector<24x64xf32>, vector<24x64xf32> -> vector<24x64xf32>
    %cst_96 = arith.constant dense<0.000000e+00> : vector<24x300xf32>
    %315 = tpu.matmul %314, %13, %cst_96 {dimension_numbers = #tpu.dot_dimension_numbers<[1], [0], [0], [1], [0, 0, 1, 1], [], []>} : vector<24x64xf32>, vector<64x300xf32>, vector<24x300xf32> -> vector<24x300xf32>
    %316 = vector.broadcast %19 : vector<1x300xf32> to vector<24x300xf32>
    %317 = arith.addf %315, %316 : vector<24x300xf32>
    %cst_97 = arith.constant 0.000000e+00 : f32
    %318 = vector.broadcast %cst_97 : f32 to vector<24x300xf32>
    %319 = arith.maximumf %317, %318 : vector<24x300xf32>
    %320 = vector.broadcast %20 : vector<1x300xf32> to vector<24x300xf32>
    %321 = arith.mulf %319, %320 : vector<24x300xf32>
    %cst_98 = arith.constant dense<0.000000e+00> : vector<24xf32>
    %322 = vector.multi_reduction <add>, %321, %cst_98 [1] : vector<24x300xf32> to vector<24xf32>
    %323 = vector.shape_cast %322 : vector<24xf32> to vector<24x1xf32>
    %324 = vector.broadcast %21 : vector<1x1xf32> to vector<24x1xf32>
    %325 = arith.addf %323, %324 : vector<24x1xf32>
    %326 = arith.negf %325 : vector<24x1xf32>
    %327 = math.exp %326 : vector<24x1xf32>
    %cst_99 = arith.constant 1.000000e+00 : f32
    %328 = vector.broadcast %cst_99 : f32 to vector<24x1xf32>
    %329 = arith.addf %328, %327 : vector<24x1xf32>
    %330 = arith.divf %328, %329 : vector<24x1xf32>
    %331 = vector.extract_strided_slice %314 {offsets = [0, 0], sizes = [24, 32], strides = [1, 1]} : vector<24x64xf32> to vector<24x32xf32>
    %332 = vector.extract_strided_slice %314 {offsets = [0, 32], sizes = [24, 32], strides = [1, 1]} : vector<24x64xf32> to vector<24x32xf32>
    %333 = vector.broadcast %330 : vector<24x1xf32> to vector<24x32xf32>
    %334 = arith.mulf %333, %331 : vector<24x32xf32>
    %cst_100 = arith.constant 1.000000e+00 : f32
    %335 = vector.broadcast %cst_100 : f32 to vector<24x1xf32>
    %336 = arith.subf %335, %330 : vector<24x1xf32>
    %337 = vector.broadcast %336 : vector<24x1xf32> to vector<24x32xf32>
    %338 = arith.mulf %337, %332 : vector<24x32xf32>
    %339 = arith.addf %334, %338 : vector<24x32xf32>
    %c0_101 = arith.constant 0 : index
    %c0_102 = arith.constant 0 : index
    %340 = vector.load %arg4[%c0_101, %c0_102] : memref<32x32xf32, #tpu.memory_space<vmem>>, vector<24x32xf32>
    tpu.vector_store %arg4[%c0_101, %c0_102], %339 {strides = array<i32>} : memref<32x32xf32, #tpu.memory_space<vmem>>, vector<24x32xf32>,
    %341 = vector.shape_cast %57 : vector<1x1xf32> to vector<1x1xf32>
    %342 = vector.broadcast %341 : vector<1x1xf32> to vector<8x32xf32>
    %c24 = arith.constant 24 : index
    %c0_103 = arith.constant 0 : index
    %343 = vector.load %arg4[%c24, %c0_103] : memref<32x32xf32, #tpu.memory_space<vmem>>, vector<8x32xf32>
    tpu.vector_store %arg4[%c24, %c0_103], %342 {strides = array<i32>} : memref<32x32xf32, #tpu.memory_space<vmem>>, vector<8x32xf32>,
    return
  }
}

</mosaic_0001>

<llo_original>
// kernel: _forward.1
$region0: #{_forward.1}
  #allocation0 [shape = 'u32[]', space=smem, size = 0x4, offset = 0x4, fixed_abs, tag = 'smem constant byte address 0x4 - core index']
  #allocation1 [shape = 'u32[144,128]{1,0:T(1,128)}', space=vmem, size = 0x12000, scoped, tag = 'internal scratch']
  %s0 = inlined_call_operand.vmem [shape: f32[24,32], index: 0, kind: input, shape index: {}]
  %s1 = inlined_call_operand.vmem [shape: f32[20,32], index: 1, kind: input, shape index: {}]
  %s2 = inlined_call_operand.vmem [shape: f32[544,144], index: 2, kind: input, shape index: {}]
  %s3 = inlined_call_operand.vmem [shape: f32[152,300], index: 3, kind: input, shape index: {}]
  %s4 = inlined_call_operand.vmem [shape: f32[32,32], index: 4, kind: output, shape index: {}]
  %s5 = sld [smem:[#allocation0]]
  $region26: #{_forward.1} parent=0
    _
  %s7 = ssub.s32 1, %s5
  %s8 = scalar_select 0, %s7, %s5
  // Predicated region
  $region2: #{_forward.1} parent=0 // pred_check
    _
  $region3: #{_forward.1} parent=0 // pred_check_branch
    %10 = sbr.rel (0) target = $region5
  $region4: #{_forward.1} parent=0 // pred_region
    _
  $region5: #{_forward.1} parent=0 // pred_fallthru
    _
  // Predicated region
  $region6: #{_forward.1} parent=0 // pred_check
    _
  $region7: #{_forward.1} parent=0 // pred_check_branch
    %12 = sbr.rel (0) target = $region9
  $region8: #{_forward.1} parent=0 // pred_region
    _
  $region9: #{_forward.1} parent=0 // pred_fallthru
    _
  // Predicated region
  $region10: #{_forward.1} parent=0 // pred_check
    _
  $region11: #{_forward.1} parent=0 // pred_check_branch
    %14 = sbr.rel (0) target = $region13
  $region12: #{_forward.1} parent=0 // pred_region
    _
  $region13: #{_forward.1} parent=0 // pred_fallthru
    _
  // Predicated region
  $region14: #{_forward.1} parent=0 // pred_check
    _
  $region15: #{_forward.1} parent=0 // pred_check_branch
    %16 = sbr.rel (0) target = $region17
  $region16: #{_forward.1} parent=0 // pred_region
    _
  $region17: #{_forward.1} parent=0 // pred_fallthru
    _
  %v17 = vld [vmem:[%s0] sm:$0xff]
  %v18 = vld [vmem:[%s0 + $0x8] sm:$0xff]
  %v19 = vld [vmem:[%s0 + $0x10] sm:$0xff]
  %v20 = vld [vmem:[%s1] sm:$0xff]
  %v21 = vld [vmem:[%s1 + $0x8] sm:$0xff]
  %v22 = vld [vmem:[%s1 + $0x10] sm:$0xf]
  %v23 = vld [vmem:[%s2] sm:$0xff]
  %v24 = vld [vmem:[%s2 + $0x10] sm:$0xff]
  %v25 = vld [vmem:[%s2 + $0x20] sm:$0xff]
  %v26 = vld [vmem:[%s2 + $0x30] sm:$0xff]
  %v27 = vld [vmem:[%s2 + $0x40] sm:$0xff]
  %v28 = vld [vmem:[%s2 + $0x50] sm:$0xff]
  %v29 = vld [vmem:[%s2 + $0x60] sm:$0xff]
  %v30 = vld [vmem:[%s2 + $0x70] sm:$0xff]
  %v31 = vld [vmem:[%s2 + $0x80] sm:$0xff]
  %v32 = vld [vmem:[%s2 + $0x90] sm:$0xff]
  %v33 = vld [vmem:[%s2 + $0xa0] sm:$0xff]
  %v34 = vld [vmem:[%s2 + $0xb0] sm:$0xff]
  %v35 = vld [vmem:[%s2 + $0xc0] sm:$0xff]
  %v36 = vld [vmem:[%s2 + $0xd0] sm:$0xff]
  %v37 = vld [vmem:[%s2 + $0xe0] sm:$0xff]
  %v38 = vld [vmem:[%s2 + $0xf0] sm:$0xff]
  %v39 = vld [vmem:[%s2 + $0x100] sm:$0xff]
  %v40 = vld [vmem:[%s2 + $0x110] sm:$0xff]
  %v41 = vld [vmem:[%s2 + $0x120] sm:$0xff]
  %v42 = vld [vmem:[%s2 + $0x128] sm:$0xff]
  %v43 = vld [vmem:[%s2 + $0x130] sm:$0xff]
  %v44 = vld [vmem:[%s2 + $0x138] sm:$0xff]
  %v45 = vld [vmem:[%s2 + $0x140] sm:$0xff]
  %v46 = vld [vmem:[%s2 + $0x148] sm:$0xff]
  %v47 = vld [vmem:[%s2 + $0x150] sm:$0xff]
  %v48 = vld [vmem:[%s2 + $0x160] sm:$0xff]
  %v49 = vld [vmem:[%s2 + $0x170] sm:$0xff]
  %v50 = vld [vmem:[%s2 + $0x180] sm:$0xff]
  %v51 = vld [vmem:[%s2 + $0x190] sm:$0xff]
  %v52 = vld [vmem:[%s2 + $0x1a0] sm:$0xff]
  %v53 = vld [vmem:[%s2 + $0x1b0] sm:$0xff]
  %v54 = vld [vmem:[%s2 + $0x1c0] sm:$0xff]
  %v55 = vld [vmem:[%s2 + $0x1d0] sm:$0xff]
  %v56 = vld [vmem:[%s2 + $0x1e0] sm:$0xff]
  %v57 = vld [vmem:[%s2 + $0x1f0] sm:$0xff]
  %v58 = vld [vmem:[%s2 + $0x200] sm:$0xff]
  %v59 = vld [vmem:[%s2 + $0x210] sm:$0xff]
  %v60 = vld [vmem:[%s2 + $0x220] sm:$0xff]
  %v61 = vld [vmem:[%s2 + $0x230] sm:$0xff]
  %v62 = vld [vmem:[%s2 + $0x240] sm:$0xff]
  %v63 = vld [vmem:[%s2 + $0x250] sm:$0xff]
  %v64 = vld [vmem:[%s2 + $0x260] sm:$0xff]
  %v65 = vld [vmem:[%s2 + $0x270] sm:$0xff]
  %v66 = vld [vmem:[%s2 + $0x280] sm:$0xff]
  %v67 = vld [vmem:[%s2 + $0x290] sm:$0xff]
  %v68 = vld [vmem:[%s2 + $0x2a0] sm:$0xff]
  %v69 = vld [vmem:[%s2 + $0x2b0] sm:$0xf]
  %v70 = vld [vmem:[%s2 + $0x2c0] sm:$0xff]
  %v71 = vld [vmem:[%s2 + $0x2d0] sm:$0xff]
  %v72 = vld [vmem:[%s2 + $0x2e0] sm:$0xff]
  %v73 = vld [vmem:[%s2 + $0x2f0] sm:$0xff]
  %v74 = vld [vmem:[%s2 + $0x300] sm:$0xff]
  %v75 = vld [vmem:[%s2 + $0x310] sm:$0xff]
  %v76 = vld [vmem:[%s2 + $0x320] sm:$0xff]
  %v77 = vld [vmem:[%s2 + $0x330] sm:$0xff]
  %v78 = vld [vmem:[%s2 + $0x340] sm:$0xff]
  %v79 = vld [vmem:[%s2 + $0x350] sm:$0xff]
  %v80 = vld [vmem:[%s2 + $0x360] sm:$0xff]
  %v81 = vld [vmem:[%s2 + $0x370] sm:$0xff]
  %v82 = vld [vmem:[%s2 + $0x380] sm:$0xff]
  %v83 = vld [vmem:[%s2 + $0x390] sm:$0xff]
  %v84 = vld [vmem:[%s2 + $0x3a0] sm:$0xff]
  %v85 = vld [vmem:[%s2 + $0x3b0] sm:$0xff]
  %v86 = vld [vmem:[%s2 + $0x3c0] sm:$0xff]
  %v87 = vld [vmem:[%s2 + $0x3d0] sm:$0xff]
  %v88 = vld [vmem:[%s2 + $0x3e0] sm:$0xff]
  %v89 = vld [vmem:[%s2 + $0x3f0] sm:$0xff]
  %v90 = vld [vmem:[%s2 + $0x400] sm:$0xff]
  %v91 = vld [vmem:[%s2 + $0x410] sm:$0xff]
  %v92 = vld [vmem:[%s2 + $0x420] sm:$0xff]
  %v93 = vld [vmem:[%s2 + $0x430] sm:$0xff]
  %v94 = vld [vmem:[%s3] sm:$0xff]
  %v95 = vld [vmem:[%s3 + $0x18] sm:$0xff]
  %v96 = vld [vmem:[%s3 + $0x30] sm:$0xff]
  %v97 = vld [vmem:[%s3 + $0x48] sm:$0xff]
  %v98 = vld [vmem:[%s3 + $0x60] sm:$0xff]
  %v99 = vld [vmem:[%s3 + $0x78] sm:$0xff]
  %v100 = vld [vmem:[%s3 + $0x90] sm:$0xff]
  %v101 = vld [vmem:[%s3 + $0xa8] sm:$0xff]
  %v102 = vld [vmem:[%s3 + $0xc0] sm:$0xff]
  %v103 = vld [vmem:[%s3 + $0xd8] sm:$0xff]
  %v104 = vld [vmem:[%s3 + $0xf0] sm:$0xff]
  %v105 = vld [vmem:[%s3 + $0xf8] sm:$0xff]
  %v106 = vld [vmem:[%s3 + $0x100] sm:$0xff]
  %v107 = vld [vmem:[%s3 + $0x108] sm:$0xff]
  %v108 = vld [vmem:[%s3 + $0x110] sm:$0xff]
  %v109 = vld [vmem:[%s3 + $0x118] sm:$0xff]
  %v110 = vld [vmem:[%s3 + $0x120] sm:$0xff]
  %v111 = vld [vmem:[%s3 + $0x128] sm:$0xff]
  %v112 = vld [vmem:[%s3 + $0x130] sm:$0xff]
  %v113 = vld [vmem:[%s3 + $0x138] sm:$0xff]
  %v114 = vld [vmem:[%s3 + $0x140] sm:$0xff]
  %v115 = vld [vmem:[%s3 + $0x148] sm:$0xff]
  %v116 = vld [vmem:[%s3 + $0x150] sm:$0xff]
  %v117 = vld [vmem:[%s3 + $0x158] sm:$0xff]
  %v118 = vld [vmem:[%s3 + $0x160] sm:$0xff]
  %v119 = vld [vmem:[%s3 + $0x168] sm:$0xff]
  %v120 = vld [vmem:[%s3 + $0x170] sm:$0xff]
  %v121 = vld [vmem:[%s3 + $0x178] sm:$0xff]
  %v122 = vld [vmem:[%s3 + $0x180] sm:$0xff]
  %v123 = vld [vmem:[%s3 + $0x188] sm:$0xff]
  %v124 = vld [vmem:[%s3 + $0x190] sm:$0xff]
  %v125 = vld [vmem:[%s3 + $0x198] sm:$0xff]
  %v126 = vld [vmem:[%s3 + $0x1a0] sm:$0xff]
  %v127 = vld [vmem:[%s3 + $0x1a8] sm:$0xff]
  %v128 = vld [vmem:[%s3 + $0x1b0] ss:$0 sm:$0xff]
  %v129 = vld [vmem:[%s3 + $0x1b1] ss:$0 sm:$0xff]
  %v130 = vld [vmem:[%s3 + $0x1b2] ss:$0 sm:$0xff]
  %v131 = vld [vmem:[%s3 + $0x1b3] ss:$0 sm:$0xff]
  %v132 = vld [vmem:[%s3 + $0x1b4] ss:$0 sm:$0xff]
  %s133 = scalar_lea.vmem %s3, 437
  %v134 = vld [vmem:[%s133] ss:$8 sm:$0x7]
  %s135 = scalar_lea.vmem %s3, 438
  %v136 = vld [vmem:[%s135] ss:$8 sm:$0x7]
  %v137 = vld [vmem:[%s3 + $0x1b7] ss:$0 sm:$0xff]
  %vm138 = vcmask 261120
  %v140 = vsel %vm138, %v20, 0
  %v143 = vsel %vm138, %v21, 0
  %v146 = vsel %vm138, %v22, 0
  %148 = vmatprep.subr.mxu0 0.0
  %149 = vmatpush1.msra.mxu0 0.0
  %150 = vmatprep.subr.mxu0 0.0
  %151 = vmatpush1.msra.mxu0 0.0
  %152 = vmatprep.subr.mxu0 0.0
  %153 = vmatpush1.msra.mxu0 0.0
  %154 = vmatprep.subr.mxu0 0.0
  %155 = vmatpush1.msra.mxu0 0.0
  %156 = vmatprep.subr.mxu0 0.0
  %157 = vmatpush1.msra.mxu0 0.0
  %158 = vmatprep.subr.mxu0 0.0
  %159 = vmatpush1.msra.mxu0 0.0
  %160 = vmatprep.subr.mxu0 0.0
  %161 = vmatpush1.msra.mxu0 0.0
  %162 = vmatprep.subr.mxu0 0.0
  %163 = vmatpush1.msra.mxu0 0.0
  %164 = vmatprep.subr.mxu0 0.0
  %165 = vmatpush1.msra.mxu0 0.0
  %166 = vmatprep.subr.mxu0 0.0
  %167 = vmatpush1.msra.mxu0 0.0
  %168 = vmatprep.subr.mxu0 0.0
  %169 = vmatpush1.msra.mxu0 0.0
  %170 = vmatprep.subr.mxu0 0.0
  %171 = vmatpush1.msra.mxu0 0.0
  %172 = vmatprep.subr.mxu0 0.0
  %173 = vmatpush1.msra.mxu0 %v97
  %174 = vmatprep.subr.mxu0 0.0
  %175 = vmatpush1.msra.mxu0 %v96
  %176 = vmatprep.subr.mxu0 0.0
  %177 = vmatpush1.msra.mxu0 %v95
  %178 = vmatprep.subr.mxu0 0.0
  %179 = vmatpush1.msra.mxu0 %v94
  %180 = vmatprep.subr.mxu0 0.0
  %181 = vmatpush2.msra.mxu0 0.0
  %182 = vmatprep.subr.mxu0 0.0
  %183 = vmatpush2.msra.mxu0 0.0
  %184 = vmatprep.subr.mxu0 0.0
  %185 = vmatpush2.msra.mxu0 0.0
  %186 = vmatprep.subr.mxu0 0.0
  %187 = vmatpush2.msra.mxu0 0.0
  %188 = vmatprep.subr.mxu0 0.0
  %189 = vmatpush2.msra.mxu0 0.0
  %190 = vmatprep.subr.mxu0 0.0
  %191 = vmatpush2.msra.mxu0 0.0
  %192 = vmatprep.subr.mxu0 0.0
  %193 = vmatpush2.msra.mxu0 0.0
  %194 = vmatprep.subr.mxu0 0.0
  %195 = vmatpush2.msra.mxu0 0.0
  %196 = vmatprep.subr.mxu0 0.0
  %197 = vmatpush2.msra.mxu0 0.0
  %198 = vmatprep.subr.mxu0 0.0
  %199 = vmatpush2.msra.mxu0 0.0
  %200 = vmatprep.subr.mxu0 0.0
  %201 = vmatpush2.msra.mxu0 0.0
  %202 = vmatprep.subr.mxu0 0.0
  %203 = vmatpush2.msra.mxu0 0.0
  %204 = vmatprep.subr.mxu0 0.0
  %205 = vmatpush2.msra.mxu0 0.0
  %206 = vmatprep.subr.mxu0 0.0
  %207 = vmatpush2.msra.mxu0 0.0
  %208 = vmatprep.subr.mxu0 0.0
  %209 = vmatpush2.msra.mxu0 0.0
  %210 = vmatprep.subr.mxu0 0.0
  %211 = vmatpush2.msra.mxu0 0.0
  %212 = vmatprep.mubr.f32.mxu0 0.0
  %213 = vmatmul.mubr.f32.gmra.mxu0 %v140
  %v214 = vpop.f32.mrf.mxu0
  %v215 = vadd.f32 %v128, %v214
  %v216 = vpop.f32.mrf.mxu0
  %217 = vmatprep.mubr.f32.mxu0 0.0
  %218 = vmatmul.mubr.f32.gmra.mxu0 %v143
  %v219 = vpop.f32.mrf.mxu0
  %v220 = vadd.f32 %v128, %v219
  %v221 = vpop.f32.mrf.mxu0
  %222 = vmatprep.mubr.f32.mxu0 0.0
  %223 = vmatmul.mubr.f32.gmra.mxu0 %v146
  %v224 = vpop.f32.mrf.mxu0
  %v225 = vadd.f32 %v128, %v224
  %v226 = vpop.f32.mrf.mxu0
  %227 = vdwg.mxu0
  %v228 = vmax.f32 %v215, 0.0
  %v229 = vmax.f32 %v220, 0.0
  %v230 = vmax.f32 %v225, 0.0
  %vm231 = vcmask 162816
  %v233 = vsel %vm231, %v73, 0
  %v236 = vsel %vm231, %v74, 0
  %v239 = vsel %vm231, %v75, 0
  %vm241 = vcmask 1043456
  %v243 = vsel %vm241, %v230, 0
  %245 = vmatprep.subr.mxu0 0.0
  %246 = vmatpush1.msra.mxu0 0.0
  %247 = vmatprep.subr.mxu0 0.0
  %248 = vmatpush1.msra.mxu0 0.0
  %249 = vmatprep.subr.mxu0 0.0
  %250 = vmatpush1.msra.mxu0 0.0
  %251 = vmatprep.subr.mxu0 0.0
  %252 = vmatpush1.msra.mxu0 0.0
  %253 = vmatprep.subr.mxu0 0.0
  %254 = vmatpush1.msra.mxu0 0.0
  %255 = vmatprep.subr.mxu0 0.0
  %256 = vmatpush1.msra.mxu0 0.0
  %257 = vmatprep.subr.mxu0 0.0
  %258 = vmatpush1.msra.mxu0 0.0
  %259 = vmatprep.subr.mxu0 0.0
  %260 = vmatpush1.msra.mxu0 0.0
  %261 = vmatprep.subr.mxu0 0.0
  %262 = vmatpush1.msra.mxu0 0.0
  %263 = vmatprep.subr.mxu0 0.0
  %264 = vmatpush1.msra.mxu0 0.0
  %265 = vmatprep.subr.mxu0 0.0
  %266 = vmatpush1.msra.mxu0 0.0
  %267 = vmatprep.subr.mxu0 0.0
  %268 = vmatpush1.msra.mxu0 0.0
  %269 = vmatprep.subr.mxu0 0.0
  %270 = vmatpush1.msra.mxu0 0.0
  %271 = vmatprep.subr.mxu0 0.0
  %272 = vmatpush1.msra.mxu0 %v243
  %273 = vmatprep.subr.mxu0 0.0
  %274 = vmatpush1.msra.mxu0 %v229
  %275 = vmatprep.subr.mxu0 0.0
  %276 = vmatpush1.msra.mxu0 %v228
  %277 = vmatprep.subr.mxu0 0.0
  %278 = vmatpush2.msra.mxu0 0.0
  %279 = vmatprep.subr.mxu0 0.0
  %280 = vmatpush2.msra.mxu0 0.0
  %281 = vmatprep.subr.mxu0 0.0
  %282 = vmatpush2.msra.mxu0 0.0
  %283 = vmatprep.subr.mxu0 0.0
  %284 = vmatpush2.msra.mxu0 0.0
  %285 = vmatprep.subr.mxu0 0.0
  %286 = vmatpush2.msra.mxu0 0.0
  %287 = vmatprep.subr.mxu0 0.0
  %288 = vmatpush2.msra.mxu0 0.0
  %289 = vmatprep.subr.mxu0 0.0
  %290 = vmatpush2.msra.mxu0 0.0
  %291 = vmatprep.subr.mxu0 0.0
  %292 = vmatpush2.msra.mxu0 0.0
  %293 = vmatprep.subr.mxu0 0.0
  %294 = vmatpush2.msra.mxu0 0.0
  %295 = vmatprep.subr.mxu0 0.0
  %296 = vmatpush2.msra.mxu0 0.0
  %297 = vmatprep.subr.mxu0 0.0
  %298 = vmatpush2.msra.mxu0 0.0
  %299 = vmatprep.subr.mxu0 0.0
  %300 = vmatpush2.msra.mxu0 0.0
  %301 = vmatprep.subr.mxu0 0.0
  %302 = vmatpush2.msra.mxu0 0.0
  %303 = vmatprep.subr.mxu0 0.0
  %304 = vmatpush2.msra.mxu0 0.0
  %305 = vmatprep.subr.mxu0 0.0
  %306 = vmatpush2.msra.mxu0 0.0
  %307 = vmatprep.subr.mxu0 0.0
  %308 = vmatpush2.msra.mxu0 0.0
  %309 = vmatprep.mubr.f32.mxu0 0.0
  %310 = vmatmul.mubr.f32.gmra.mxu0 %v233
  %v311 = vpop.f32.mrf.mxu0
  %v312 = vadd.f32 0.0, %v311
  %v313 = vpop.f32.mrf.mxu0
  %314 = vmatprep.mubr.f32.mxu0 0.0
  %315 = vmatmul.mubr.f32.gmra.mxu0 %v236
  %v316 = vpop.f32.mrf.mxu0
  %v317 = vadd.f32 0.0, %v316
  %v318 = vpop.f32.mrf.mxu0
  %319 = vmatprep.mubr.f32.mxu0 0.0
  %320 = vmatmul.mubr.f32.gmra.mxu0 %v239
  %v321 = vpop.f32.mrf.mxu0
  %v322 = vadd.f32 0.0, %v321
  %v323 = vpop.f32.mrf.mxu0
  %324 = vdwg.mxu0
  %vm325 = vcmask 195584
  %v327 = vsel %vm325, %v23, 0
  %v330 = vsel %vm325, %v24, 0
  %v333 = vsel %vm325, %v25, 0
  %v336 = vsel %vm325, %v26, 0
  %v339 = vsel %vm325, %v27, 0
  %v342 = vsel %vm325, %v28, 0
  %v345 = vsel %vm325, %v29, 0
  %v348 = vsel %vm325, %v30, 0
  %v351 = vsel %vm325, %v31, 0
  %v354 = vsel %vm325, %v32, 0
  %v357 = vsel %vm325, %v33, 0
  %v360 = vsel %vm325, %v34, 0
  %v363 = vsel %vm325, %v35, 0
  %v366 = vsel %vm325, %v36, 0
  %v369 = vsel %vm325, %v37, 0
  %v372 = vsel %vm325, %v38, 0
  %v375 = vsel %vm325, %v39, 0
  %v378 = vsel %vm325, %v40, 0
  %380 = vmatprep.subr.mxu0 0.0
  %381 = vmatpush1.msra.mxu0 0.0
  %382 = vmatprep.subr.mxu0 0.0
  %383 = vmatpush1.msra.mxu0 0.0
  %384 = vmatprep.subr.mxu0 0.0
  %385 = vmatpush1.msra.mxu0 0.0
  %386 = vmatprep.subr.mxu0 0.0
  %387 = vmatpush1.msra.mxu0 0.0
  %388 = vmatprep.subr.mxu0 0.0
  %389 = vmatpush1.msra.mxu0 0.0
  %390 = vmatprep.subr.mxu0 0.0
  %391 = vmatpush1.msra.mxu0 0.0
  %392 = vmatprep.subr.mxu0 0.0
  %393 = vmatpush1.msra.mxu0 0.0
  %394 = vmatprep.subr.mxu0 0.0
  %395 = vmatpush1.msra.mxu0 0.0
  %396 = vmatprep.subr.mxu0 0.0
  %397 = vmatpush1.msra.mxu0 0.0
  %398 = vmatprep.subr.mxu0 0.0
  %399 = vmatpush1.msra.mxu0 0.0
  %400 = vmatprep.subr.mxu0 0.0
  %401 = vmatpush1.msra.mxu0 0.0
  %402 = vmatprep.subr.mxu0 0.0
  %403 = vmatpush1.msra.mxu0 0.0
  %404 = vmatprep.subr.mxu0 0.0
  %405 = vmatpush1.msra.mxu0 0.0
  %406 = vmatprep.subr.mxu0 0.0
  %407 = vmatpush1.msra.mxu0 %v19
  %408 = vmatprep.subr.mxu0 0.0
  %409 = vmatpush1.msra.mxu0 %v18
  %410 = vmatprep.subr.mxu0 0.0
  %411 = vmatpush1.msra.mxu0 %v17
  %412 = vmatprep.subr.mxu0 0.0
  %413 = vmatpush2.msra.mxu0 0.0
  %414 = vmatprep.subr.mxu0 0.0
  %415 = vmatpush2.msra.mxu0 0.0
  %416 = vmatprep.subr.mxu0 0.0
  %417 = vmatpush2.msra.mxu0 0.0
  %418 = vmatprep.subr.mxu0 0.0
  %419 = vmatpush2.msra.mxu0 0.0
  %420 = vmatprep.subr.mxu0 0.0
  %421 = vmatpush2.msra.mxu0 0.0
  %422 = vmatprep.subr.mxu0 0.0
  %423 = vmatpush2.msra.mxu0 0.0
  %424 = vmatprep.subr.mxu0 0.0
  %425 = vmatpush2.msra.mxu0 0.0
  %426 = vmatprep.subr.mxu0 0.0
  %427 = vmatpush2.msra.mxu0 0.0
  %428 = vmatprep.subr.mxu0 0.0
  %429 = vmatpush2.msra.mxu0 0.0
  %430 = vmatprep.subr.mxu0 0.0
  %431 = vmatpush2.msra.mxu0 0.0
  %432 = vmatprep.subr.mxu0 0.0
  %433 = vmatpush2.msra.mxu0 0.0
  %434 = vmatprep.subr.mxu0 0.0
  %435 = vmatpush2.msra.mxu0 0.0
  %436 = vmatprep.subr.mxu0 0.0
  %437 = vmatpush2.msra.mxu0 0.0
  %438 = vmatprep.subr.mxu0 0.0
  %439 = vmatpush2.msra.mxu0 0.0
  %440 = vmatprep.subr.mxu0 0.0
  %441 = vmatpush2.msra.mxu0 0.0
  %442 = vmatprep.subr.mxu0 0.0
  %443 = vmatpush2.msra.mxu0 0.0
  %444 = vmatprep.mubr.f32.mxu0 0.0
  %445 = vmatmul.mubr.f32.gmra.mxu0 %v327
  %v446 = vpop.f32.mrf.mxu0
  %v447 = vadd.f32 0.0, %v446
  %v448 = vpop.f32.mrf.mxu0
  %449 = vmatprep.mubr.f32.mxu0 0.0
  %450 = vmatmul.mubr.f32.gmra.mxu0 %v330
  %v451 = vpop.f32.mrf.mxu0
  %v452 = vadd.f32 0.0, %v451
  %v453 = vpop.f32.mrf.mxu0
  %454 = vmatprep.mubr.f32.mxu0 0.0
  %455 = vmatmul.mubr.f32.gmra.mxu0 %v333
  %v456 = vpop.f32.mrf.mxu0
  %v457 = vadd.f32 0.0, %v456
  %v458 = vpop.f32.mrf.mxu0
  %459 = vmatprep.mubr.f32.mxu0 0.0
  %460 = vmatmul.mubr.f32.gmra.mxu0 %v336
  %v461 = vpop.f32.mrf.mxu0
  %v462 = vadd.f32 0.0, %v461
  %v463 = vpop.f32.mrf.mxu0
  %464 = vmatprep.mubr.f32.mxu0 0.0
  %465 = vmatmul.mubr.f32.gmra.mxu0 %v339
  %v466 = vpop.f32.mrf.mxu0
  %v467 = vadd.f32 0.0, %v466
  %v468 = vpop.f32.mrf.mxu0
  %469 = vmatprep.mubr.f32.mxu0 0.0
  %470 = vmatmul.mubr.f32.gmra.mxu0 %v342
  %v471 = vpop.f32.mrf.mxu0
  %v472 = vadd.f32 0.0, %v471
  %v473 = vpop.f32.mrf.mxu0
  %474 = vmatprep.mubr.f32.mxu0 0.0
  %475 = vmatmul.mubr.f32.gmra.mxu0 %v345
  %v476 = vpop.f32.mrf.mxu0
  %v477 = vadd.f32 0.0, %v476
  %v478 = vpop.f32.mrf.mxu0
  %479 = vmatprep.mubr.f32.mxu0 0.0
  %480 = vmatmul.mubr.f32.gmra.mxu0 %v348
  %v481 = vpop.f32.mrf.mxu0
  %v482 = vadd.f32 0.0, %v481
  %v483 = vpop.f32.mrf.mxu0
  %484 = vmatprep.mubr.f32.mxu0 0.0
  %485 = vmatmul.mubr.f32.gmra.mxu0 %v351
  %v486 = vpop.f32.mrf.mxu0
  %v487 = vadd.f32 0.0, %v486
  %v488 = vpop.f32.mrf.mxu0
  %489 = vmatprep.mubr.f32.mxu0 0.0
  %490 = vmatmul.mubr.f32.gmra.mxu0 %v354
  %v491 = vpop.f32.mrf.mxu0
  %v492 = vadd.f32 0.0, %v491
  %v493 = vpop.f32.mrf.mxu0
  %494 = vmatprep.mubr.f32.mxu0 0.0
  %495 = vmatmul.mubr.f32.gmra.mxu0 %v357
  %v496 = vpop.f32.mrf.mxu0
  %v497 = vadd.f32 0.0, %v496
  %v498 = vpop.f32.mrf.mxu0
  %499 = vmatprep.mubr.f32.mxu0 0.0
  %500 = vmatmul.mubr.f32.gmra.mxu0 %v360
  %v501 = vpop.f32.mrf.mxu0
  %v502 = vadd.f32 0.0, %v501
  %v503 = vpop.f32.mrf.mxu0
  %504 = vmatprep.mubr.f32.mxu0 0.0
  %505 = vmatmul.mubr.f32.gmra.mxu0 %v363
  %v506 = vpop.f32.mrf.mxu0
  %v507 = vadd.f32 0.0, %v506
  %v508 = vpop.f32.mrf.mxu0
  %509 = vmatprep.mubr.f32.mxu0 0.0
  %510 = vmatmul.mubr.f32.gmra.mxu0 %v366
  %v511 = vpop.f32.mrf.mxu0
  %v512 = vadd.f32 0.0, %v511
  %v513 = vpop.f32.mrf.mxu0
  %514 = vmatprep.mubr.f32.mxu0 0.0
  %515 = vmatmul.mubr.f32.gmra.mxu0 %v369
  %v516 = vpop.f32.mrf.mxu0
  %v517 = vadd.f32 0.0, %v516
  %v518 = vpop.f32.mrf.mxu0
  %519 = vmatprep.mubr.f32.mxu0 0.0
  %520 = vmatmul.mubr.f32.gmra.mxu0 %v372
  %v521 = vpop.f32.mrf.mxu0
  %v522 = vadd.f32 0.0, %v521
  %v523 = vpop.f32.mrf.mxu0
  %524 = vmatprep.mubr.f32.mxu0 0.0
  %525 = vmatmul.mubr.f32.gmra.mxu0 %v375
  %v526 = vpop.f32.mrf.mxu0
  %v527 = vadd.f32 0.0, %v526
  %v528 = vpop.f32.mrf.mxu0
  %529 = vmatprep.mubr.f32.mxu0 0.0
  %530 = vmatmul.mubr.f32.gmra.mxu0 %v378
  %v531 = vpop.f32.mrf.mxu0
  %v532 = vadd.f32 0.0, %v531
  %v533 = vpop.f32.mrf.mxu0
  %534 = vdwg.mxu0
  %535 = vmatprep.subr.mxu0 0.0
  %536 = vmatpush1.msra.mxu0 0.0
  %537 = vmatprep.subr.mxu0 0.0
  %538 = vmatpush1.msra.mxu0 0.0
  %539 = vmatprep.subr.mxu0 0.0
  %540 = vmatpush1.msra.mxu0 0.0
  %541 = vmatprep.subr.mxu0 0.0
  %542 = vmatpush1.msra.mxu0 0.0
  %543 = vmatprep.subr.mxu0 0.0
  %544 = vmatpush1.msra.mxu0 0.0
  %545 = vmatprep.subr.mxu0 0.0
  %546 = vmatpush1.msra.mxu0 0.0
  %547 = vmatprep.subr.mxu0 0.0
  %548 = vmatpush1.msra.mxu0 0.0
  %549 = vmatprep.subr.mxu0 0.0
  %550 = vmatpush1.msra.mxu0 0.0
  %551 = vmatprep.subr.mxu0 0.0
  %552 = vmatpush1.msra.mxu0 0.0
  %553 = vmatprep.subr.mxu0 0.0
  %554 = vmatpush1.msra.mxu0 0.0
  %555 = vmatprep.subr.mxu0 0.0
  %556 = vmatpush1.msra.mxu0 0.0
  %557 = vmatprep.subr.mxu0 0.0
  %558 = vmatpush1.msra.mxu0 0.0
  %559 = vmatprep.subr.mxu0 0.0
  %560 = vmatpush1.msra.mxu0 0.0
  %561 = vmatprep.subr.mxu0 0.0
  %562 = vmatpush1.msra.mxu0 %v322
  %563 = vmatprep.subr.mxu0 0.0
  %564 = vmatpush1.msra.mxu0 %v317
  %565 = vmatprep.subr.mxu0 0.0
  %566 = vmatpush1.msra.mxu0 %v312
  %567 = vmatprep.subr.mxu0 0.0
  %568 = vmatpush2.msra.mxu0 0.0
  %569 = vmatprep.subr.mxu0 0.0
  %570 = vmatpush2.msra.mxu0 0.0
  %571 = vmatprep.subr.mxu0 0.0
  %572 = vmatpush2.msra.mxu0 0.0
  %573 = vmatprep.subr.mxu0 0.0
  %574 = vmatpush2.msra.mxu0 0.0
  %575 = vmatprep.subr.mxu0 0.0
  %576 = vmatpush2.msra.mxu0 0.0
  %577 = vmatprep.subr.mxu0 0.0
  %578 = vmatpush2.msra.mxu0 0.0
  %579 = vmatprep.subr.mxu0 0.0
  %580 = vmatpush2.msra.mxu0 0.0
  %581 = vmatprep.subr.mxu0 0.0
  %582 = vmatpush2.msra.mxu0 0.0
  %583 = vmatprep.subr.mxu0 0.0
  %584 = vmatpush2.msra.mxu0 0.0
  %585 = vmatprep.subr.mxu0 0.0
  %586 = vmatpush2.msra.mxu0 0.0
  %587 = vmatprep.subr.mxu0 0.0
  %588 = vmatpush2.msra.mxu0 0.0
  %589 = vmatprep.subr.mxu0 0.0
  %590 = vmatpush2.msra.mxu0 0.0
  %591 = vmatprep.subr.mxu0 0.0
  %592 = vmatpush2.msra.mxu0 0.0
  %593 = vmatprep.subr.mxu0 0.0
  %594 = vmatpush2.msra.mxu0 0.0
  %595 = vmatprep.subr.mxu0 0.0
  %596 = vmatpush2.msra.mxu0 0.0
  %597 = vmatprep.subr.mxu0 0.0
  %598 = vmatpush2.msra.mxu0 0.0
  %599 = vmatprep.mubr.f32.mxu0 0.0
  %600 = vmatmul.mubr.f32.gmra.mxu0 %v327
  %v601 = vpop.f32.mrf.mxu0
  %v602 = vadd.f32 0.0, %v601
  %v603 = vpop.f32.mrf.mxu0
  %604 = vmatprep.mubr.f32.mxu0 0.0
  %605 = vmatmul.mubr.f32.gmra.mxu0 %v330
  %v606 = vpop.f32.mrf.mxu0
  %v607 = vadd.f32 0.0, %v606
  %v608 = vpop.f32.mrf.mxu0
  %609 = vmatprep.mubr.f32.mxu0 0.0
  %610 = vmatmul.mubr.f32.gmra.mxu0 %v333
  %v611 = vpop.f32.mrf.mxu0
  %v612 = vadd.f32 0.0, %v611
  %v613 = vpop.f32.mrf.mxu0
  %614 = vmatprep.mubr.f32.mxu0 0.0
  %615 = vmatmul.mubr.f32.gmra.mxu0 %v336
  %v616 = vpop.f32.mrf.mxu0
  %v617 = vadd.f32 0.0, %v616
  %v618 = vpop.f32.mrf.mxu0
  %619 = vmatprep.mubr.f32.mxu0 0.0
  %620 = vmatmul.mubr.f32.gmra.mxu0 %v339
  %v621 = vpop.f32.mrf.mxu0
  %v622 = vadd.f32 0.0, %v621
  %v623 = vpop.f32.mrf.mxu0
  %624 = vmatprep.mubr.f32.mxu0 0.0
  %625 = vmatmul.mubr.f32.gmra.mxu0 %v342
  %v626 = vpop.f32.mrf.mxu0
  %v627 = vadd.f32 0.0, %v626
  %v628 = vpop.f32.mrf.mxu0
  %629 = vmatprep.mubr.f32.mxu0 0.0
  %630 = vmatmul.mubr.f32.gmra.mxu0 %v345
  %v631 = vpop.f32.mrf.mxu0
  %v632 = vadd.f32 0.0, %v631
  %v633 = vpop.f32.mrf.mxu0
  %634 = vmatprep.mubr.f32.mxu0 0.0
  %635 = vmatmul.mubr.f32.gmra.mxu0 %v348
  %v636 = vpop.f32.mrf.mxu0
  %v637 = vadd.f32 0.0, %v636
  %v638 = vpop.f32.mrf.mxu0
  %639 = vmatprep.mubr.f32.mxu0 0.0
  %640 = vmatmul.mubr.f32.gmra.mxu0 %v351
  %v641 = vpop.f32.mrf.mxu0
  %v642 = vadd.f32 0.0, %v641
  %v643 = vpop.f32.mrf.mxu0
  %644 = vmatprep.mubr.f32.mxu0 0.0
  %645 = vmatmul.mubr.f32.gmra.mxu0 %v354
  %v646 = vpop.f32.mrf.mxu0
  %v647 = vadd.f32 0.0, %v646
  %v648 = vpop.f32.mrf.mxu0
  %649 = vmatprep.mubr.f32.mxu0 0.0
  %650 = vmatmul.mubr.f32.gmra.mxu0 %v357
  %v651 = vpop.f32.mrf.mxu0
  %v652 = vadd.f32 0.0, %v651
  %v653 = vpop.f32.mrf.mxu0
  %654 = vmatprep.mubr.f32.mxu0 0.0
  %655 = vmatmul.mubr.f32.gmra.mxu0 %v360
  %v656 = vpop.f32.mrf.mxu0
  %v657 = vadd.f32 0.0, %v656
  %v658 = vpop.f32.mrf.mxu0
  %659 = vmatprep.mubr.f32.mxu0 0.0
  %660 = vmatmul.mubr.f32.gmra.mxu0 %v363
  %v661 = vpop.f32.mrf.mxu0
  %v662 = vadd.f32 0.0, %v661
  %v663 = vpop.f32.mrf.mxu0
  %664 = vmatprep.mubr.f32.mxu0 0.0
  %665 = vmatmul.mubr.f32.gmra.mxu0 %v366
  %v666 = vpop.f32.mrf.mxu0
  %v667 = vadd.f32 0.0, %v666
  %v668 = vpop.f32.mrf.mxu0
  %669 = vmatprep.mubr.f32.mxu0 0.0
  %670 = vmatmul.mubr.f32.gmra.mxu0 %v369
  %v671 = vpop.f32.mrf.mxu0
  %v672 = vadd.f32 0.0, %v671
  %v673 = vpop.f32.mrf.mxu0
  %674 = vmatprep.mubr.f32.mxu0 0.0
  %675 = vmatmul.mubr.f32.gmra.mxu0 %v372
  %v676 = vpop.f32.mrf.mxu0
  %v677 = vadd.f32 0.0, %v676
  %v678 = vpop.f32.mrf.mxu0
  %679 = vmatprep.mubr.f32.mxu0 0.0
  %680 = vmatmul.mubr.f32.gmra.mxu0 %v375
  %v681 = vpop.f32.mrf.mxu0
  %v682 = vadd.f32 0.0, %v681
  %v683 = vpop.f32.mrf.mxu0
  %684 = vmatprep.mubr.f32.mxu0 0.0
  %685 = vmatmul.mubr.f32.gmra.mxu0 %v378
  %v686 = vpop.f32.mrf.mxu0
  %v687 = vadd.f32 0.0, %v686
  %v688 = vpop.f32.mrf.mxu0
  %689 = vdwg.mxu0
  %v690 = vmul.f32 %v447, %v447
  %v691 = vmul.f32 %v452, %v452
  %v692 = vmul.f32 %v457, %v457
  %v693 = vmul.f32 %v462, %v462
  %v694 = vmul.f32 %v467, %v467
  %v695 = vmul.f32 %v472, %v472
  %v696 = vmul.f32 %v477, %v477
  %v697 = vmul.f32 %v482, %v482
  %v698 = vmul.f32 %v487, %v487
  %v699 = vmul.f32 %v492, %v492
  %v700 = vmul.f32 %v497, %v497
  %v701 = vmul.f32 %v502, %v502
  %v702 = vmul.f32 %v507, %v507
  %v703 = vmul.f32 %v512, %v512
  %v704 = vmul.f32 %v517, %v517
  %v705 = vmul.f32 %v522, %v522
  %v706 = vmul.f32 %v527, %v527
  %v707 = vmul.f32 %v532, %v532
  %v708 = vmul.f32 %v602, %v602
  %v709 = vmul.f32 %v607, %v607
  %v710 = vmul.f32 %v612, %v612
  %v711 = vmul.f32 %v617, %v617
  %v712 = vmul.f32 %v622, %v622
  %v713 = vmul.f32 %v627, %v627
  %v714 = vmul.f32 %v632, %v632
  %v715 = vmul.f32 %v637, %v637
  %v716 = vmul.f32 %v642, %v642
  %v717 = vmul.f32 %v647, %v647
  %v718 = vmul.f32 %v652, %v652
  %v719 = vmul.f32 %v657, %v657
  %v720 = vmul.f32 %v662, %v662
  %v721 = vmul.f32 %v667, %v667
  %v722 = vmul.f32 %v672, %v672
  %v723 = vmul.f32 %v677, %v677
  %v724 = vmul.f32 %v682, %v682
  %v725 = vmul.f32 %v687, %v687
  %v727 = vsel %vm138, %v690, 0
  %v730 = vsel %vm138, %v691, 0
  %v733 = vsel %vm138, %v692, 0
  %v736 = vsel %vm138, %v693, 0
  %v739 = vsel %vm138, %v694, 0
  %v742 = vsel %vm138, %v695, 0
  %v745 = vsel %vm138, %v696, 0
  %v748 = vsel %vm138, %v697, 0
  %v751 = vsel %vm138, %v698, 0
  %v754 = vsel %vm138, %v699, 0
  %v757 = vsel %vm138, %v700, 0
  %v760 = vsel %vm138, %v701, 0
  %v763 = vsel %vm138, %v702, 0
  %v766 = vsel %vm138, %v703, 0
  %v769 = vsel %vm138, %v704, 0
  %v772 = vsel %vm138, %v705, 0
  %v775 = vsel %vm138, %v706, 0
  %v778 = vsel %vm138, %v707, 0
  %780 = vmatprep.subr.mxu0 0.0
  %781 = vmatpush1.msra.mxu0 0.0
  %782 = vmatprep.subr.mxu0 0.0
  %783 = vmatpush1.msra.mxu0 0.0
  %784 = vmatprep.subr.mxu0 0.0
  %785 = vmatpush1.msra.mxu0 0.0
  %786 = vmatprep.subr.mxu0 0.0
  %787 = vmatpush1.msra.mxu0 0.0
  %788 = vmatprep.subr.mxu0 0.0
  %789 = vmatpush1.msra.mxu0 0.0
  %790 = vmatprep.subr.mxu0 0.0
  %791 = vmatpush1.msra.mxu0 0.0
  %792 = vmatprep.subr.mxu0 0.0
  %793 = vmatpush1.msra.mxu0 0.0
  %794 = vmatprep.subr.mxu0 0.0
  %795 = vmatpush1.msra.mxu0 0.0
  %796 = vmatprep.subr.mxu0 0.0
  %797 = vmatpush1.msra.mxu0 0.0
  %798 = vmatprep.subr.mxu0 0.0
  %799 = vmatpush1.msra.mxu0 0.0
  %800 = vmatprep.subr.mxu0 0.0
  %801 = vmatpush1.msra.mxu0 0.0
  %802 = vmatprep.subr.mxu0 0.0
  %803 = vmatpush1.msra.mxu0 0.0
  %804 = vmatprep.subr.mxu0 0.0
  %805 = vmatpush1.msra.mxu0 %v101
  %806 = vmatprep.subr.mxu0 0.0
  %807 = vmatpush1.msra.mxu0 %v100
  %808 = vmatprep.subr.mxu0 0.0
  %809 = vmatpush1.msra.mxu0 %v99
  %810 = vmatprep.subr.mxu0 0.0
  %811 = vmatpush1.msra.mxu0 %v98
  %812 = vmatprep.subr.mxu0 0.0
  %813 = vmatpush2.msra.mxu0 0.0
  %814 = vmatprep.subr.mxu0 0.0
  %815 = vmatpush2.msra.mxu0 0.0
  %816 = vmatprep.subr.mxu0 0.0
  %817 = vmatpush2.msra.mxu0 0.0
  %818 = vmatprep.subr.mxu0 0.0
  %819 = vmatpush2.msra.mxu0 0.0
  %820 = vmatprep.subr.mxu0 0.0
  %821 = vmatpush2.msra.mxu0 0.0
  %822 = vmatprep.subr.mxu0 0.0
  %823 = vmatpush2.msra.mxu0 0.0
  %824 = vmatprep.subr.mxu0 0.0
  %825 = vmatpush2.msra.mxu0 0.0
  %826 = vmatprep.subr.mxu0 0.0
  %827 = vmatpush2.msra.mxu0 0.0
  %828 = vmatprep.subr.mxu0 0.0
  %829 = vmatpush2.msra.mxu0 0.0
  %830 = vmatprep.subr.mxu0 0.0
  %831 = vmatpush2.msra.mxu0 0.0
  %832 = vmatprep.subr.mxu0 0.0
  %833 = vmatpush2.msra.mxu0 0.0
  %834 = vmatprep.subr.mxu0 0.0
  %835 = vmatpush2.msra.mxu0 0.0
  %836 = vmatprep.subr.mxu0 0.0
  %837 = vmatpush2.msra.mxu0 0.0
  %838 = vmatprep.subr.mxu0 0.0
  %839 = vmatpush2.msra.mxu0 0.0
  %840 = vmatprep.subr.mxu0 0.0
  %841 = vmatpush2.msra.mxu0 0.0
  %842 = vmatprep.subr.mxu0 0.0
  %843 = vmatpush2.msra.mxu0 0.0
  %844 = vmatprep.mubr.f32.mxu0 0.0
  %845 = vmatmul.mubr.f32.gmra.mxu0 %v727
  %v846 = vpop.f32.mrf.mxu0
  %v847 = vadd.f32 %v129, %v846
  %v848 = vpop.f32.mrf.mxu0
  %849 = vmatprep.mubr.f32.mxu0 0.0
  %850 = vmatmul.mubr.f32.gmra.mxu0 %v730
  %v851 = vpop.f32.mrf.mxu0
  %v852 = vadd.f32 %v129, %v851
  %v853 = vpop.f32.mrf.mxu0
  %854 = vmatprep.mubr.f32.mxu0 0.0
  %855 = vmatmul.mubr.f32.gmra.mxu0 %v733
  %v856 = vpop.f32.mrf.mxu0
  %v857 = vadd.f32 %v129, %v856
  %v858 = vpop.f32.mrf.mxu0
  %859 = vmatprep.mubr.f32.mxu0 0.0
  %860 = vmatmul.mubr.f32.gmra.mxu0 %v736
  %v861 = vpop.f32.mrf.mxu0
  %v862 = vadd.f32 %v129, %v861
  %v863 = vpop.f32.mrf.mxu0
  %864 = vmatprep.mubr.f32.mxu0 0.0
  %865 = vmatmul.mubr.f32.gmra.mxu0 %v739
  %v866 = vpop.f32.mrf.mxu0
  %v867 = vadd.f32 %v129, %v866
  %v868 = vpop.f32.mrf.mxu0
  %869 = vmatprep.mubr.f32.mxu0 0.0
  %870 = vmatmul.mubr.f32.gmra.mxu0 %v742
  %v871 = vpop.f32.mrf.mxu0
  %v872 = vadd.f32 %v129, %v871
  %v873 = vpop.f32.mrf.mxu0
  %874 = vmatprep.mubr.f32.mxu0 0.0
  %875 = vmatmul.mubr.f32.gmra.mxu0 %v745
  %v876 = vpop.f32.mrf.mxu0
  %v877 = vadd.f32 %v129, %v876
  %v878 = vpop.f32.mrf.mxu0
  %879 = vmatprep.mubr.f32.mxu0 0.0
  %880 = vmatmul.mubr.f32.gmra.mxu0 %v748
  %v881 = vpop.f32.mrf.mxu0
  %v882 = vadd.f32 %v129, %v881
  %v883 = vpop.f32.mrf.mxu0
  %884 = vmatprep.mubr.f32.mxu0 0.0
  %885 = vmatmul.mubr.f32.gmra.mxu0 %v751
  %v886 = vpop.f32.mrf.mxu0
  %v887 = vadd.f32 %v129, %v886
  %v888 = vpop.f32.mrf.mxu0
  %889 = vmatprep.mubr.f32.mxu0 0.0
  %890 = vmatmul.mubr.f32.gmra.mxu0 %v754
  %v891 = vpop.f32.mrf.mxu0
  %v892 = vadd.f32 %v129, %v891
  %v893 = vpop.f32.mrf.mxu0
  %894 = vmatprep.mubr.f32.mxu0 0.0
  %895 = vmatmul.mubr.f32.gmra.mxu0 %v757
  %v896 = vpop.f32.mrf.mxu0
  %v897 = vadd.f32 %v129, %v896
  %v898 = vpop.f32.mrf.mxu0
  %899 = vmatprep.mubr.f32.mxu0 0.0
  %900 = vmatmul.mubr.f32.gmra.mxu0 %v760
  %v901 = vpop.f32.mrf.mxu0
  %v902 = vadd.f32 %v129, %v901
  %v903 = vpop.f32.mrf.mxu0
  %904 = vmatprep.mubr.f32.mxu0 0.0
  %905 = vmatmul.mubr.f32.gmra.mxu0 %v763
  %v906 = vpop.f32.mrf.mxu0
  %v907 = vadd.f32 %v129, %v906
  %v908 = vpop.f32.mrf.mxu0
  %909 = vmatprep.mubr.f32.mxu0 0.0
  %910 = vmatmul.mubr.f32.gmra.mxu0 %v766
  %v911 = vpop.f32.mrf.mxu0
  %v912 = vadd.f32 %v129, %v911
  %v913 = vpop.f32.mrf.mxu0
  %914 = vmatprep.mubr.f32.mxu0 0.0
  %915 = vmatmul.mubr.f32.gmra.mxu0 %v769
  %v916 = vpop.f32.mrf.mxu0
  %v917 = vadd.f32 %v129, %v916
  %v918 = vpop.f32.mrf.mxu0
  %919 = vmatprep.mubr.f32.mxu0 0.0
  %920 = vmatmul.mubr.f32.gmra.mxu0 %v772
  %v921 = vpop.f32.mrf.mxu0
  %v922 = vadd.f32 %v129, %v921
  %v923 = vpop.f32.mrf.mxu0
  %924 = vmatprep.mubr.f32.mxu0 0.0
  %925 = vmatmul.mubr.f32.gmra.mxu0 %v775
  %v926 = vpop.f32.mrf.mxu0
  %v927 = vadd.f32 %v129, %v926
  %v928 = vpop.f32.mrf.mxu0
  %929 = vmatprep.mubr.f32.mxu0 0.0
  %930 = vmatmul.mubr.f32.gmra.mxu0 %v778
  %v931 = vpop.f32.mrf.mxu0
  %v932 = vadd.f32 %v129, %v931
  %v933 = vpop.f32.mrf.mxu0
  %934 = vdwg.mxu0
  %vm935 = vcmp.gt.f32.partialorder %v847, 0.0
  %vm936 = vcmp.gt.f32.partialorder %v852, 0.0
  %vm937 = vcmp.gt.f32.partialorder %v857, 0.0
  %vm938 = vcmp.gt.f32.partialorder %v862, 0.0
  %vm939 = vcmp.gt.f32.partialorder %v867, 0.0
  %vm940 = vcmp.gt.f32.partialorder %v872, 0.0
  %vm941 = vcmp.gt.f32.partialorder %v877, 0.0
  %vm942 = vcmp.gt.f32.partialorder %v882, 0.0
  %vm943 = vcmp.gt.f32.partialorder %v887, 0.0
  %vm944 = vcmp.gt.f32.partialorder %v892, 0.0
  %vm945 = vcmp.gt.f32.partialorder %v897, 0.0
  %vm946 = vcmp.gt.f32.partialorder %v902, 0.0
  %vm947 = vcmp.gt.f32.partialorder %v907, 0.0
  %vm948 = vcmp.gt.f32.partialorder %v912, 0.0
  %vm949 = vcmp.gt.f32.partialorder %v917, 0.0
  %vm950 = vcmp.gt.f32.partialorder %v922, 0.0
  %vm951 = vcmp.gt.f32.partialorder %v927, 0.0
  %vm952 = vcmp.gt.f32.partialorder %v932, 0.0
  %v953 = vmul.f32 %v847, 0.01
  %v954 = vmul.f32 %v852, 0.01
  %v955 = vmul.f32 %v857, 0.01
  %v956 = vmul.f32 %v862, 0.01
  %v957 = vmul.f32 %v867, 0.01
  %v958 = vmul.f32 %v872, 0.01
  %v959 = vmul.f32 %v877, 0.01
  %v960 = vmul.f32 %v882, 0.01
  %v961 = vmul.f32 %v887, 0.01
  %v962 = vmul.f32 %v892, 0.01
  %v963 = vmul.f32 %v897, 0.01
  %v964 = vmul.f32 %v902, 0.01
  %v965 = vmul.f32 %v907, 0.01
  %v966 = vmul.f32 %v912, 0.01
  %v967 = vmul.f32 %v917, 0.01
  %v968 = vmul.f32 %v922, 0.01
  %v969 = vmul.f32 %v927, 0.01
  %v970 = vmul.f32 %v932, 0.01
  %v971 = vsel %vm935, %v847, %v953
  %v972 = vsel %vm936, %v852, %v954
  %v973 = vsel %vm937, %v857, %v955
  %v974 = vsel %vm938, %v862, %v956
  %v975 = vsel %vm939, %v867, %v957
  %v976 = vsel %vm940, %v872, %v958
  %v977 = vsel %vm941, %v877, %v959
  %v978 = vsel %vm942, %v882, %v960
  %v979 = vsel %vm943, %v887, %v961
  %v980 = vsel %vm944, %v892, %v962
  %v981 = vsel %vm945, %v897, %v963
  %v982 = vsel %vm946, %v902, %v964
  %v983 = vsel %vm947, %v907, %v965
  %v984 = vsel %vm948, %v912, %v966
  %v985 = vsel %vm949, %v917, %v967
  %v986 = vsel %vm950, %v922, %v968
  %v987 = vsel %vm951, %v927, %v969
  %v988 = vsel %vm952, %v932, %v970
  %v989 = vmul.f32 %v971, %v131
  %v990 = vmul.f32 %v972, %v131
  %v991 = vmul.f32 %v973, %v131
  %v992 = vmul.f32 %v974, %v131
  %v993 = vmul.f32 %v975, %v131
  %v994 = vmul.f32 %v976, %v131
  %v995 = vmul.f32 %v977, %v131
  %v996 = vmul.f32 %v978, %v131
  %v997 = vmul.f32 %v979, %v131
  %v998 = vmul.f32 %v980, %v131
  %v999 = vmul.f32 %v981, %v131
  %v1000 = vmul.f32 %v982, %v131
  %v1001 = vmul.f32 %v983, %v131
  %v1002 = vmul.f32 %v984, %v131
  %v1003 = vmul.f32 %v985, %v131
  %v1004 = vmul.f32 %v986, %v131
  %v1005 = vmul.f32 %v987, %v131
  %v1006 = vmul.f32 %v988, %v131
  %vm1007 = vcmask 130048
  %v1008 = vsel %vm1007, %v989, 0.0
  %1009 = vadd.xlane.f32.xlu0 %v1008
  %v1010 = vpop.xlane.xlu0 %1009
  %v1011 = vsel %vm1007, %v990, 0.0
  %1012 = vadd.xlane.f32.xlu0 %v1011
  %v1013 = vpop.xlane.xlu0 %1012
  %v1014 = vsel %vm1007, %v991, 0.0
  %1015 = vadd.xlane.f32.xlu0 %v1014
  %v1016 = vpop.xlane.xlu0 %1015
  %v1017 = vsel %vm1007, %v992, 0.0
  %1018 = vadd.xlane.f32.xlu0 %v1017
  %v1019 = vpop.xlane.xlu0 %1018
  %v1020 = vsel %vm1007, %v993, 0.0
  %1021 = vadd.xlane.f32.xlu0 %v1020
  %v1022 = vpop.xlane.xlu0 %1021
  %v1023 = vsel %vm1007, %v994, 0.0
  %1024 = vadd.xlane.f32.xlu0 %v1023
  %v1025 = vpop.xlane.xlu0 %1024
  %v1026 = vsel %vm1007, %v995, 0.0
  %1027 = vadd.xlane.f32.xlu0 %v1026
  %v1028 = vpop.xlane.xlu0 %1027
  %v1029 = vsel %vm1007, %v996, 0.0
  %1030 = vadd.xlane.f32.xlu0 %v1029
  %v1031 = vpop.xlane.xlu0 %1030
  %v1032 = vsel %vm1007, %v997, 0.0
  %1033 = vadd.xlane.f32.xlu0 %v1032
  %v1034 = vpop.xlane.xlu0 %1033
  %v1035 = vsel %vm1007, %v998, 0.0
  %1036 = vadd.xlane.f32.xlu0 %v1035
  %v1037 = vpop.xlane.xlu0 %1036
  %v1038 = vsel %vm1007, %v999, 0.0
  %1039 = vadd.xlane.f32.xlu0 %v1038
  %v1040 = vpop.xlane.xlu0 %1039
  %v1041 = vsel %vm1007, %v1000, 0.0
  %1042 = vadd.xlane.f32.xlu0 %v1041
  %v1043 = vpop.xlane.xlu0 %1042
  %v1044 = vsel %vm1007, %v1001, 0.0
  %1045 = vadd.xlane.f32.xlu0 %v1044
  %v1046 = vpop.xlane.xlu0 %1045
  %v1047 = vsel %vm1007, %v1002, 0.0
  %1048 = vadd.xlane.f32.xlu0 %v1047
  %v1049 = vpop.xlane.xlu0 %1048
  %v1050 = vsel %vm1007, %v1003, 0.0
  %1051 = vadd.xlane.f32.xlu0 %v1050
  %v1052 = vpop.xlane.xlu0 %1051
  %v1053 = vsel %vm1007, %v1004, 0.0
  %1054 = vadd.xlane.f32.xlu0 %v1053
  %v1055 = vpop.xlane.xlu0 %1054
  %v1056 = vsel %vm1007, %v1005, 0.0
  %1057 = vadd.xlane.f32.xlu0 %v1056
  %v1058 = vpop.xlane.xlu0 %1057
  %v1059 = vsel %vm1007, %v1006, 0.0
  %1060 = vadd.xlane.f32.xlu0 %v1059
  %v1061 = vpop.xlane.xlu0 %1060
  %v1062 = vadd.f32 %v1010, %v132
  %v1063 = vadd.f32 %v1013, %v132
  %v1064 = vadd.f32 %v1016, %v132
  %v1065 = vadd.f32 %v1019, %v132
  %v1066 = vadd.f32 %v1022, %v132
  %v1067 = vadd.f32 %v1025, %v132
  %v1068 = vadd.f32 %v1028, %v132
  %v1069 = vadd.f32 %v1031, %v132
  %v1070 = vadd.f32 %v1034, %v132
  %v1071 = vadd.f32 %v1037, %v132
  %v1072 = vadd.f32 %v1040, %v132
  %v1073 = vadd.f32 %v1043, %v132
  %v1074 = vadd.f32 %v1046, %v132
  %v1075 = vadd.f32 %v1049, %v132
  %v1076 = vadd.f32 %v1052, %v132
  %v1077 = vadd.f32 %v1055, %v132
  %v1078 = vadd.f32 %v1058, %v132
  %v1079 = vadd.f32 %v1061, %v132
  %v1081 = vsel %vm1007, %v971, 0
  %v1084 = vsel %vm1007, %v972, 0
  %v1087 = vsel %vm1007, %v973, 0
  %v1090 = vsel %vm1007, %v974, 0
  %v1093 = vsel %vm1007, %v975, 0
  %v1096 = vsel %vm1007, %v976, 0
  %v1099 = vsel %vm1007, %v977, 0
  %v1102 = vsel %vm1007, %v978, 0
  %v1105 = vsel %vm1007, %v979, 0
  %v1108 = vsel %vm1007, %v980, 0
  %v1111 = vsel %vm1007, %v981, 0
  %v1114 = vsel %vm1007, %v982, 0
  %v1117 = vsel %vm1007, %v983, 0
  %v1120 = vsel %vm1007, %v984, 0
  %v1123 = vsel %vm1007, %v985, 0
  %v1126 = vsel %vm1007, %v986, 0
  %v1129 = vsel %vm1007, %v987, 0
  %v1132 = vsel %vm1007, %v988, 0
  %1134 = vmatprep.subr.mxu0 0.0
  %1135 = vmatpush1.msra.mxu0 0.0
  %1136 = vmatprep.subr.mxu0 0.0
  %1137 = vmatpush1.msra.mxu0 0.0
  %1138 = vmatprep.subr.mxu0 0.0
  %1139 = vmatpush1.msra.mxu0 0.0
  %1140 = vmatprep.subr.mxu0 0.0
  %1141 = vmatpush1.msra.mxu0 0.0
  %1142 = vmatprep.subr.mxu0 0.0
  %1143 = vmatpush1.msra.mxu0 0.0
  %1144 = vmatprep.subr.mxu0 0.0
  %1145 = vmatpush1.msra.mxu0 0.0
  %1146 = vmatprep.subr.mxu0 0.0
  %1147 = vmatpush1.msra.mxu0 0.0
  %1148 = vmatprep.subr.mxu0 0.0
  %1149 = vmatpush1.msra.mxu0 0.0
  %1150 = vmatprep.subr.mxu0 0.0
  %1151 = vmatpush1.msra.mxu0 0.0
  %1152 = vmatprep.subr.mxu0 0.0
  %1153 = vmatpush1.msra.mxu0 0.0
  %1154 = vmatprep.subr.mxu0 0.0
  %1155 = vmatpush1.msra.mxu0 0.0
  %1156 = vmatprep.subr.mxu0 0.0
  %1157 = vmatpush1.msra.mxu0 0.0
  %1158 = vmatprep.subr.mxu0 0.0
  %1159 = vmatpush1.msra.mxu0 0.0
  %1160 = vmatprep.subr.mxu0 0.0
  %1161 = vmatpush1.msra.mxu0 0.0
  %1162 = vmatprep.subr.mxu0 0.0
  %1163 = vmatpush1.msra.mxu0 %v103
  %1164 = vmatprep.subr.mxu0 0.0
  %1165 = vmatpush1.msra.mxu0 %v102
  %1166 = vmatprep.subr.mxu0 0.0
  %1167 = vmatpush2.msra.mxu0 0.0
  %1168 = vmatprep.subr.mxu0 0.0
  %1169 = vmatpush2.msra.mxu0 0.0
  %1170 = vmatprep.subr.mxu0 0.0
  %1171 = vmatpush2.msra.mxu0 0.0
  %1172 = vmatprep.subr.mxu0 0.0
  %1173 = vmatpush2.msra.mxu0 0.0
  %1174 = vmatprep.subr.mxu0 0.0
  %1175 = vmatpush2.msra.mxu0 0.0
  %1176 = vmatprep.subr.mxu0 0.0
  %1177 = vmatpush2.msra.mxu0 0.0
  %1178 = vmatprep.subr.mxu0 0.0
  %1179 = vmatpush2.msra.mxu0 0.0
  %1180 = vmatprep.subr.mxu0 0.0
  %1181 = vmatpush2.msra.mxu0 0.0
  %1182 = vmatprep.subr.mxu0 0.0
  %1183 = vmatpush2.msra.mxu0 0.0
  %1184 = vmatprep.subr.mxu0 0.0
  %1185 = vmatpush2.msra.mxu0 0.0
  %1186 = vmatprep.subr.mxu0 0.0
  %1187 = vmatpush2.msra.mxu0 0.0
  %1188 = vmatprep.subr.mxu0 0.0
  %1189 = vmatpush2.msra.mxu0 0.0
  %1190 = vmatprep.subr.mxu0 0.0
  %1191 = vmatpush2.msra.mxu0 0.0
  %1192 = vmatprep.subr.mxu0 0.0
  %1193 = vmatpush2.msra.mxu0 0.0
  %1194 = vmatprep.subr.mxu0 0.0
  %1195 = vmatpush2.msra.mxu0 0.0
  %1196 = vmatprep.subr.mxu0 0.0
  %1197 = vmatpush2.msra.mxu0 0.0
  %1198 = vmatprep.mubr.f32.mxu0 0.0
  %1199 = vmatmul.mubr.f32.gmra.mxu0 %v1081
  %v1200 = vpop.f32.mrf.mxu0
  %v1201 = vadd.f32 %v130, %v1200
  %v1202 = vpop.f32.mrf.mxu0
  %1203 = vmatprep.mubr.f32.mxu0 0.0
  %1204 = vmatmul.mubr.f32.gmra.mxu0 %v1084
  %v1205 = vpop.f32.mrf.mxu0
  %v1206 = vadd.f32 %v130, %v1205
  %v1207 = vpop.f32.mrf.mxu0
  %1208 = vmatprep.mubr.f32.mxu0 0.0
  %1209 = vmatmul.mubr.f32.gmra.mxu0 %v1087
  %v1210 = vpop.f32.mrf.mxu0
  %v1211 = vadd.f32 %v130, %v1210
  %v1212 = vpop.f32.mrf.mxu0
  %1213 = vmatprep.mubr.f32.mxu0 0.0
  %1214 = vmatmul.mubr.f32.gmra.mxu0 %v1090
  %v1215 = vpop.f32.mrf.mxu0
  %v1216 = vadd.f32 %v130, %v1215
  %v1217 = vpop.f32.mrf.mxu0
  %1218 = vmatprep.mubr.f32.mxu0 0.0
  %1219 = vmatmul.mubr.f32.gmra.mxu0 %v1093
  %v1220 = vpop.f32.mrf.mxu0
  %v1221 = vadd.f32 %v130, %v1220
  %v1222 = vpop.f32.mrf.mxu0
  %1223 = vmatprep.mubr.f32.mxu0 0.0
  %1224 = vmatmul.mubr.f32.gmra.mxu0 %v1096
  %v1225 = vpop.f32.mrf.mxu0
  %v1226 = vadd.f32 %v130, %v1225
  %v1227 = vpop.f32.mrf.mxu0
  %1228 = vmatprep.mubr.f32.mxu0 0.0
  %1229 = vmatmul.mubr.f32.gmra.mxu0 %v1099
  %v1230 = vpop.f32.mrf.mxu0
  %v1231 = vadd.f32 %v130, %v1230
  %v1232 = vpop.f32.mrf.mxu0
  %1233 = vmatprep.mubr.f32.mxu0 0.0
  %1234 = vmatmul.mubr.f32.gmra.mxu0 %v1102
  %v1235 = vpop.f32.mrf.mxu0
  %v1236 = vadd.f32 %v130, %v1235
  %v1237 = vpop.f32.mrf.mxu0
  %1238 = vmatprep.mubr.f32.mxu0 0.0
  %1239 = vmatmul.mubr.f32.gmra.mxu0 %v1105
  %v1240 = vpop.f32.mrf.mxu0
  %v1241 = vadd.f32 %v130, %v1240
  %v1242 = vpop.f32.mrf.mxu0
  %1243 = vmatprep.mubr.f32.mxu0 0.0
  %1244 = vmatmul.mubr.f32.gmra.mxu0 %v1108
  %v1245 = vpop.f32.mrf.mxu0
  %v1246 = vadd.f32 %v130, %v1245
  %v1247 = vpop.f32.mrf.mxu0
  %1248 = vmatprep.mubr.f32.mxu0 0.0
  %1249 = vmatmul.mubr.f32.gmra.mxu0 %v1111
  %v1250 = vpop.f32.mrf.mxu0
  %v1251 = vadd.f32 %v130, %v1250
  %v1252 = vpop.f32.mrf.mxu0
  %1253 = vmatprep.mubr.f32.mxu0 0.0
  %1254 = vmatmul.mubr.f32.gmra.mxu0 %v1114
  %v1255 = vpop.f32.mrf.mxu0
  %v1256 = vadd.f32 %v130, %v1255
  %v1257 = vpop.f32.mrf.mxu0
  %1258 = vmatprep.mubr.f32.mxu0 0.0
  %1259 = vmatmul.mubr.f32.gmra.mxu0 %v1117
  %v1260 = vpop.f32.mrf.mxu0
  %v1261 = vadd.f32 %v130, %v1260
  %v1262 = vpop.f32.mrf.mxu0
  %1263 = vmatprep.mubr.f32.mxu0 0.0
  %1264 = vmatmul.mubr.f32.gmra.mxu0 %v1120
  %v1265 = vpop.f32.mrf.mxu0
  %v1266 = vadd.f32 %v130, %v1265
  %v1267 = vpop.f32.mrf.mxu0
  %1268 = vmatprep.mubr.f32.mxu0 0.0
  %1269 = vmatmul.mubr.f32.gmra.mxu0 %v1123
  %v1270 = vpop.f32.mrf.mxu0
  %v1271 = vadd.f32 %v130, %v1270
  %v1272 = vpop.f32.mrf.mxu0
  %1273 = vmatprep.mubr.f32.mxu0 0.0
  %1274 = vmatmul.mubr.f32.gmra.mxu0 %v1126
  %v1275 = vpop.f32.mrf.mxu0
  %v1276 = vadd.f32 %v130, %v1275
  %v1277 = vpop.f32.mrf.mxu0
  %1278 = vmatprep.mubr.f32.mxu0 0.0
  %1279 = vmatmul.mubr.f32.gmra.mxu0 %v1129
  %v1280 = vpop.f32.mrf.mxu0
  %v1281 = vadd.f32 %v130, %v1280
  %v1282 = vpop.f32.mrf.mxu0
  %1283 = vmatprep.mubr.f32.mxu0 0.0
  %1284 = vmatmul.mubr.f32.gmra.mxu0 %v1132
  %v1285 = vpop.f32.mrf.mxu0
  %v1286 = vadd.f32 %v130, %v1285
  %v1287 = vpop.f32.mrf.mxu0
  %1288 = vdwg.mxu0
  %v1289 = vsub.f32 %v1201, %v708
  %v1290 = vsub.f32 %v1206, %v709
  %v1291 = vsub.f32 %v1211, %v710
  %v1292 = vsub.f32 %v1216, %v711
  %v1293 = vsub.f32 %v1221, %v712
  %v1294 = vsub.f32 %v1226, %v713
  %v1295 = vsub.f32 %v1231, %v714
  %v1296 = vsub.f32 %v1236, %v715
  %v1297 = vsub.f32 %v1241, %v716
  %v1298 = vsub.f32 %v1246, %v717
  %v1299 = vsub.f32 %v1251, %v718
  %v1300 = vsub.f32 %v1256, %v719
  %v1301 = vsub.f32 %v1261, %v720
  %v1302 = vsub.f32 %v1266, %v721
  %v1303 = vsub.f32 %v1271, %v722
  %v1304 = vsub.f32 %v1276, %v723
  %v1305 = vsub.f32 %v1281, %v724
  %v1306 = vsub.f32 %v1286, %v725
  %v1307 = vmul.f32 %v1289, %v1289
  %v1308 = vmul.f32 %v1290, %v1290
  %v1309 = vmul.f32 %v1291, %v1291
  %v1310 = vmul.f32 %v1292, %v1292
  %v1311 = vmul.f32 %v1293, %v1293
  %v1312 = vmul.f32 %v1294, %v1294
  %v1313 = vmul.f32 %v1295, %v1295
  %v1314 = vmul.f32 %v1296, %v1296
  %v1315 = vmul.f32 %v1297, %v1297
  %v1316 = vmul.f32 %v1298, %v1298
  %v1317 = vmul.f32 %v1299, %v1299
  %v1318 = vmul.f32 %v1300, %v1300
  %v1319 = vmul.f32 %v1301, %v1301
  %v1320 = vmul.f32 %v1302, %v1302
  %v1321 = vmul.f32 %v1303, %v1303
  %v1322 = vmul.f32 %v1304, %v1304
  %v1323 = vmul.f32 %v1305, %v1305
  %v1324 = vmul.f32 %v1306, %v1306
  %v1325 = vsel %vm138, %v1307, 0.0
  %1326 = vadd.xlane.f32.xlu0 %v1325
  %v1327 = vpop.xlane.xlu0 %1326
  %v1328 = vsel %vm138, %v1308, 0.0
  %1329 = vadd.xlane.f32.xlu0 %v1328
  %v1330 = vpop.xlane.xlu0 %1329
  %v1331 = vsel %vm138, %v1309, 0.0
  %1332 = vadd.xlane.f32.xlu0 %v1331
  %v1333 = vpop.xlane.xlu0 %1332
  %v1334 = vsel %vm138, %v1310, 0.0
  %1335 = vadd.xlane.f32.xlu0 %v1334
  %v1336 = vpop.xlane.xlu0 %1335
  %v1337 = vsel %vm138, %v1311, 0.0
  %1338 = vadd.xlane.f32.xlu0 %v1337
  %v1339 = vpop.xlane.xlu0 %1338
  %v1340 = vsel %vm138, %v1312, 0.0
  %1341 = vadd.xlane.f32.xlu0 %v1340
  %v1342 = vpop.xlane.xlu0 %1341
  %v1343 = vsel %vm138, %v1313, 0.0
  %1344 = vadd.xlane.f32.xlu0 %v1343
  %v1345 = vpop.xlane.xlu0 %1344
  %v1346 = vsel %vm138, %v1314, 0.0
  %1347 = vadd.xlane.f32.xlu0 %v1346
  %v1348 = vpop.xlane.xlu0 %1347
  %v1349 = vsel %vm138, %v1315, 0.0
  %1350 = vadd.xlane.f32.xlu0 %v1349
  %v1351 = vpop.xlane.xlu0 %1350
  %v1352 = vsel %vm138, %v1316, 0.0
  %1353 = vadd.xlane.f32.xlu0 %v1352
  %v1354 = vpop.xlane.xlu0 %1353
  %v1355 = vsel %vm138, %v1317, 0.0
  %1356 = vadd.xlane.f32.xlu0 %v1355
  %v1357 = vpop.xlane.xlu0 %1356
  %v1358 = vsel %vm138, %v1318, 0.0
  %1359 = vadd.xlane.f32.xlu0 %v1358
  %v1360 = vpop.xlane.xlu0 %1359
  %v1361 = vsel %vm138, %v1319, 0.0
  %1362 = vadd.xlane.f32.xlu0 %v1361
  %v1363 = vpop.xlane.xlu0 %1362
  %v1364 = vsel %vm138, %v1320, 0.0
  %1365 = vadd.xlane.f32.xlu0 %v1364
  %v1366 = vpop.xlane.xlu0 %1365
  %v1367 = vsel %vm138, %v1321, 0.0
  %1368 = vadd.xlane.f32.xlu0 %v1367
  %v1369 = vpop.xlane.xlu0 %1368
  %v1370 = vsel %vm138, %v1322, 0.0
  %1371 = vadd.xlane.f32.xlu0 %v1370
  %v1372 = vpop.xlane.xlu0 %1371
  %v1373 = vsel %vm138, %v1323, 0.0
  %1374 = vadd.xlane.f32.xlu0 %v1373
  %v1375 = vpop.xlane.xlu0 %1374
  %v1376 = vsel %vm138, %v1324, 0.0
  %1377 = vadd.xlane.f32.xlu0 %v1376
  %v1378 = vpop.xlane.xlu0 %1377
  %v1379 = vmul.f32 %v1327, %v76
  %v1380 = vmul.f32 %v1330, %v77
  %v1381 = vmul.f32 %v1333, %v78
  %v1382 = vmul.f32 %v1336, %v79
  %v1383 = vmul.f32 %v1339, %v80
  %v1384 = vmul.f32 %v1342, %v81
  %v1385 = vmul.f32 %v1345, %v82
  %v1386 = vmul.f32 %v1348, %v83
  %v1387 = vmul.f32 %v1351, %v84
  %v1388 = vmul.f32 %v1354, %v85
  %v1389 = vmul.f32 %v1357, %v86
  %v1390 = vmul.f32 %v1360, %v87
  %v1391 = vmul.f32 %v1363, %v88
  %v1392 = vmul.f32 %v1366, %v89
  %v1393 = vmul.f32 %v1369, %v90
  %v1394 = vmul.f32 %v1372, %v91
  %v1395 = vmul.f32 %v1375, %v92
  %v1396 = vmul.f32 %v1378, %v93
  %vm1397 = vcmask 7168
  %v1398 = vsel %vm1397, %v1379, 0.0
  %v1399 = vsel %vm1397, %v1380, 0.0
  %v1400 = vadd.f32 %v1398, %v1399
  %v1401 = vsel %vm1397, %v1381, 0.0
  %v1402 = vadd.f32 %v1400, %v1401
  %v1403 = vsel %vm1397, %v1382, 0.0
  %v1404 = vadd.f32 %v1402, %v1403
  %v1405 = vsel %vm1397, %v1383, 0.0
  %v1406 = vadd.f32 %v1404, %v1405
  %v1407 = vsel %vm1397, %v1384, 0.0
  %v1408 = vadd.f32 %v1406, %v1407
  %v1409 = vsel %vm1397, %v1385, 0.0
  %v1410 = vadd.f32 %v1408, %v1409
  %v1411 = vsel %vm1397, %v1386, 0.0
  %v1412 = vadd.f32 %v1410, %v1411
  %v1413 = vsel %vm1397, %v1387, 0.0
  %v1414 = vadd.f32 %v1412, %v1413
  %v1415 = vsel %vm1397, %v1388, 0.0
  %v1416 = vadd.f32 %v1414, %v1415
  %v1417 = vsel %vm1397, %v1389, 0.0
  %v1418 = vadd.f32 %v1416, %v1417
  %v1419 = vsel %vm1397, %v1390, 0.0
  %v1420 = vadd.f32 %v1418, %v1419
  %v1421 = vsel %vm1397, %v1391, 0.0
  %v1422 = vadd.f32 %v1420, %v1421
  %v1423 = vsel %vm1397, %v1392, 0.0
  %v1424 = vadd.f32 %v1422, %v1423
  %v1425 = vsel %vm1397, %v1393, 0.0
  %v1426 = vadd.f32 %v1424, %v1425
  %v1427 = vsel %vm1397, %v1394, 0.0
  %v1428 = vadd.f32 %v1426, %v1427
  %v1429 = vsel %vm1397, %v1395, 0.0
  %v1430 = vadd.f32 %v1428, %v1429
  %v1431 = vsel %vm1397, %v1396, 0.0
  %v1432 = vadd.f32 %v1430, %v1431
  %v1433 = vrot.slane %v1432, 4
  %v1434 = vadd.f32 %v1432, %v1433
  %v1435 = vrot.slane %v1434, 2
  %v1436 = vadd.f32 %v1434, %v1435
  %v1437 = vrot.slane %v1436, 1
  %v1438 = vadd.f32 %v1436, %v1437
  %v1439 = vmul.f32 %v1438, 0.00078125
  %1441 = vset.pattern.permute.xlu0 0
  %1442 = vperm.xlu0 %1441, %v1062
  %v1443 = vpop.permute.xlu0 %1442
  %1446 = vset.pattern.permute.xlu0 0
  %1447 = vperm.xlu0 %1446, %v1063
  %v1448 = vpop.permute.xlu0 %1447
  %1451 = vset.pattern.permute.xlu0 0
  %1452 = vperm.xlu0 %1451, %v1064
  %v1453 = vpop.permute.xlu0 %1452
  %1456 = vset.pattern.permute.xlu0 0
  %1457 = vperm.xlu0 %1456, %v1065
  %v1458 = vpop.permute.xlu0 %1457
  %1461 = vset.pattern.permute.xlu0 0
  %1462 = vperm.xlu0 %1461, %v1066
  %v1463 = vpop.permute.xlu0 %1462
  %1466 = vset.pattern.permute.xlu0 0
  %1467 = vperm.xlu0 %1466, %v1067
  %v1468 = vpop.permute.xlu0 %1467
  %1471 = vset.pattern.permute.xlu0 0
  %1472 = vperm.xlu0 %1471, %v1068
  %v1473 = vpop.permute.xlu0 %1472
  %1476 = vset.pattern.permute.xlu0 0
  %1477 = vperm.xlu0 %1476, %v1069
  %v1478 = vpop.permute.xlu0 %1477
  %1481 = vset.pattern.permute.xlu0 0
  %1482 = vperm.xlu0 %1481, %v1070
  %v1483 = vpop.permute.xlu0 %1482
  %1486 = vset.pattern.permute.xlu0 0
  %1487 = vperm.xlu0 %1486, %v1071
  %v1488 = vpop.permute.xlu0 %1487
  %1491 = vset.pattern.permute.xlu0 0
  %1492 = vperm.xlu0 %1491, %v1072
  %v1493 = vpop.permute.xlu0 %1492
  %1496 = vset.pattern.permute.xlu0 0
  %1497 = vperm.xlu0 %1496, %v1073
  %v1498 = vpop.permute.xlu0 %1497
  %1501 = vset.pattern.permute.xlu0 0
  %1502 = vperm.xlu0 %1501, %v1074
  %v1503 = vpop.permute.xlu0 %1502
  %1506 = vset.pattern.permute.xlu0 0
  %1507 = vperm.xlu0 %1506, %v1075
  %v1508 = vpop.permute.xlu0 %1507
  %1511 = vset.pattern.permute.xlu0 0
  %1512 = vperm.xlu0 %1511, %v1076
  %v1513 = vpop.permute.xlu0 %1512
  %1516 = vset.pattern.permute.xlu0 0
  %1517 = vperm.xlu0 %1516, %v1077
  %v1518 = vpop.permute.xlu0 %1517
  %1521 = vset.pattern.permute.xlu0 0
  %1522 = vperm.xlu0 %1521, %v1078
  %v1523 = vpop.permute.xlu0 %1522
  %1526 = vset.pattern.permute.xlu0 0
  %1527 = vperm.xlu0 %1526, %v1079
  %v1528 = vpop.permute.xlu0 %1527
  %v1530 = vmul.f32 %v47, %v1443
  %v1531 = vmul.f32 %v48, %v1448
  %v1532 = vmul.f32 %v49, %v1453
  %v1533 = vmul.f32 %v50, %v1458
  %v1534 = vmul.f32 %v51, %v1463
  %v1535 = vmul.f32 %v52, %v1468
  %v1536 = vmul.f32 %v53, %v1473
  %v1537 = vmul.f32 %v54, %v1478
  %v1538 = vmul.f32 %v55, %v1483
  %v1539 = vmul.f32 %v56, %v1488
  %v1540 = vmul.f32 %v57, %v1493
  %v1541 = vmul.f32 %v58, %v1498
  %v1542 = vmul.f32 %v59, %v1503
  %v1543 = vmul.f32 %v60, %v1508
  %v1544 = vmul.f32 %v61, %v1513
  %v1545 = vmul.f32 %v62, %v1518
  %v1546 = vmul.f32 %v63, %v1523
  %v1547 = vmul.f32 %v64, %v1528
  %v1549 = vsel %vm1007, %v42, 0
  %v1552 = vsel %vm1007, %v44, 0
  %v1555 = vsel %vm1007, %v46, 0
  %1557 = vmatprep.subr.mxu0 0.0
  %1558 = vmatpush1.msra.mxu0 %v1545
  %1559 = vmatprep.subr.mxu0 0.0
  %1560 = vmatpush1.msra.mxu0 %v1544
  %1561 = vmatprep.subr.mxu0 0.0
  %1562 = vmatpush1.msra.mxu0 %v1543
  %1563 = vmatprep.subr.mxu0 0.0
  %1564 = vmatpush1.msra.mxu0 %v1542
  %1565 = vmatprep.subr.mxu0 0.0
  %1566 = vmatpush1.msra.mxu0 %v1541
  %1567 = vmatprep.subr.mxu0 0.0
  %1568 = vmatpush1.msra.mxu0 %v1540
  %1569 = vmatprep.subr.mxu0 0.0
  %1570 = vmatpush1.msra.mxu0 %v1539
  %1571 = vmatprep.subr.mxu0 0.0
  %1572 = vmatpush1.msra.mxu0 %v1538
  %1573 = vmatprep.subr.mxu0 0.0
  %1574 = vmatpush1.msra.mxu0 %v1537
  %1575 = vmatprep.subr.mxu0 0.0
  %1576 = vmatpush1.msra.mxu0 %v1536
  %1577 = vmatprep.subr.mxu0 0.0
  %1578 = vmatpush1.msra.mxu0 %v1535
  %1579 = vmatprep.subr.mxu0 0.0
  %1580 = vmatpush1.msra.mxu0 %v1534
  %1581 = vmatprep.subr.mxu0 0.0
  %1582 = vmatpush1.msra.mxu0 %v1533
  %1583 = vmatprep.subr.mxu0 0.0
  %1584 = vmatpush1.msra.mxu0 %v1532
  %1585 = vmatprep.subr.mxu0 0.0
  %1586 = vmatpush1.msra.mxu0 %v1531
  %1587 = vmatprep.subr.mxu0 0.0
  %1588 = vmatpush1.msra.mxu0 %v1530
  %1589 = vmatprep.subr.mxu0 0.0
  %1590 = vmatpush2.msra.mxu0 0.0
  %1591 = vmatprep.subr.mxu0 0.0
  %1592 = vmatpush2.msra.mxu0 0.0
  %1593 = vmatprep.subr.mxu0 0.0
  %1594 = vmatpush2.msra.mxu0 0.0
  %1595 = vmatprep.subr.mxu0 0.0
  %1596 = vmatpush2.msra.mxu0 0.0
  %1597 = vmatprep.subr.mxu0 0.0
  %1598 = vmatpush2.msra.mxu0 0.0
  %1599 = vmatprep.subr.mxu0 0.0
  %1600 = vmatpush2.msra.mxu0 0.0
  %1601 = vmatprep.subr.mxu0 0.0
  %1602 = vmatpush2.msra.mxu0 0.0
  %1603 = vmatprep.subr.mxu0 0.0
  %1604 = vmatpush2.msra.mxu0 0.0
  %1605 = vmatprep.subr.mxu0 0.0
  %1606 = vmatpush2.msra.mxu0 0.0
  %1607 = vmatprep.subr.mxu0 0.0
  %1608 = vmatpush2.msra.mxu0 0.0
  %1609 = vmatprep.subr.mxu0 0.0
  %1610 = vmatpush2.msra.mxu0 0.0
  %1611 = vmatprep.subr.mxu0 0.0
  %1612 = vmatpush2.msra.mxu0 0.0
  %1613 = vmatprep.subr.mxu0 0.0
  %1614 = vmatpush2.msra.mxu0 0.0
  %1615 = vmatprep.subr.mxu0 0.0
  %1616 = vmatpush2.msra.mxu0 0.0
  %1617 = vmatprep.subr.mxu0 0.0
  %1618 = vmatpush2.msra.mxu0 %v1547
  %1619 = vmatprep.subr.mxu0 0.0
  %1620 = vmatpush2.msra.mxu0 %v1546
  %1621 = vmatprep.mubr.f32.mxu0 %v1549
  %1622 = vmatmul.mubr.f32.gmra.mxu0 %v41
  %v1623 = vpop.f32.mrf.mxu0
  %v1624 = vadd.f32 0.0, %v1623
  %v1625 = vpop.f32.mrf.mxu0
  %1626 = vmatprep.mubr.f32.mxu0 %v1552
  %1627 = vmatmul.mubr.f32.gmra.mxu0 %v43
  %v1628 = vpop.f32.mrf.mxu0
  %v1629 = vadd.f32 0.0, %v1628
  %v1630 = vpop.f32.mrf.mxu0
  %1631 = vmatprep.mubr.f32.mxu0 %v1555
  %1632 = vmatmul.mubr.f32.gmra.mxu0 %v45
  %v1633 = vpop.f32.mrf.mxu0
  %v1634 = vadd.f32 0.0, %v1633
  %v1635 = vpop.f32.mrf.mxu0
  %1636 = vdwg.mxu0
  %v1638 = vsel %vm325, %v70, 0
  %v1641 = vsel %vm325, %v71, 0
  %v1644 = vsel %vm325, %v72, 0
  %1646 = vmatprep.subr.mxu0 0.0
  %1647 = vmatpush1.msra.mxu0 0.0
  %1648 = vmatprep.subr.mxu0 0.0
  %1649 = vmatpush1.msra.mxu0 0.0
  %1650 = vmatprep.subr.mxu0 0.0
  %1651 = vmatpush1.msra.mxu0 0.0
  %1652 = vmatprep.subr.mxu0 0.0
  %1653 = vmatpush1.msra.mxu0 0.0
  %1654 = vmatprep.subr.mxu0 0.0
  %1655 = vmatpush1.msra.mxu0 0.0
  %1656 = vmatprep.subr.mxu0 0.0
  %1657 = vmatpush1.msra.mxu0 0.0
  %1658 = vmatprep.subr.mxu0 0.0
  %1659 = vmatpush1.msra.mxu0 0.0
  %1660 = vmatprep.subr.mxu0 0.0
  %1661 = vmatpush1.msra.mxu0 0.0
  %1662 = vmatprep.subr.mxu0 0.0
  %1663 = vmatpush1.msra.mxu0 0.0
  %1664 = vmatprep.subr.mxu0 0.0
  %1665 = vmatpush1.msra.mxu0 0.0
  %1666 = vmatprep.subr.mxu0 0.0
  %1667 = vmatpush1.msra.mxu0 0.0
  %1668 = vmatprep.subr.mxu0 0.0
  %1669 = vmatpush1.msra.mxu0 0.0
  %1670 = vmatprep.subr.mxu0 0.0
  %1671 = vmatpush1.msra.mxu0 0.0
  %1672 = vmatprep.subr.mxu0 0.0
  %1673 = vmatpush1.msra.mxu0 %v1634
  %1674 = vmatprep.subr.mxu0 0.0
  %1675 = vmatpush1.msra.mxu0 %v1629
  %1676 = vmatprep.subr.mxu0 0.0
  %1677 = vmatpush1.msra.mxu0 %v1624
  %1678 = vmatprep.subr.mxu0 0.0
  %1679 = vmatpush2.msra.mxu0 0.0
  %1680 = vmatprep.subr.mxu0 0.0
  %1681 = vmatpush2.msra.mxu0 0.0
  %1682 = vmatprep.subr.mxu0 0.0
  %1683 = vmatpush2.msra.mxu0 0.0
  %1684 = vmatprep.subr.mxu0 0.0
  %1685 = vmatpush2.msra.mxu0 0.0
  %1686 = vmatprep.subr.mxu0 0.0
  %1687 = vmatpush2.msra.mxu0 0.0
  %1688 = vmatprep.subr.mxu0 0.0
  %1689 = vmatpush2.msra.mxu0 0.0
  %1690 = vmatprep.subr.mxu0 0.0
  %1691 = vmatpush2.msra.mxu0 0.0
  %1692 = vmatprep.subr.mxu0 0.0
  %1693 = vmatpush2.msra.mxu0 0.0
  %1694 = vmatprep.subr.mxu0 0.0
  %1695 = vmatpush2.msra.mxu0 0.0
  %1696 = vmatprep.subr.mxu0 0.0
  %1697 = vmatpush2.msra.mxu0 0.0
  %1698 = vmatprep.subr.mxu0 0.0
  %1699 = vmatpush2.msra.mxu0 0.0
  %1700 = vmatprep.subr.mxu0 0.0
  %1701 = vmatpush2.msra.mxu0 0.0
  %1702 = vmatprep.subr.mxu0 0.0
  %1703 = vmatpush2.msra.mxu0 0.0
  %1704 = vmatprep.subr.mxu0 0.0
  %1705 = vmatpush2.msra.mxu0 0.0
  %1706 = vmatprep.subr.mxu0 0.0
  %1707 = vmatpush2.msra.mxu0 0.0
  %1708 = vmatprep.subr.mxu0 0.0
  %1709 = vmatpush2.msra.mxu0 0.0
  %1710 = vmatprep.mubr.f32.mxu0 0.0
  %1711 = vmatmul.mubr.f32.gmra.mxu0 %v1638
  %v1712 = vpop.f32.mrf.mxu0
  %v1713 = vadd.f32 0.0, %v1712
  %v1714 = vpop.f32.mrf.mxu0
  %1715 = vmatprep.mubr.f32.mxu0 0.0
  %1716 = vmatmul.mubr.f32.gmra.mxu0 %v1641
  %v1717 = vpop.f32.mrf.mxu0
  %v1718 = vadd.f32 0.0, %v1717
  %v1719 = vpop.f32.mrf.mxu0
  %1720 = vmatprep.mubr.f32.mxu0 0.0
  %1721 = vmatmul.mubr.f32.gmra.mxu0 %v1644
  %v1722 = vpop.f32.mrf.mxu0
  %v1723 = vadd.f32 0.0, %v1722
  %v1724 = vpop.f32.mrf.mxu0
  %1725 = vdwg.mxu0
  %vm1726 = vcmask 48128
  %v1727 = vsel %vm1726, %v1713, 0.0
  %1728 = vadd.xlane.f32.xlu0 %v1727
  %v1729 = vpop.xlane.xlu0 %1728
  %v1730 = vsel %vm1726, %v1718, 0.0
  %1731 = vadd.xlane.f32.xlu0 %v1730
  %v1732 = vpop.xlane.xlu0 %1731
  %v1733 = vsel %vm1726, %v1723, 0.0
  %1734 = vadd.xlane.f32.xlu0 %v1733
  %v1735 = vpop.xlane.xlu0 %1734
  %v1736 = vmul.f32 %v1729, 0.027777778
  %v1737 = vmul.f32 %v1732, 0.027777778
  %v1738 = vmul.f32 %v1735, 0.027777778
  %v1739 = vsub.f32 %v1624, %v1736
  %v1740 = vsub.f32 %v1629, %v1737
  %v1741 = vsub.f32 %v1634, %v1738
  %v1742 = vmul.f32 %v1739, %v1739
  %v1743 = vmul.f32 %v1740, %v1740
  %v1744 = vmul.f32 %v1741, %v1741
  %1745 = vmatprep.subr.mxu0 0.0
  %1746 = vmatpush1.msra.mxu0 0.0
  %1747 = vmatprep.subr.mxu0 0.0
  %1748 = vmatpush1.msra.mxu0 0.0
  %1749 = vmatprep.subr.mxu0 0.0
  %1750 = vmatpush1.msra.mxu0 0.0
  %1751 = vmatprep.subr.mxu0 0.0
  %1752 = vmatpush1.msra.mxu0 0.0
  %1753 = vmatprep.subr.mxu0 0.0
  %1754 = vmatpush1.msra.mxu0 0.0
  %1755 = vmatprep.subr.mxu0 0.0
  %1756 = vmatpush1.msra.mxu0 0.0
  %1757 = vmatprep.subr.mxu0 0.0
  %1758 = vmatpush1.msra.mxu0 0.0
  %1759 = vmatprep.subr.mxu0 0.0
  %1760 = vmatpush1.msra.mxu0 0.0
  %1761 = vmatprep.subr.mxu0 0.0
  %1762 = vmatpush1.msra.mxu0 0.0
  %1763 = vmatprep.subr.mxu0 0.0
  %1764 = vmatpush1.msra.mxu0 0.0
  %1765 = vmatprep.subr.mxu0 0.0
  %1766 = vmatpush1.msra.mxu0 0.0
  %1767 = vmatprep.subr.mxu0 0.0
  %1768 = vmatpush1.msra.mxu0 0.0
  %1769 = vmatprep.subr.mxu0 0.0
  %1770 = vmatpush1.msra.mxu0 0.0
  %1771 = vmatprep.subr.mxu0 0.0
  %1772 = vmatpush1.msra.mxu0 %v1744
  %1773 = vmatprep.subr.mxu0 0.0
  %1774 = vmatpush1.msra.mxu0 %v1743
  %1775 = vmatprep.subr.mxu0 0.0
  %1776 = vmatpush1.msra.mxu0 %v1742
  %1777 = vmatprep.subr.mxu0 0.0
  %1778 = vmatpush2.msra.mxu0 0.0
  %1779 = vmatprep.subr.mxu0 0.0
  %1780 = vmatpush2.msra.mxu0 0.0
  %1781 = vmatprep.subr.mxu0 0.0
  %1782 = vmatpush2.msra.mxu0 0.0
  %1783 = vmatprep.subr.mxu0 0.0
  %1784 = vmatpush2.msra.mxu0 0.0
  %1785 = vmatprep.subr.mxu0 0.0
  %1786 = vmatpush2.msra.mxu0 0.0
  %1787 = vmatprep.subr.mxu0 0.0
  %1788 = vmatpush2.msra.mxu0 0.0
  %1789 = vmatprep.subr.mxu0 0.0
  %1790 = vmatpush2.msra.mxu0 0.0
  %1791 = vmatprep.subr.mxu0 0.0
  %1792 = vmatpush2.msra.mxu0 0.0
  %1793 = vmatprep.subr.mxu0 0.0
  %1794 = vmatpush2.msra.mxu0 0.0
  %1795 = vmatprep.subr.mxu0 0.0
  %1796 = vmatpush2.msra.mxu0 0.0
  %1797 = vmatprep.subr.mxu0 0.0
  %1798 = vmatpush2.msra.mxu0 0.0
  %1799 = vmatprep.subr.mxu0 0.0
  %1800 = vmatpush2.msra.mxu0 0.0
  %1801 = vmatprep.subr.mxu0 0.0
  %1802 = vmatpush2.msra.mxu0 0.0
  %1803 = vmatprep.subr.mxu0 0.0
  %1804 = vmatpush2.msra.mxu0 0.0
  %1805 = vmatprep.subr.mxu0 0.0
  %1806 = vmatpush2.msra.mxu0 0.0
  %1807 = vmatprep.subr.mxu0 0.0
  %1808 = vmatpush2.msra.mxu0 0.0
  %1809 = vmatprep.mubr.f32.mxu0 0.0
  %1810 = vmatmul.mubr.f32.gmra.mxu0 %v1638
  %v1811 = vpop.f32.mrf.mxu0
  %v1812 = vadd.f32 0.0, %v1811
  %v1813 = vpop.f32.mrf.mxu0
  %1814 = vmatprep.mubr.f32.mxu0 0.0
  %1815 = vmatmul.mubr.f32.gmra.mxu0 %v1641
  %v1816 = vpop.f32.mrf.mxu0
  %v1817 = vadd.f32 0.0, %v1816
  %v1818 = vpop.f32.mrf.mxu0
  %1819 = vmatprep.mubr.f32.mxu0 0.0
  %1820 = vmatmul.mubr.f32.gmra.mxu0 %v1644
  %v1821 = vpop.f32.mrf.mxu0
  %v1822 = vadd.f32 0.0, %v1821
  %v1823 = vpop.f32.mrf.mxu0
  %1824 = vdwg.mxu0
  %v1825 = vsel %vm1726, %v1812, 0.0
  %1826 = vadd.xlane.f32.xlu0 %v1825
  %v1827 = vpop.xlane.xlu0 %1826
  %v1828 = vsel %vm1726, %v1817, 0.0
  %1829 = vadd.xlane.f32.xlu0 %v1828
  %v1830 = vpop.xlane.xlu0 %1829
  %v1831 = vsel %vm1726, %v1822, 0.0
  %1832 = vadd.xlane.f32.xlu0 %v1831
  %v1833 = vpop.xlane.xlu0 %1832
  %v1834 = vmul.f32 %v1827, 0.028571429
  %v1835 = vmul.f32 %v1830, 0.028571429
  %v1836 = vmul.f32 %v1833, 0.028571429
  %v1837 = vrsqrt.pop %v1834
  %v1838 = vrsqrt.pop %v1835
  %v1839 = vrsqrt.pop %v1836
  %v1840 = vsub.f32 0.0, %v1624
  %v1841 = vsub.f32 0.0, %v1629
  %v1842 = vsub.f32 0.0, %v1634
  %v1843 = vmul.f32 %v1840, %v1837
  %v1844 = vmul.f32 %v1841, %v1838
  %v1845 = vmul.f32 %v1842, %v1839
  %v1846 = vmul.f32 %v1843, 1.442695
  %v1847 = vpow.pop %v1846
  %v1848 = vmul.f32 %v1844, 1.442695
  %v1849 = vpow.pop %v1848
  %v1850 = vmul.f32 %v1845, 1.442695
  %v1851 = vpow.pop %v1850
  %v1852 = vsub.f32 1.0, %v65
  %v1853 = vsub.f32 1.0, %v66
  %v1854 = vsub.f32 1.0, %v67
  %v1855 = vmul.f32 %v1847, %v1852
  %v1856 = vmul.f32 %v1849, %v1853
  %v1857 = vmul.f32 %v1851, %v1854
  %1858 = vmatprep.subr.mxu0 0.0
  %1859 = vmatpush1.msra.mxu0 0.0
  %1860 = vmatprep.subr.mxu0 0.0
  %1861 = vmatpush1.msra.mxu0 0.0
  %1862 = vmatprep.subr.mxu0 0.0
  %1863 = vmatpush1.msra.mxu0 0.0
  %1864 = vmatprep.subr.mxu0 0.0
  %1865 = vmatpush1.msra.mxu0 0.0
  %1866 = vmatprep.subr.mxu0 0.0
  %1867 = vmatpush1.msra.mxu0 0.0
  %1868 = vmatprep.subr.mxu0 0.0
  %1869 = vmatpush1.msra.mxu0 0.0
  %1870 = vmatprep.subr.mxu0 0.0
  %1871 = vmatpush1.msra.mxu0 0.0
  %1872 = vmatprep.subr.mxu0 0.0
  %1873 = vmatpush1.msra.mxu0 0.0
  %1874 = vmatprep.subr.mxu0 0.0
  %1875 = vmatpush1.msra.mxu0 0.0
  %1876 = vmatprep.subr.mxu0 0.0
  %1877 = vmatpush1.msra.mxu0 0.0
  %1878 = vmatprep.subr.mxu0 0.0
  %1879 = vmatpush1.msra.mxu0 0.0
  %1880 = vmatprep.subr.mxu0 0.0
  %1881 = vmatpush1.msra.mxu0 0.0
  %1882 = vmatprep.subr.mxu0 0.0
  %1883 = vmatpush1.msra.mxu0 0.0
  %1884 = vmatprep.subr.mxu0 0.0
  %1885 = vmatpush1.msra.mxu0 %v1857
  %1886 = vmatprep.subr.mxu0 0.0
  %1887 = vmatpush1.msra.mxu0 %v1856
  %1888 = vmatprep.subr.mxu0 0.0
  %1889 = vmatpush1.msra.mxu0 %v1855
  %1890 = vmatprep.subr.mxu0 0.0
  %1891 = vmatpush2.msra.mxu0 0.0
  %1892 = vmatprep.subr.mxu0 0.0
  %1893 = vmatpush2.msra.mxu0 0.0
  %1894 = vmatprep.subr.mxu0 0.0
  %1895 = vmatpush2.msra.mxu0 0.0
  %1896 = vmatprep.subr.mxu0 0.0
  %1897 = vmatpush2.msra.mxu0 0.0
  %1898 = vmatprep.subr.mxu0 0.0
  %1899 = vmatpush2.msra.mxu0 0.0
  %1900 = vmatprep.subr.mxu0 0.0
  %1901 = vmatpush2.msra.mxu0 0.0
  %1902 = vmatprep.subr.mxu0 0.0
  %1903 = vmatpush2.msra.mxu0 0.0
  %1904 = vmatprep.subr.mxu0 0.0
  %1905 = vmatpush2.msra.mxu0 0.0
  %1906 = vmatprep.subr.mxu0 0.0
  %1907 = vmatpush2.msra.mxu0 0.0
  %1908 = vmatprep.subr.mxu0 0.0
  %1909 = vmatpush2.msra.mxu0 0.0
  %1910 = vmatprep.subr.mxu0 0.0
  %1911 = vmatpush2.msra.mxu0 0.0
  %1912 = vmatprep.subr.mxu0 0.0
  %1913 = vmatpush2.msra.mxu0 0.0
  %1914 = vmatprep.subr.mxu0 0.0
  %1915 = vmatpush2.msra.mxu0 0.0
  %1916 = vmatprep.subr.mxu0 0.0
  %1917 = vmatpush2.msra.mxu0 0.0
  %1918 = vmatprep.subr.mxu0 0.0
  %1919 = vmatpush2.msra.mxu0 0.0
  %1920 = vmatprep.subr.mxu0 0.0
  %1921 = vmatpush2.msra.mxu0 0.0
  %1922 = vmatprep.mubr.f32.mxu0 0.0
  %1923 = vmatmul.mubr.f32.gmra.mxu0 %v1638
  %v1924 = vpop.f32.mrf.mxu0
  %v1925 = vadd.f32 1e-06, %v1924
  %v1926 = vpop.f32.mrf.mxu0
  %1927 = vmatprep.mubr.f32.mxu0 0.0
  %1928 = vmatmul.mubr.f32.gmra.mxu0 %v1641
  %v1929 = vpop.f32.mrf.mxu0
  %v1930 = vadd.f32 1e-06, %v1929
  %v1931 = vpop.f32.mrf.mxu0
  %1932 = vmatprep.mubr.f32.mxu0 0.0
  %1933 = vmatmul.mubr.f32.gmra.mxu0 %v1644
  %v1934 = vpop.f32.mrf.mxu0
  %v1935 = vadd.f32 1e-06, %v1934
  %v1936 = vpop.f32.mrf.mxu0
  %1937 = vdwg.mxu0
  %v1938 = vrsqrt.pop %v1925
  %v1939 = vrsqrt.pop %v1930
  %v1940 = vrsqrt.pop %v1935
  %v1941 = vmul.f32 %v1938, %v65
  %v1942 = vmul.f32 %v1939, %v66
  %v1943 = vmul.f32 %v1940, %v67
  %v1944 = vsel %vm1726, %v1941, 0.0
  %1945 = vadd.xlane.f32.xlu0 %v1944
  %v1946 = vpop.xlane.xlu0 %1945
  %v1947 = vsel %vm1726, %v1942, 0.0
  %1948 = vadd.xlane.f32.xlu0 %v1947
  %v1949 = vpop.xlane.xlu0 %1948
  %v1950 = vsel %vm1726, %v1943, 0.0
  %1951 = vadd.xlane.f32.xlu0 %v1950
  %v1952 = vpop.xlane.xlu0 %1951
  %v1953 = vmul.f32 %v1946, %v1855
  %v1954 = vmul.f32 %v1949, %v1856
  %v1955 = vmul.f32 %v1952, %v1857
  %v1956 = vmul.f32 %v1953, %v1938
  %v1957 = vmul.f32 %v1954, %v1939
  %v1958 = vmul.f32 %v1955, %v1940
  %v1959 = vmul.f32 %v1956, 0.5
  %v1960 = vmul.f32 %v1957, 0.5
  %v1961 = vmul.f32 %v1958, 0.5
  %v1962 = vsub.f32 %v65, %v1959
  %v1963 = vsub.f32 %v66, %v1960
  %v1964 = vsub.f32 %v67, %v1961
  %1968 = vrot.lane.b32.xlu0 %v65, 6
  %v1969 = vpop.permute.xlu0 %1968
  %1970 = vrot.lane.b32.xlu0 %v66, 6
  %v1971 = vpop.permute.xlu0 %1970
  %1972 = vrot.lane.b32.xlu0 %v67, 6
  %v1973 = vpop.permute.xlu0 %1972
  %v1977 = vsel %vm1726, %v1962, %v1969
  %v1978 = vsel %vm1726, %v1963, %v1971
  %v1979 = vsel %vm1726, %v1964, %v1973
  %v1980 = vlaneseq
  %v1981 = vand.u32 %v1980, 127
  %vm1982 = vcmp.eq.s32.totalorder %v1981, 0
  %v1983 = vsel %vm1982, 1, 0
  %v1984 = vcvt.s32.f32 %v1983
  %v1985 = vmul.f32 %v65, %v1984
  %v1986 = vmul.f32 %v66, %v1984
  %v1987 = vmul.f32 %v67, %v1984
  %v1988 = vsel %vm1726, %v1985, 0.0
  %1989 = vadd.xlane.f32.xlu0 %v1988
  %v1990 = vpop.xlane.xlu0 %1989
  %v1991 = vsel %vm1726, %v1986, 0.0
  %1992 = vadd.xlane.f32.xlu0 %v1991
  %v1993 = vpop.xlane.xlu0 %1992
  %v1994 = vsel %vm1726, %v1987, 0.0
  %1995 = vadd.xlane.f32.xlu0 %v1994
  %v1996 = vpop.xlane.xlu0 %1995
  %v1997 = vmul.f32 %v1977, %v1990
  %v1998 = vmul.f32 %v1978, %v1993
  %v1999 = vmul.f32 %v1979, %v1996
  %2000 = vmatprep.subr.mxu0 0.0
  %2001 = vmatpush1.msra.mxu0 0.0
  %2002 = vmatprep.subr.mxu0 0.0
  %2003 = vmatpush1.msra.mxu0 0.0
  %2004 = vmatprep.subr.mxu0 0.0
  %2005 = vmatpush1.msra.mxu0 0.0
  %2006 = vmatprep.subr.mxu0 0.0
  %2007 = vmatpush1.msra.mxu0 0.0
  %2008 = vmatprep.subr.mxu0 0.0
  %2009 = vmatpush1.msra.mxu0 0.0
  %2010 = vmatprep.subr.mxu0 0.0
  %2011 = vmatpush1.msra.mxu0 0.0
  %2012 = vmatprep.subr.mxu0 0.0
  %2013 = vmatpush1.msra.mxu0 0.0
  %2014 = vmatprep.subr.mxu0 0.0
  %2015 = vmatpush1.msra.mxu0 0.0
  %2016 = vmatprep.subr.mxu0 0.0
  %2017 = vmatpush1.msra.mxu0 0.0
  %2018 = vmatprep.subr.mxu0 0.0
  %2019 = vmatpush1.msra.mxu0 0.0
  %2020 = vmatprep.subr.mxu0 0.0
  %2021 = vmatpush1.msra.mxu0 0.0
  %2022 = vmatprep.subr.mxu0 0.0
  %2023 = vmatpush1.msra.mxu0 0.0
  %2024 = vmatprep.subr.mxu0 0.0
  %2025 = vmatpush1.msra.mxu0 0.0
  %2026 = vmatprep.subr.mxu0 0.0
  %2027 = vmatpush1.msra.mxu0 %v1999
  %2028 = vmatprep.subr.mxu0 0.0
  %2029 = vmatpush1.msra.mxu0 %v1998
  %2030 = vmatprep.subr.mxu0 0.0
  %2031 = vmatpush1.msra.mxu0 %v1997
  %2032 = vmatprep.subr.mxu0 0.0
  %2033 = vmatpush2.msra.mxu0 0.0
  %2034 = vmatprep.subr.mxu0 0.0
  %2035 = vmatpush2.msra.mxu0 0.0
  %2036 = vmatprep.subr.mxu0 0.0
  %2037 = vmatpush2.msra.mxu0 0.0
  %2038 = vmatprep.subr.mxu0 0.0
  %2039 = vmatpush2.msra.mxu0 0.0
  %2040 = vmatprep.subr.mxu0 0.0
  %2041 = vmatpush2.msra.mxu0 0.0
  %2042 = vmatprep.subr.mxu0 0.0
  %2043 = vmatpush2.msra.mxu0 0.0
  %2044 = vmatprep.subr.mxu0 0.0
  %2045 = vmatpush2.msra.mxu0 0.0
  %2046 = vmatprep.subr.mxu0 0.0
  %2047 = vmatpush2.msra.mxu0 0.0
  %2048 = vmatprep.subr.mxu0 0.0
  %2049 = vmatpush2.msra.mxu0 0.0
  %2050 = vmatprep.subr.mxu0 0.0
  %2051 = vmatpush2.msra.mxu0 0.0
  %2052 = vmatprep.subr.mxu0 0.0
  %2053 = vmatpush2.msra.mxu0 0.0
  %2054 = vmatprep.subr.mxu0 0.0
  %2055 = vmatpush2.msra.mxu0 0.0
  %2056 = vmatprep.subr.mxu0 0.0
  %2057 = vmatpush2.msra.mxu0 0.0
  %2058 = vmatprep.subr.mxu0 0.0
  %2059 = vmatpush2.msra.mxu0 0.0
  %2060 = vmatprep.subr.mxu0 0.0
  %2061 = vmatpush2.msra.mxu0 0.0
  %2062 = vmatprep.subr.mxu0 0.0
  %2063 = vmatpush2.msra.mxu0 0.0
  %2064 = vmatprep.mubr.f32.mxu0 0.0
  %2065 = vmatmul.mubr.f32.gmra.mxu0 %v1638
  %v2066 = vpop.f32.mrf.mxu0
  %v2067 = vadd.f32 0.0, %v2066
  %v2068 = vpop.f32.mrf.mxu0
  %2069 = vmatprep.mubr.f32.mxu0 0.0
  %2070 = vmatmul.mubr.f32.gmra.mxu0 %v1641
  %v2071 = vpop.f32.mrf.mxu0
  %v2072 = vadd.f32 0.0, %v2071
  %v2073 = vpop.f32.mrf.mxu0
  %2074 = vmatprep.mubr.f32.mxu0 0.0
  %2075 = vmatmul.mubr.f32.gmra.mxu0 %v1644
  %v2076 = vpop.f32.mrf.mxu0
  %v2077 = vadd.f32 0.0, %v2076
  %v2078 = vpop.f32.mrf.mxu0
  %2079 = vdwg.mxu0
  %v2080 = vmul.f32 %v2067, %v1984
  %v2081 = vmul.f32 %v2072, %v1984
  %v2082 = vmul.f32 %v2077, %v1984
  %vm2083 = vcmask 97280
  %v2084 = vsel %vm2083, %v2080, 0.0
  %2085 = vadd.xlane.f32.xlu0 %v2084
  %v2086 = vpop.xlane.xlu0 %2085
  %v2087 = vsel %vm2083, %v2081, 0.0
  %2088 = vadd.xlane.f32.xlu0 %v2087
  %v2089 = vpop.xlane.xlu0 %2088
  %v2090 = vsel %vm2083, %v2082, 0.0
  %2091 = vadd.xlane.f32.xlu0 %v2090
  %v2092 = vpop.xlane.xlu0 %2091
  %v2093 = vmul.f32 %v1977, %v1984
  %v2094 = vmul.f32 %v1978, %v1984
  %v2095 = vmul.f32 %v1979, %v1984
  %v2096 = vsel %vm2083, %v2093, 0.0
  %2097 = vadd.xlane.f32.xlu0 %v2096
  %v2098 = vpop.xlane.xlu0 %2097
  %v2099 = vsel %vm2083, %v2094, 0.0
  %2100 = vadd.xlane.f32.xlu0 %v2099
  %v2101 = vpop.xlane.xlu0 %2100
  %v2102 = vsel %vm2083, %v2095, 0.0
  %2103 = vadd.xlane.f32.xlu0 %v2102
  %v2104 = vpop.xlane.xlu0 %2103
  %v2105 = vrcp.pop %v2086
  %v2106 = vmul.f32 1.0, %v2105
  %v2107 = vrcp.pop %v2089
  %v2108 = vmul.f32 1.0, %v2107
  %v2109 = vrcp.pop %v2092
  %v2110 = vmul.f32 1.0, %v2109
  %v2111 = vmul.f32 %v2067, %v2106
  %v2112 = vmul.f32 %v2072, %v2108
  %v2113 = vmul.f32 %v2077, %v2110
  %vm2114 = vcmp.gt.f32.partialorder %v1990, 0.5
  %vm2115 = vcmp.gt.f32.partialorder %v1993, 0.5
  %vm2116 = vcmp.gt.f32.partialorder %v1996, 0.5
  %v2117 = vmul.f32 %v2098, %v2111
  %v2118 = vmul.f32 %v2101, %v2112
  %v2119 = vmul.f32 %v2104, %v2113
  %v2120 = vsub.f32 %v1977, %v2117
  %v2121 = vsub.f32 %v1978, %v2118
  %v2122 = vsub.f32 %v1979, %v2119
  %v2123 = vsel %vm2114, 1, 0
  %v2124 = vsel %vm2115, 1, 0
  %v2125 = vsel %vm2116, 1, 0
  %vm2126 = vcmp.eq.s32.totalorder %v2123, 1
  %vm2127 = vcmp.eq.s32.totalorder %v2124, 1
  %vm2128 = vcmp.eq.s32.totalorder %v2125, 1
  %v2129 = vsel %vm2126, %v2111, %v2120
  %v2130 = vsel %vm2127, %v2112, %v2121
  %v2131 = vsel %vm2128, %v2113, %v2122
  %vm2132 = vcmp.eq.s32.totalorder %v1981, 1
  %v2133 = vsel %vm2132, 1, 0
  %v2134 = vcvt.s32.f32 %v2133
  %v2135 = vmul.f32 %v65, %v2134
  %v2136 = vmul.f32 %v66, %v2134
  %v2137 = vmul.f32 %v67, %v2134
  %v2138 = vsel %vm1726, %v2135, 0.0
  %2139 = vadd.xlane.f32.xlu0 %v2138
  %v2140 = vpop.xlane.xlu0 %2139
  %v2141 = vsel %vm1726, %v2136, 0.0
  %2142 = vadd.xlane.f32.xlu0 %v2141
  %v2143 = vpop.xlane.xlu0 %2142
  %v2144 = vsel %vm1726, %v2137, 0.0
  %2145 = vadd.xlane.f32.xlu0 %v2144
  %v2146 = vpop.xlane.xlu0 %2145
  %v2147 = vmul.f32 %v2129, %v2140
  %v2148 = vmul.f32 %v2130, %v2143
  %v2149 = vmul.f32 %v2131, %v2146
  %2150 = vmatprep.subr.mxu0 0.0
  %2151 = vmatpush1.msra.mxu0 0.0
  %2152 = vmatprep.subr.mxu0 0.0
  %2153 = vmatpush1.msra.mxu0 0.0
  %2154 = vmatprep.subr.mxu0 0.0
  %2155 = vmatpush1.msra.mxu0 0.0
  %2156 = vmatprep.subr.mxu0 0.0
  %2157 = vmatpush1.msra.mxu0 0.0
  %2158 = vmatprep.subr.mxu0 0.0
  %2159 = vmatpush1.msra.mxu0 0.0
  %2160 = vmatprep.subr.mxu0 0.0
  %2161 = vmatpush1.msra.mxu0 0.0
  %2162 = vmatprep.subr.mxu0 0.0
  %2163 = vmatpush1.msra.mxu0 0.0
  %2164 = vmatprep.subr.mxu0 0.0
  %2165 = vmatpush1.msra.mxu0 0.0
  %2166 = vmatprep.subr.mxu0 0.0
  %2167 = vmatpush1.msra.mxu0 0.0
  %2168 = vmatprep.subr.mxu0 0.0
  %2169 = vmatpush1.msra.mxu0 0.0
  %2170 = vmatprep.subr.mxu0 0.0
  %2171 = vmatpush1.msra.mxu0 0.0
  %2172 = vmatprep.subr.mxu0 0.0
  %2173 = vmatpush1.msra.mxu0 0.0
  %2174 = vmatprep.subr.mxu0 0.0
  %2175 = vmatpush1.msra.mxu0 0.0
  %2176 = vmatprep.subr.mxu0 0.0
  %2177 = vmatpush1.msra.mxu0 %v2149
  %2178 = vmatprep.subr.mxu0 0.0
  %2179 = vmatpush1.msra.mxu0 %v2148
  %2180 = vmatprep.subr.mxu0 0.0
  %2181 = vmatpush1.msra.mxu0 %v2147
  %2182 = vmatprep.subr.mxu0 0.0
  %2183 = vmatpush2.msra.mxu0 0.0
  %2184 = vmatprep.subr.mxu0 0.0
  %2185 = vmatpush2.msra.mxu0 0.0
  %2186 = vmatprep.subr.mxu0 0.0
  %2187 = vmatpush2.msra.mxu0 0.0
  %2188 = vmatprep.subr.mxu0 0.0
  %2189 = vmatpush2.msra.mxu0 0.0
  %2190 = vmatprep.subr.mxu0 0.0
  %2191 = vmatpush2.msra.mxu0 0.0
  %2192 = vmatprep.subr.mxu0 0.0
  %2193 = vmatpush2.msra.mxu0 0.0
  %2194 = vmatprep.subr.mxu0 0.0
  %2195 = vmatpush2.msra.mxu0 0.0
  %2196 = vmatprep.subr.mxu0 0.0
  %2197 = vmatpush2.msra.mxu0 0.0
  %2198 = vmatprep.subr.mxu0 0.0
  %2199 = vmatpush2.msra.mxu0 0.0
  %2200 = vmatprep.subr.mxu0 0.0
  %2201 = vmatpush2.msra.mxu0 0.0
  %2202 = vmatprep.subr.mxu0 0.0
  %2203 = vmatpush2.msra.mxu0 0.0
  %2204 = vmatprep.subr.mxu0 0.0
  %2205 = vmatpush2.msra.mxu0 0.0
  %2206 = vmatprep.subr.mxu0 0.0
  %2207 = vmatpush2.msra.mxu0 0.0
  %2208 = vmatprep.subr.mxu0 0.0
  %2209 = vmatpush2.msra.mxu0 0.0
  %2210 = vmatprep.subr.mxu0 0.0
  %2211 = vmatpush2.msra.mxu0 0.0
  %2212 = vmatprep.subr.mxu0 0.0
  %2213 = vmatpush2.msra.mxu0 0.0
  %2214 = vmatprep.mubr.f32.mxu0 0.0
  %2215 = vmatmul.mubr.f32.gmra.mxu0 %v1638
  %v2216 = vpop.f32.mrf.mxu0
  %v2217 = vadd.f32 0.0, %v2216
  %v2218 = vpop.f32.mrf.mxu0
  %2219 = vmatprep.mubr.f32.mxu0 0.0
  %2220 = vmatmul.mubr.f32.gmra.mxu0 %v1641
  %v2221 = vpop.f32.mrf.mxu0
  %v2222 = vadd.f32 0.0, %v2221
  %v2223 = vpop.f32.mrf.mxu0
  %2224 = vmatprep.mubr.f32.mxu0 0.0
  %2225 = vmatmul.mubr.f32.gmra.mxu0 %v1644
  %v2226 = vpop.f32.mrf.mxu0
  %v2227 = vadd.f32 0.0, %v2226
  %v2228 = vpop.f32.mrf.mxu0
  %2229 = vdwg.mxu0
  %v2230 = vmul.f32 %v2217, %v2134
  %v2231 = vmul.f32 %v2222, %v2134
  %v2232 = vmul.f32 %v2227, %v2134
  %v2233 = vsel %vm2083, %v2230, 0.0
  %2234 = vadd.xlane.f32.xlu0 %v2233
  %v2235 = vpop.xlane.xlu0 %2234
  %v2236 = vsel %vm2083, %v2231, 0.0
  %2237 = vadd.xlane.f32.xlu0 %v2236
  %v2238 = vpop.xlane.xlu0 %2237
  %v2239 = vsel %vm2083, %v2232, 0.0
  %2240 = vadd.xlane.f32.xlu0 %v2239
  %v2241 = vpop.xlane.xlu0 %2240
  %v2242 = vmul.f32 %v2129, %v2134
  %v2243 = vmul.f32 %v2130, %v2134
  %v2244 = vmul.f32 %v2131, %v2134
  %v2245 = vsel %vm2083, %v2242, 0.0
  %2246 = vadd.xlane.f32.xlu0 %v2245
  %v2247 = vpop.xlane.xlu0 %2246
  %v2248 = vsel %vm2083, %v2243, 0.0
  %2249 = vadd.xlane.f32.xlu0 %v2248
  %v2250 = vpop.xlane.xlu0 %2249
  %v2251 = vsel %vm2083, %v2244, 0.0
  %2252 = vadd.xlane.f32.xlu0 %v2251
  %v2253 = vpop.xlane.xlu0 %2252
  %v2254 = vrcp.pop %v2235
  %v2255 = vmul.f32 1.0, %v2254
  %v2256 = vrcp.pop %v2238
  %v2257 = vmul.f32 1.0, %v2256
  %v2258 = vrcp.pop %v2241
  %v2259 = vmul.f32 1.0, %v2258
  %v2260 = vmul.f32 %v2217, %v2255
  %v2261 = vmul.f32 %v2222, %v2257
  %v2262 = vmul.f32 %v2227, %v2259
  %vm2263 = vcmp.gt.f32.partialorder %v2140, 0.5
  %vm2264 = vcmp.gt.f32.partialorder %v2143, 0.5
  %vm2265 = vcmp.gt.f32.partialorder %v2146, 0.5
  %v2266 = vmul.f32 %v2247, %v2260
  %v2267 = vmul.f32 %v2250, %v2261
  %v2268 = vmul.f32 %v2253, %v2262
  %v2269 = vsub.f32 %v2129, %v2266
  %v2270 = vsub.f32 %v2130, %v2267
  %v2271 = vsub.f32 %v2131, %v2268
  %v2272 = vsel %vm2263, 1, 0
  %v2273 = vsel %vm2264, 1, 0
  %v2274 = vsel %vm2265, 1, 0
  %vm2275 = vcmp.eq.s32.totalorder %v2272, 1
  %vm2276 = vcmp.eq.s32.totalorder %v2273, 1
  %vm2277 = vcmp.eq.s32.totalorder %v2274, 1
  %v2278 = vsel %vm2275, %v2260, %v2269
  %v2279 = vsel %vm2276, %v2261, %v2270
  %v2280 = vsel %vm2277, %v2262, %v2271
  %vm2281 = vcmp.eq.s32.totalorder %v1981, 2
  %v2282 = vsel %vm2281, 1, 0
  %v2283 = vcvt.s32.f32 %v2282
  %v2284 = vmul.f32 %v65, %v2283
  %v2285 = vmul.f32 %v66, %v2283
  %v2286 = vmul.f32 %v67, %v2283
  %v2287 = vsel %vm1726, %v2284, 0.0
  %2288 = vadd.xlane.f32.xlu0 %v2287
  %v2289 = vpop.xlane.xlu0 %2288
  %v2290 = vsel %vm1726, %v2285, 0.0
  %2291 = vadd.xlane.f32.xlu0 %v2290
  %v2292 = vpop.xlane.xlu0 %2291
  %v2293 = vsel %vm1726, %v2286, 0.0
  %2294 = vadd.xlane.f32.xlu0 %v2293
  %v2295 = vpop.xlane.xlu0 %2294
  %v2296 = vmul.f32 %v2278, %v2289
  %v2297 = vmul.f32 %v2279, %v2292
  %v2298 = vmul.f32 %v2280, %v2295
  %2299 = vmatprep.subr.mxu0 0.0
  %2300 = vmatpush1.msra.mxu0 0.0
  %2301 = vmatprep.subr.mxu0 0.0
  %2302 = vmatpush1.msra.mxu0 0.0
  %2303 = vmatprep.subr.mxu0 0.0
  %2304 = vmatpush1.msra.mxu0 0.0
  %2305 = vmatprep.subr.mxu0 0.0
  %2306 = vmatpush1.msra.mxu0 0.0
  %2307 = vmatprep.subr.mxu0 0.0
  %2308 = vmatpush1.msra.mxu0 0.0
  %2309 = vmatprep.subr.mxu0 0.0
  %2310 = vmatpush1.msra.mxu0 0.0
  %2311 = vmatprep.subr.mxu0 0.0
  %2312 = vmatpush1.msra.mxu0 0.0
  %2313 = vmatprep.subr.mxu0 0.0
  %2314 = vmatpush1.msra.mxu0 0.0
  %2315 = vmatprep.subr.mxu0 0.0
  %2316 = vmatpush1.msra.mxu0 0.0
  %2317 = vmatprep.subr.mxu0 0.0
  %2318 = vmatpush1.msra.mxu0 0.0
  %2319 = vmatprep.subr.mxu0 0.0
  %2320 = vmatpush1.msra.mxu0 0.0
  %2321 = vmatprep.subr.mxu0 0.0
  %2322 = vmatpush1.msra.mxu0 0.0
  %2323 = vmatprep.subr.mxu0 0.0
  %2324 = vmatpush1.msra.mxu0 0.0
  %2325 = vmatprep.subr.mxu0 0.0
  %2326 = vmatpush1.msra.mxu0 %v2298
  %2327 = vmatprep.subr.mxu0 0.0
  %2328 = vmatpush1.msra.mxu0 %v2297
  %2329 = vmatprep.subr.mxu0 0.0
  %2330 = vmatpush1.msra.mxu0 %v2296
  %2331 = vmatprep.subr.mxu0 0.0
  %2332 = vmatpush2.msra.mxu0 0.0
  %2333 = vmatprep.subr.mxu0 0.0
  %2334 = vmatpush2.msra.mxu0 0.0
  %2335 = vmatprep.subr.mxu0 0.0
  %2336 = vmatpush2.msra.mxu0 0.0
  %2337 = vmatprep.subr.mxu0 0.0
  %2338 = vmatpush2.msra.mxu0 0.0
  %2339 = vmatprep.subr.mxu0 0.0
  %2340 = vmatpush2.msra.mxu0 0.0
  %2341 = vmatprep.subr.mxu0 0.0
  %2342 = vmatpush2.msra.mxu0 0.0
  %2343 = vmatprep.subr.mxu0 0.0
  %2344 = vmatpush2.msra.mxu0 0.0
  %2345 = vmatprep.subr.mxu0 0.0
  %2346 = vmatpush2.msra.mxu0 0.0
  %2347 = vmatprep.subr.mxu0 0.0
  %2348 = vmatpush2.msra.mxu0 0.0
  %2349 = vmatprep.subr.mxu0 0.0
  %2350 = vmatpush2.msra.mxu0 0.0
  %2351 = vmatprep.subr.mxu0 0.0
  %2352 = vmatpush2.msra.mxu0 0.0
  %2353 = vmatprep.subr.mxu0 0.0
  %2354 = vmatpush2.msra.mxu0 0.0
  %2355 = vmatprep.subr.mxu0 0.0
  %2356 = vmatpush2.msra.mxu0 0.0
  %2357 = vmatprep.subr.mxu0 0.0
  %2358 = vmatpush2.msra.mxu0 0.0
  %2359 = vmatprep.subr.mxu0 0.0
  %2360 = vmatpush2.msra.mxu0 0.0
  %2361 = vmatprep.subr.mxu0 0.0
  %2362 = vmatpush2.msra.mxu0 0.0
  %2363 = vmatprep.mubr.f32.mxu0 0.0
  %2364 = vmatmul.mubr.f32.gmra.mxu0 %v1638
  %v2365 = vpop.f32.mrf.mxu0
  %v2366 = vadd.f32 0.0, %v2365
  %v2367 = vpop.f32.mrf.mxu0
  %2368 = vmatprep.mubr.f32.mxu0 0.0
  %2369 = vmatmul.mubr.f32.gmra.mxu0 %v1641
  %v2370 = vpop.f32.mrf.mxu0
  %v2371 = vadd.f32 0.0, %v2370
  %v2372 = vpop.f32.mrf.mxu0
  %2373 = vmatprep.mubr.f32.mxu0 0.0
  %2374 = vmatmul.mubr.f32.gmra.mxu0 %v1644
  %v2375 = vpop.f32.mrf.mxu0
  %v2376 = vadd.f32 0.0, %v2375
  %v2377 = vpop.f32.mrf.mxu0
  %2378 = vdwg.mxu0
  %v2379 = vmul.f32 %v2366, %v2283
  %v2380 = vmul.f32 %v2371, %v2283
  %v2381 = vmul.f32 %v2376, %v2283
  %v2382 = vsel %vm2083, %v2379, 0.0
  %2383 = vadd.xlane.f32.xlu0 %v2382
  %v2384 = vpop.xlane.xlu0 %2383
  %v2385 = vsel %vm2083, %v2380, 0.0
  %2386 = vadd.xlane.f32.xlu0 %v2385
  %v2387 = vpop.xlane.xlu0 %2386
  %v2388 = vsel %vm2083, %v2381, 0.0
  %2389 = vadd.xlane.f32.xlu0 %v2388
  %v2390 = vpop.xlane.xlu0 %2389
  %v2391 = vmul.f32 %v2278, %v2283
  %v2392 = vmul.f32 %v2279, %v2283
  %v2393 = vmul.f32 %v2280, %v2283
  %v2394 = vsel %vm2083, %v2391, 0.0
  %2395 = vadd.xlane.f32.xlu0 %v2394
  %v2396 = vpop.xlane.xlu0 %2395
  %v2397 = vsel %vm2083, %v2392, 0.0
  %2398 = vadd.xlane.f32.xlu0 %v2397
  %v2399 = vpop.xlane.xlu0 %2398
  %v2400 = vsel %vm2083, %v2393, 0.0
  %2401 = vadd.xlane.f32.xlu0 %v2400
  %v2402 = vpop.xlane.xlu0 %2401
  %v2403 = vrcp.pop %v2384
  %v2404 = vmul.f32 1.0, %v2403
  %v2405 = vrcp.pop %v2387
  %v2406 = vmul.f32 1.0, %v2405
  %v2407 = vrcp.pop %v2390
  %v2408 = vmul.f32 1.0, %v2407
  %v2409 = vmul.f32 %v2366, %v2404
  %v2410 = vmul.f32 %v2371, %v2406
  %v2411 = vmul.f32 %v2376, %v2408
  %vm2412 = vcmp.gt.f32.partialorder %v2289, 0.5
  %vm2413 = vcmp.gt.f32.partialorder %v2292, 0.5
  %vm2414 = vcmp.gt.f32.partialorder %v2295, 0.5
  %v2415 = vmul.f32 %v2396, %v2409
  %v2416 = vmul.f32 %v2399, %v2410
  %v2417 = vmul.f32 %v2402, %v2411
  %v2418 = vsub.f32 %v2278, %v2415
  %v2419 = vsub.f32 %v2279, %v2416
  %v2420 = vsub.f32 %v2280, %v2417
  %v2421 = vsel %vm2412, 1, 0
  %v2422 = vsel %vm2413, 1, 0
  %v2423 = vsel %vm2414, 1, 0
  %vm2424 = vcmp.eq.s32.totalorder %v2421, 1
  %vm2425 = vcmp.eq.s32.totalorder %v2422, 1
  %vm2426 = vcmp.eq.s32.totalorder %v2423, 1
  %v2427 = vsel %vm2424, %v2409, %v2418
  %v2428 = vsel %vm2425, %v2410, %v2419
  %v2429 = vsel %vm2426, %v2411, %v2420
  %vm2430 = vcmp.eq.s32.totalorder %v1981, 3
  %v2431 = vsel %vm2430, 1, 0
  %v2432 = vcvt.s32.f32 %v2431
  %v2433 = vmul.f32 %v65, %v2432
  %v2434 = vmul.f32 %v66, %v2432
  %v2435 = vmul.f32 %v67, %v2432
  %v2436 = vsel %vm1726, %v2433, 0.0
  %2437 = vadd.xlane.f32.xlu0 %v2436
  %v2438 = vpop.xlane.xlu0 %2437
  %v2439 = vsel %vm1726, %v2434, 0.0
  %2440 = vadd.xlane.f32.xlu0 %v2439
  %v2441 = vpop.xlane.xlu0 %2440
  %v2442 = vsel %vm1726, %v2435, 0.0
  %2443 = vadd.xlane.f32.xlu0 %v2442
  %v2444 = vpop.xlane.xlu0 %2443
  %v2445 = vmul.f32 %v2427, %v2438
  %v2446 = vmul.f32 %v2428, %v2441
  %v2447 = vmul.f32 %v2429, %v2444
  %2448 = vmatprep.subr.mxu0 0.0
  %2449 = vmatpush1.msra.mxu0 0.0
  %2450 = vmatprep.subr.mxu0 0.0
  %2451 = vmatpush1.msra.mxu0 0.0
  %2452 = vmatprep.subr.mxu0 0.0
  %2453 = vmatpush1.msra.mxu0 0.0
  %2454 = vmatprep.subr.mxu0 0.0
  %2455 = vmatpush1.msra.mxu0 0.0
  %2456 = vmatprep.subr.mxu0 0.0
  %2457 = vmatpush1.msra.mxu0 0.0
  %2458 = vmatprep.subr.mxu0 0.0
  %2459 = vmatpush1.msra.mxu0 0.0
  %2460 = vmatprep.subr.mxu0 0.0
  %2461 = vmatpush1.msra.mxu0 0.0
  %2462 = vmatprep.subr.mxu0 0.0
  %2463 = vmatpush1.msra.mxu0 0.0
  %2464 = vmatprep.subr.mxu0 0.0
  %2465 = vmatpush1.msra.mxu0 0.0
  %2466 = vmatprep.subr.mxu0 0.0
  %2467 = vmatpush1.msra.mxu0 0.0
  %2468 = vmatprep.subr.mxu0 0.0
  %2469 = vmatpush1.msra.mxu0 0.0
  %2470 = vmatprep.subr.mxu0 0.0
  %2471 = vmatpush1.msra.mxu0 0.0
  %2472 = vmatprep.subr.mxu0 0.0
  %2473 = vmatpush1.msra.mxu0 0.0
  %2474 = vmatprep.subr.mxu0 0.0
  %2475 = vmatpush1.msra.mxu0 %v2447
  %2476 = vmatprep.subr.mxu0 0.0
  %2477 = vmatpush1.msra.mxu0 %v2446
  %2478 = vmatprep.subr.mxu0 0.0
  %2479 = vmatpush1.msra.mxu0 %v2445
  %2480 = vmatprep.subr.mxu0 0.0
  %2481 = vmatpush2.msra.mxu0 0.0
  %2482 = vmatprep.subr.mxu0 0.0
  %2483 = vmatpush2.msra.mxu0 0.0
  %2484 = vmatprep.subr.mxu0 0.0
  %2485 = vmatpush2.msra.mxu0 0.0
  %2486 = vmatprep.subr.mxu0 0.0
  %2487 = vmatpush2.msra.mxu0 0.0
  %2488 = vmatprep.subr.mxu0 0.0
  %2489 = vmatpush2.msra.mxu0 0.0
  %2490 = vmatprep.subr.mxu0 0.0
  %2491 = vmatpush2.msra.mxu0 0.0
  %2492 = vmatprep.subr.mxu0 0.0
  %2493 = vmatpush2.msra.mxu0 0.0
  %2494 = vmatprep.subr.mxu0 0.0
  %2495 = vmatpush2.msra.mxu0 0.0
  %2496 = vmatprep.subr.mxu0 0.0
  %2497 = vmatpush2.msra.mxu0 0.0
  %2498 = vmatprep.subr.mxu0 0.0
  %2499 = vmatpush2.msra.mxu0 0.0
  %2500 = vmatprep.subr.mxu0 0.0
  %2501 = vmatpush2.msra.mxu0 0.0
  %2502 = vmatprep.subr.mxu0 0.0
  %2503 = vmatpush2.msra.mxu0 0.0
  %2504 = vmatprep.subr.mxu0 0.0
  %2505 = vmatpush2.msra.mxu0 0.0
  %2506 = vmatprep.subr.mxu0 0.0
  %2507 = vmatpush2.msra.mxu0 0.0
  %2508 = vmatprep.subr.mxu0 0.0
  %2509 = vmatpush2.msra.mxu0 0.0
  %2510 = vmatprep.subr.mxu0 0.0
  %2511 = vmatpush2.msra.mxu0 0.0
  %2512 = vmatprep.mubr.f32.mxu0 0.0
  %2513 = vmatmul.mubr.f32.gmra.mxu0 %v1638
  %v2514 = vpop.f32.mrf.mxu0
  %v2515 = vadd.f32 0.0, %v2514
  %v2516 = vpop.f32.mrf.mxu0
  %2517 = vmatprep.mubr.f32.mxu0 0.0
  %2518 = vmatmul.mubr.f32.gmra.mxu0 %v1641
  %v2519 = vpop.f32.mrf.mxu0
  %v2520 = vadd.f32 0.0, %v2519
  %v2521 = vpop.f32.mrf.mxu0
  %2522 = vmatprep.mubr.f32.mxu0 0.0
  %2523 = vmatmul.mubr.f32.gmra.mxu0 %v1644
  %v2524 = vpop.f32.mrf.mxu0
  %v2525 = vadd.f32 0.0, %v2524
  %v2526 = vpop.f32.mrf.mxu0
  %2527 = vdwg.mxu0
  %v2528 = vmul.f32 %v2515, %v2432
  %v2529 = vmul.f32 %v2520, %v2432
  %v2530 = vmul.f32 %v2525, %v2432
  %v2531 = vsel %vm2083, %v2528, 0.0
  %2532 = vadd.xlane.f32.xlu0 %v2531
  %v2533 = vpop.xlane.xlu0 %2532
  %v2534 = vsel %vm2083, %v2529, 0.0
  %2535 = vadd.xlane.f32.xlu0 %v2534
  %v2536 = vpop.xlane.xlu0 %2535
  %v2537 = vsel %vm2083, %v2530, 0.0
  %2538 = vadd.xlane.f32.xlu0 %v2537
  %v2539 = vpop.xlane.xlu0 %2538
  %v2540 = vmul.f32 %v2427, %v2432
  %v2541 = vmul.f32 %v2428, %v2432
  %v2542 = vmul.f32 %v2429, %v2432
  %v2543 = vsel %vm2083, %v2540, 0.0
  %2544 = vadd.xlane.f32.xlu0 %v2543
  %v2545 = vpop.xlane.xlu0 %2544
  %v2546 = vsel %vm2083, %v2541, 0.0
  %2547 = vadd.xlane.f32.xlu0 %v2546
  %v2548 = vpop.xlane.xlu0 %2547
  %v2549 = vsel %vm2083, %v2542, 0.0
  %2550 = vadd.xlane.f32.xlu0 %v2549
  %v2551 = vpop.xlane.xlu0 %2550
  %v2552 = vrcp.pop %v2533
  %v2553 = vmul.f32 1.0, %v2552
  %v2554 = vrcp.pop %v2536
  %v2555 = vmul.f32 1.0, %v2554
  %v2556 = vrcp.pop %v2539
  %v2557 = vmul.f32 1.0, %v2556
  %v2558 = vmul.f32 %v2515, %v2553
  %v2559 = vmul.f32 %v2520, %v2555
  %v2560 = vmul.f32 %v2525, %v2557
  %vm2561 = vcmp.gt.f32.partialorder %v2438, 0.5
  %vm2562 = vcmp.gt.f32.partialorder %v2441, 0.5
  %vm2563 = vcmp.gt.f32.partialorder %v2444, 0.5
  %v2564 = vmul.f32 %v2545, %v2558
  %v2565 = vmul.f32 %v2548, %v2559
  %v2566 = vmul.f32 %v2551, %v2560
  %v2567 = vsub.f32 %v2427, %v2564
  %v2568 = vsub.f32 %v2428, %v2565
  %v2569 = vsub.f32 %v2429, %v2566
  %v2570 = vsel %vm2561, 1, 0
  %v2571 = vsel %vm2562, 1, 0
  %v2572 = vsel %vm2563, 1, 0
  %vm2573 = vcmp.eq.s32.totalorder %v2570, 1
  %vm2574 = vcmp.eq.s32.totalorder %v2571, 1
  %vm2575 = vcmp.eq.s32.totalorder %v2572, 1
  %v2576 = vsel %vm2573, %v2558, %v2567
  %v2577 = vsel %vm2574, %v2559, %v2568
  %v2578 = vsel %vm2575, %v2560, %v2569
  %vm2579 = vcmp.eq.s32.totalorder %v1981, 4
  %v2580 = vsel %vm2579, 1, 0
  %v2581 = vcvt.s32.f32 %v2580
  %v2582 = vmul.f32 %v65, %v2581
  %v2583 = vmul.f32 %v66, %v2581
  %v2584 = vmul.f32 %v67, %v2581
  %v2585 = vsel %vm1726, %v2582, 0.0
  %2586 = vadd.xlane.f32.xlu0 %v2585
  %v2587 = vpop.xlane.xlu0 %2586
  %v2588 = vsel %vm1726, %v2583, 0.0
  %2589 = vadd.xlane.f32.xlu0 %v2588
  %v2590 = vpop.xlane.xlu0 %2589
  %v2591 = vsel %vm1726, %v2584, 0.0
  %2592 = vadd.xlane.f32.xlu0 %v2591
  %v2593 = vpop.xlane.xlu0 %2592
  %v2594 = vmul.f32 %v2576, %v2587
  %v2595 = vmul.f32 %v2577, %v2590
  %v2596 = vmul.f32 %v2578, %v2593
  %2597 = vmatprep.subr.mxu0 0.0
  %2598 = vmatpush1.msra.mxu0 0.0
  %2599 = vmatprep.subr.mxu0 0.0
  %2600 = vmatpush1.msra.mxu0 0.0
  %2601 = vmatprep.subr.mxu0 0.0
  %2602 = vmatpush1.msra.mxu0 0.0
  %2603 = vmatprep.subr.mxu0 0.0
  %2604 = vmatpush1.msra.mxu0 0.0
  %2605 = vmatprep.subr.mxu0 0.0
  %2606 = vmatpush1.msra.mxu0 0.0
  %2607 = vmatprep.subr.mxu0 0.0
  %2608 = vmatpush1.msra.mxu0 0.0
  %2609 = vmatprep.subr.mxu0 0.0
  %2610 = vmatpush1.msra.mxu0 0.0
  %2611 = vmatprep.subr.mxu0 0.0
  %2612 = vmatpush1.msra.mxu0 0.0
  %2613 = vmatprep.subr.mxu0 0.0
  %2614 = vmatpush1.msra.mxu0 0.0
  %2615 = vmatprep.subr.mxu0 0.0
  %2616 = vmatpush1.msra.mxu0 0.0
  %2617 = vmatprep.subr.mxu0 0.0
  %2618 = vmatpush1.msra.mxu0 0.0
  %2619 = vmatprep.subr.mxu0 0.0
  %2620 = vmatpush1.msra.mxu0 0.0
  %2621 = vmatprep.subr.mxu0 0.0
  %2622 = vmatpush1.msra.mxu0 0.0
  %2623 = vmatprep.subr.mxu0 0.0
  %2624 = vmatpush1.msra.mxu0 %v2596
  %2625 = vmatprep.subr.mxu0 0.0
  %2626 = vmatpush1.msra.mxu0 %v2595
  %2627 = vmatprep.subr.mxu0 0.0
  %2628 = vmatpush1.msra.mxu0 %v2594
  %2629 = vmatprep.subr.mxu0 0.0
  %2630 = vmatpush2.msra.mxu0 0.0
  %2631 = vmatprep.subr.mxu0 0.0
  %2632 = vmatpush2.msra.mxu0 0.0
  %2633 = vmatprep.subr.mxu0 0.0
  %2634 = vmatpush2.msra.mxu0 0.0
  %2635 = vmatprep.subr.mxu0 0.0
  %2636 = vmatpush2.msra.mxu0 0.0
  %2637 = vmatprep.subr.mxu0 0.0
  %2638 = vmatpush2.msra.mxu0 0.0
  %2639 = vmatprep.subr.mxu0 0.0
  %2640 = vmatpush2.msra.mxu0 0.0
  %2641 = vmatprep.subr.mxu0 0.0
  %2642 = vmatpush2.msra.mxu0 0.0
  %2643 = vmatprep.subr.mxu0 0.0
  %2644 = vmatpush2.msra.mxu0 0.0
  %2645 = vmatprep.subr.mxu0 0.0
  %2646 = vmatpush2.msra.mxu0 0.0
  %2647 = vmatprep.subr.mxu0 0.0
  %2648 = vmatpush2.msra.mxu0 0.0
  %2649 = vmatprep.subr.mxu0 0.0
  %2650 = vmatpush2.msra.mxu0 0.0
  %2651 = vmatprep.subr.mxu0 0.0
  %2652 = vmatpush2.msra.mxu0 0.0
  %2653 = vmatprep.subr.mxu0 0.0
  %2654 = vmatpush2.msra.mxu0 0.0
  %2655 = vmatprep.subr.mxu0 0.0
  %2656 = vmatpush2.msra.mxu0 0.0
  %2657 = vmatprep.subr.mxu0 0.0
  %2658 = vmatpush2.msra.mxu0 0.0
  %2659 = vmatprep.subr.mxu0 0.0
  %2660 = vmatpush2.msra.mxu0 0.0
  %2661 = vmatprep.mubr.f32.mxu0 0.0
  %2662 = vmatmul.mubr.f32.gmra.mxu0 %v1638
  %v2663 = vpop.f32.mrf.mxu0
  %v2664 = vadd.f32 0.0, %v2663
  %v2665 = vpop.f32.mrf.mxu0
  %2666 = vmatprep.mubr.f32.mxu0 0.0
  %2667 = vmatmul.mubr.f32.gmra.mxu0 %v1641
  %v2668 = vpop.f32.mrf.mxu0
  %v2669 = vadd.f32 0.0, %v2668
  %v2670 = vpop.f32.mrf.mxu0
  %2671 = vmatprep.mubr.f32.mxu0 0.0
  %2672 = vmatmul.mubr.f32.gmra.mxu0 %v1644
  %v2673 = vpop.f32.mrf.mxu0
  %v2674 = vadd.f32 0.0, %v2673
  %v2675 = vpop.f32.mrf.mxu0
  %2676 = vdwg.mxu0
  %v2677 = vmul.f32 %v2664, %v2581
  %v2678 = vmul.f32 %v2669, %v2581
  %v2679 = vmul.f32 %v2674, %v2581
  %v2680 = vsel %vm2083, %v2677, 0.0
  %2681 = vadd.xlane.f32.xlu0 %v2680
  %v2682 = vpop.xlane.xlu0 %2681
  %v2683 = vsel %vm2083, %v2678, 0.0
  %2684 = vadd.xlane.f32.xlu0 %v2683
  %v2685 = vpop.xlane.xlu0 %2684
  %v2686 = vsel %vm2083, %v2679, 0.0
  %2687 = vadd.xlane.f32.xlu0 %v2686
  %v2688 = vpop.xlane.xlu0 %2687
  %v2689 = vmul.f32 %v2576, %v2581
  %v2690 = vmul.f32 %v2577, %v2581
  %v2691 = vmul.f32 %v2578, %v2581
  %v2692 = vsel %vm2083, %v2689, 0.0
  %2693 = vadd.xlane.f32.xlu0 %v2692
  %v2694 = vpop.xlane.xlu0 %2693
  %v2695 = vsel %vm2083, %v2690, 0.0
  %2696 = vadd.xlane.f32.xlu0 %v2695
  %v2697 = vpop.xlane.xlu0 %2696
  %v2698 = vsel %vm2083, %v2691, 0.0
  %2699 = vadd.xlane.f32.xlu0 %v2698
  %v2700 = vpop.xlane.xlu0 %2699
  %v2701 = vrcp.pop %v2682
  %v2702 = vmul.f32 1.0, %v2701
  %v2703 = vrcp.pop %v2685
  %v2704 = vmul.f32 1.0, %v2703
  %v2705 = vrcp.pop %v2688
  %v2706 = vmul.f32 1.0, %v2705
  %v2707 = vmul.f32 %v2664, %v2702
  %v2708 = vmul.f32 %v2669, %v2704
  %v2709 = vmul.f32 %v2674, %v2706
  %vm2710 = vcmp.gt.f32.partialorder %v2587, 0.5
  %vm2711 = vcmp.gt.f32.partialorder %v2590, 0.5
  %vm2712 = vcmp.gt.f32.partialorder %v2593, 0.5
  %v2713 = vmul.f32 %v2694, %v2707
  %v2714 = vmul.f32 %v2697, %v2708
  %v2715 = vmul.f32 %v2700, %v2709
  %v2716 = vsub.f32 %v2576, %v2713
  %v2717 = vsub.f32 %v2577, %v2714
  %v2718 = vsub.f32 %v2578, %v2715
  %v2719 = vsel %vm2710, 1, 0
  %v2720 = vsel %vm2711, 1, 0
  %v2721 = vsel %vm2712, 1, 0
  %vm2722 = vcmp.eq.s32.totalorder %v2719, 1
  %vm2723 = vcmp.eq.s32.totalorder %v2720, 1
  %vm2724 = vcmp.eq.s32.totalorder %v2721, 1
  %v2725 = vsel %vm2722, %v2707, %v2716
  %v2726 = vsel %vm2723, %v2708, %v2717
  %v2727 = vsel %vm2724, %v2709, %v2718
  %vm2728 = vcmp.eq.s32.totalorder %v1981, 5
  %v2729 = vsel %vm2728, 1, 0
  %v2730 = vcvt.s32.f32 %v2729
  %v2731 = vmul.f32 %v65, %v2730
  %v2732 = vmul.f32 %v66, %v2730
  %v2733 = vmul.f32 %v67, %v2730
  %v2734 = vsel %vm1726, %v2731, 0.0
  %2735 = vadd.xlane.f32.xlu0 %v2734
  %v2736 = vpop.xlane.xlu0 %2735
  %v2737 = vsel %vm1726, %v2732, 0.0
  %2738 = vadd.xlane.f32.xlu0 %v2737
  %v2739 = vpop.xlane.xlu0 %2738
  %v2740 = vsel %vm1726, %v2733, 0.0
  %2741 = vadd.xlane.f32.xlu0 %v2740
  %v2742 = vpop.xlane.xlu0 %2741
  %v2743 = vmul.f32 %v2725, %v2736
  %v2744 = vmul.f32 %v2726, %v2739
  %v2745 = vmul.f32 %v2727, %v2742
  %2746 = vmatprep.subr.mxu0 0.0
  %2747 = vmatpush1.msra.mxu0 0.0
  %2748 = vmatprep.subr.mxu0 0.0
  %2749 = vmatpush1.msra.mxu0 0.0
  %2750 = vmatprep.subr.mxu0 0.0
  %2751 = vmatpush1.msra.mxu0 0.0
  %2752 = vmatprep.subr.mxu0 0.0
  %2753 = vmatpush1.msra.mxu0 0.0
  %2754 = vmatprep.subr.mxu0 0.0
  %2755 = vmatpush1.msra.mxu0 0.0
  %2756 = vmatprep.subr.mxu0 0.0
  %2757 = vmatpush1.msra.mxu0 0.0
  %2758 = vmatprep.subr.mxu0 0.0
  %2759 = vmatpush1.msra.mxu0 0.0
  %2760 = vmatprep.subr.mxu0 0.0
  %2761 = vmatpush1.msra.mxu0 0.0
  %2762 = vmatprep.subr.mxu0 0.0
  %2763 = vmatpush1.msra.mxu0 0.0
  %2764 = vmatprep.subr.mxu0 0.0
  %2765 = vmatpush1.msra.mxu0 0.0
  %2766 = vmatprep.subr.mxu0 0.0
  %2767 = vmatpush1.msra.mxu0 0.0
  %2768 = vmatprep.subr.mxu0 0.0
  %2769 = vmatpush1.msra.mxu0 0.0
  %2770 = vmatprep.subr.mxu0 0.0
  %2771 = vmatpush1.msra.mxu0 0.0
  %2772 = vmatprep.subr.mxu0 0.0
  %2773 = vmatpush1.msra.mxu0 %v2745
  %2774 = vmatprep.subr.mxu0 0.0
  %2775 = vmatpush1.msra.mxu0 %v2744
  %2776 = vmatprep.subr.mxu0 0.0
  %2777 = vmatpush1.msra.mxu0 %v2743
  %2778 = vmatprep.subr.mxu0 0.0
  %2779 = vmatpush2.msra.mxu0 0.0
  %2780 = vmatprep.subr.mxu0 0.0
  %2781 = vmatpush2.msra.mxu0 0.0
  %2782 = vmatprep.subr.mxu0 0.0
  %2783 = vmatpush2.msra.mxu0 0.0
  %2784 = vmatprep.subr.mxu0 0.0
  %2785 = vmatpush2.msra.mxu0 0.0
  %2786 = vmatprep.subr.mxu0 0.0
  %2787 = vmatpush2.msra.mxu0 0.0
  %2788 = vmatprep.subr.mxu0 0.0
  %2789 = vmatpush2.msra.mxu0 0.0
  %2790 = vmatprep.subr.mxu0 0.0
  %2791 = vmatpush2.msra.mxu0 0.0
  %2792 = vmatprep.subr.mxu0 0.0
  %2793 = vmatpush2.msra.mxu0 0.0
  %2794 = vmatprep.subr.mxu0 0.0
  %2795 = vmatpush2.msra.mxu0 0.0
  %2796 = vmatprep.subr.mxu0 0.0
  %2797 = vmatpush2.msra.mxu0 0.0
  %2798 = vmatprep.subr.mxu0 0.0
  %2799 = vmatpush2.msra.mxu0 0.0
  %2800 = vmatprep.subr.mxu0 0.0
  %2801 = vmatpush2.msra.mxu0 0.0
  %2802 = vmatprep.subr.mxu0 0.0
  %2803 = vmatpush2.msra.mxu0 0.0
  %2804 = vmatprep.subr.mxu0 0.0
  %2805 = vmatpush2.msra.mxu0 0.0
  %2806 = vmatprep.subr.mxu0 0.0
  %2807 = vmatpush2.msra.mxu0 0.0
  %2808 = vmatprep.subr.mxu0 0.0
  %2809 = vmatpush2.msra.mxu0 0.0
  %2810 = vmatprep.mubr.f32.mxu0 0.0
  %2811 = vmatmul.mubr.f32.gmra.mxu0 %v1638
  %v2812 = vpop.f32.mrf.mxu0
  %v2813 = vadd.f32 0.0, %v2812
  %v2814 = vpop.f32.mrf.mxu0
  %2815 = vmatprep.mubr.f32.mxu0 0.0
  %2816 = vmatmul.mubr.f32.gmra.mxu0 %v1641
  %v2817 = vpop.f32.mrf.mxu0
  %v2818 = vadd.f32 0.0, %v2817
  %v2819 = vpop.f32.mrf.mxu0
  %2820 = vmatprep.mubr.f32.mxu0 0.0
  %2821 = vmatmul.mubr.f32.gmra.mxu0 %v1644
  %v2822 = vpop.f32.mrf.mxu0
  %v2823 = vadd.f32 0.0, %v2822
  %v2824 = vpop.f32.mrf.mxu0
  %2825 = vdwg.mxu0
  %v2826 = vmul.f32 %v2813, %v2730
  %v2827 = vmul.f32 %v2818, %v2730
  %v2828 = vmul.f32 %v2823, %v2730
  %v2829 = vsel %vm2083, %v2826, 0.0
  %2830 = vadd.xlane.f32.xlu0 %v2829
  %v2831 = vpop.xlane.xlu0 %2830
  %v2832 = vsel %vm2083, %v2827, 0.0
  %2833 = vadd.xlane.f32.xlu0 %v2832
  %v2834 = vpop.xlane.xlu0 %2833
  %v2835 = vsel %vm2083, %v2828, 0.0
  %2836 = vadd.xlane.f32.xlu0 %v2835
  %v2837 = vpop.xlane.xlu0 %2836
  %v2838 = vmul.f32 %v2725, %v2730
  %v2839 = vmul.f32 %v2726, %v2730
  %v2840 = vmul.f32 %v2727, %v2730
  %v2841 = vsel %vm2083, %v2838, 0.0
  %2842 = vadd.xlane.f32.xlu0 %v2841
  %v2843 = vpop.xlane.xlu0 %2842
  %v2844 = vsel %vm2083, %v2839, 0.0
  %2845 = vadd.xlane.f32.xlu0 %v2844
  %v2846 = vpop.xlane.xlu0 %2845
  %v2847 = vsel %vm2083, %v2840, 0.0
  %2848 = vadd.xlane.f32.xlu0 %v2847
  %v2849 = vpop.xlane.xlu0 %2848
  %v2850 = vrcp.pop %v2831
  %v2851 = vmul.f32 1.0, %v2850
  %v2852 = vrcp.pop %v2834
  %v2853 = vmul.f32 1.0, %v2852
  %v2854 = vrcp.pop %v2837
  %v2855 = vmul.f32 1.0, %v2854
  %v2856 = vmul.f32 %v2813, %v2851
  %v2857 = vmul.f32 %v2818, %v2853
  %v2858 = vmul.f32 %v2823, %v2855
  %vm2859 = vcmp.gt.f32.partialorder %v2736, 0.5
  %vm2860 = vcmp.gt.f32.partialorder %v2739, 0.5
  %vm2861 = vcmp.gt.f32.partialorder %v2742, 0.5
  %v2862 = vmul.f32 %v2843, %v2856
  %v2863 = vmul.f32 %v2846, %v2857
  %v2864 = vmul.f32 %v2849, %v2858
  %v2865 = vsub.f32 %v2725, %v2862
  %v2866 = vsub.f32 %v2726, %v2863
  %v2867 = vsub.f32 %v2727, %v2864
  %v2868 = vsel %vm2859, 1, 0
  %v2869 = vsel %vm2860, 1, 0
  %v2870 = vsel %vm2861, 1, 0
  %vm2871 = vcmp.eq.s32.totalorder %v2868, 1
  %vm2872 = vcmp.eq.s32.totalorder %v2869, 1
  %vm2873 = vcmp.eq.s32.totalorder %v2870, 1
  %v2874 = vsel %vm2871, %v2856, %v2865
  %v2875 = vsel %vm2872, %v2857, %v2866
  %v2876 = vsel %vm2873, %v2858, %v2867
  %v2878 = vsel %vm2083, %v2874, 0
  %v2881 = vsel %vm2083, %v2875, 0
  %v2884 = vsel %vm2083, %v2876, 0
  %v2887 = vsel %vm241, %v69, 0
  %2889 = vmatprep.subr.mxu0 0.0
  %2890 = vmatpush1.msra.mxu0 0.0
  %2891 = vmatprep.subr.mxu0 0.0
  %2892 = vmatpush1.msra.mxu0 0.0
  %2893 = vmatprep.subr.mxu0 0.0
  %2894 = vmatpush1.msra.mxu0 0.0
  %2895 = vmatprep.subr.mxu0 0.0
  %2896 = vmatpush1.msra.mxu0 0.0
  %2897 = vmatprep.subr.mxu0 0.0
  %2898 = vmatpush1.msra.mxu0 0.0
  %2899 = vmatprep.subr.mxu0 0.0
  %2900 = vmatpush1.msra.mxu0 0.0
  %2901 = vmatprep.subr.mxu0 0.0
  %2902 = vmatpush1.msra.mxu0 0.0
  %2903 = vmatprep.subr.mxu0 0.0
  %2904 = vmatpush1.msra.mxu0 0.0
  %2905 = vmatprep.subr.mxu0 0.0
  %2906 = vmatpush1.msra.mxu0 0.0
  %2907 = vmatprep.subr.mxu0 0.0
  %2908 = vmatpush1.msra.mxu0 0.0
  %2909 = vmatprep.subr.mxu0 0.0
  %2910 = vmatpush1.msra.mxu0 0.0
  %2911 = vmatprep.subr.mxu0 0.0
  %2912 = vmatpush1.msra.mxu0 0.0
  %2913 = vmatprep.subr.mxu0 0.0
  %2914 = vmatpush1.msra.mxu0 0.0
  %2915 = vmatprep.subr.mxu0 0.0
  %2916 = vmatpush1.msra.mxu0 0.0
  %2917 = vmatprep.subr.mxu0 0.0
  %2918 = vmatpush1.msra.mxu0 %v2887
  %2919 = vmatprep.subr.mxu0 0.0
  %2920 = vmatpush1.msra.mxu0 %v68
  %2921 = vmatprep.subr.mxu0 0.0
  %2922 = vmatpush2.msra.mxu0 0.0
  %2923 = vmatprep.subr.mxu0 0.0
  %2924 = vmatpush2.msra.mxu0 0.0
  %2925 = vmatprep.subr.mxu0 0.0
  %2926 = vmatpush2.msra.mxu0 0.0
  %2927 = vmatprep.subr.mxu0 0.0
  %2928 = vmatpush2.msra.mxu0 0.0
  %2929 = vmatprep.subr.mxu0 0.0
  %2930 = vmatpush2.msra.mxu0 0.0
  %2931 = vmatprep.subr.mxu0 0.0
  %2932 = vmatpush2.msra.mxu0 0.0
  %2933 = vmatprep.subr.mxu0 0.0
  %2934 = vmatpush2.msra.mxu0 0.0
  %2935 = vmatprep.subr.mxu0 0.0
  %2936 = vmatpush2.msra.mxu0 0.0
  %2937 = vmatprep.subr.mxu0 0.0
  %2938 = vmatpush2.msra.mxu0 0.0
  %2939 = vmatprep.subr.mxu0 0.0
  %2940 = vmatpush2.msra.mxu0 0.0
  %2941 = vmatprep.subr.mxu0 0.0
  %2942 = vmatpush2.msra.mxu0 0.0
  %2943 = vmatprep.subr.mxu0 0.0
  %2944 = vmatpush2.msra.mxu0 0.0
  %2945 = vmatprep.subr.mxu0 0.0
  %2946 = vmatpush2.msra.mxu0 0.0
  %2947 = vmatprep.subr.mxu0 0.0
  %2948 = vmatpush2.msra.mxu0 0.0
  %2949 = vmatprep.subr.mxu0 0.0
  %2950 = vmatpush2.msra.mxu0 0.0
  %2951 = vmatprep.subr.mxu0 0.0
  %2952 = vmatpush2.msra.mxu0 0.0
  %2953 = vmatprep.mubr.f32.mxu0 0.0
  %2954 = vmatmul.mubr.f32.gmra.mxu0 %v2878
  %v2955 = vpop.f32.mrf.mxu0
  %v2956 = vadd.f32 0.0, %v2955
  %v2957 = vpop.f32.mrf.mxu0
  %2958 = vmatprep.mubr.f32.mxu0 0.0
  %2959 = vmatmul.mubr.f32.gmra.mxu0 %v2881
  %v2960 = vpop.f32.mrf.mxu0
  %v2961 = vadd.f32 0.0, %v2960
  %v2962 = vpop.f32.mrf.mxu0
  %2963 = vmatprep.mubr.f32.mxu0 0.0
  %2964 = vmatmul.mubr.f32.gmra.mxu0 %v2884
  %v2965 = vpop.f32.mrf.mxu0
  %v2966 = vadd.f32 0.0, %v2965
  %v2967 = vpop.f32.mrf.mxu0
  %2968 = vdwg.mxu0
  %v2969 = vmul.f32 %v2956, 0.5
  %v2970 = vmul.f32 %v2961, 0.5
  %v2971 = vmul.f32 %v2966, 0.5
  %v2972 = vmul.f32 %v2969, %v70
  %v2973 = vmul.f32 %v2970, %v71
  %v2974 = vmul.f32 %v2971, %v72
  %2978 = vrot.lane.b32.xlu0 %v312, 32
  %v2979 = vpop.permute.xlu0 %2978
  %2980 = vrot.lane.b32.xlu0 %v317, 32
  %v2981 = vpop.permute.xlu0 %2980
  %2982 = vrot.lane.b32.xlu0 %v322, 32
  %v2983 = vpop.permute.xlu0 %2982
  %v2987 = vsel %vm138, %v17, %v2979
  %v2988 = vsel %vm138, %v18, %v2981
  %v2989 = vsel %vm138, %v19, %v2983
  %v2991 = vsel %vm325, %v2972, 0
  %v2994 = vsel %vm325, %v2973, 0
  %v2997 = vsel %vm325, %v2974, 0
  %2999 = vmatprep.subr.mxu0 0.0
  %3000 = vmatpush1.msra.mxu0 0.0
  %3001 = vmatprep.subr.mxu0 0.0
  %3002 = vmatpush1.msra.mxu0 0.0
  %3003 = vmatprep.subr.mxu0 0.0
  %3004 = vmatpush1.msra.mxu0 0.0
  %3005 = vmatprep.subr.mxu0 0.0
  %3006 = vmatpush1.msra.mxu0 0.0
  %3007 = vmatprep.subr.mxu0 0.0
  %3008 = vmatpush1.msra.mxu0 0.0
  %3009 = vmatprep.subr.mxu0 0.0
  %3010 = vmatpush1.msra.mxu0 0.0
  %3011 = vmatprep.subr.mxu0 0.0
  %3012 = vmatpush1.msra.mxu0 0.0
  %3013 = vmatprep.subr.mxu0 0.0
  %3014 = vmatpush1.msra.mxu0 0.0
  %3015 = vmatprep.subr.mxu0 0.0
  %3016 = vmatpush1.msra.mxu0 0.0
  %3017 = vmatprep.subr.mxu0 0.0
  %3018 = vmatpush1.msra.mxu0 0.0
  %3019 = vmatprep.subr.mxu0 0.0
  %3020 = vmatpush1.msra.mxu0 0.0
  %3021 = vmatprep.subr.mxu0 0.0
  %3022 = vmatpush1.msra.mxu0 0.0
  %3023 = vmatprep.subr.mxu0 0.0
  %3024 = vmatpush1.msra.mxu0 0.0
  %3025 = vmatprep.subr.mxu0 0.0
  %3026 = vmatpush1.msra.mxu0 %v2989
  %3027 = vmatprep.subr.mxu0 0.0
  %3028 = vmatpush1.msra.mxu0 %v2988
  %3029 = vmatprep.subr.mxu0 0.0
  %3030 = vmatpush1.msra.mxu0 %v2987
  %3031 = vmatprep.subr.mxu0 0.0
  %3032 = vmatpush2.msra.mxu0 0.0
  %3033 = vmatprep.subr.mxu0 0.0
  %3034 = vmatpush2.msra.mxu0 0.0
  %3035 = vmatprep.subr.mxu0 0.0
  %3036 = vmatpush2.msra.mxu0 0.0
  %3037 = vmatprep.subr.mxu0 0.0
  %3038 = vmatpush2.msra.mxu0 0.0
  %3039 = vmatprep.subr.mxu0 0.0
  %3040 = vmatpush2.msra.mxu0 0.0
  %3041 = vmatprep.subr.mxu0 0.0
  %3042 = vmatpush2.msra.mxu0 0.0
  %3043 = vmatprep.subr.mxu0 0.0
  %3044 = vmatpush2.msra.mxu0 0.0
  %3045 = vmatprep.subr.mxu0 0.0
  %3046 = vmatpush2.msra.mxu0 0.0
  %3047 = vmatprep.subr.mxu0 0.0
  %3048 = vmatpush2.msra.mxu0 0.0
  %3049 = vmatprep.subr.mxu0 0.0
  %3050 = vmatpush2.msra.mxu0 0.0
  %3051 = vmatprep.subr.mxu0 0.0
  %3052 = vmatpush2.msra.mxu0 0.0
  %3053 = vmatprep.subr.mxu0 0.0
  %3054 = vmatpush2.msra.mxu0 0.0
  %3055 = vmatprep.subr.mxu0 0.0
  %3056 = vmatpush2.msra.mxu0 0.0
  %3057 = vmatprep.subr.mxu0 0.0
  %3058 = vmatpush2.msra.mxu0 0.0
  %3059 = vmatprep.subr.mxu0 0.0
  %3060 = vmatpush2.msra.mxu0 0.0
  %3061 = vmatprep.subr.mxu0 0.0
  %3062 = vmatpush2.msra.mxu0 0.0
  %3063 = vmatprep.mubr.f32.mxu0 0.0
  %3064 = vmatmul.mubr.f32.gmra.mxu0 %v2991
  %v3065 = vpop.f32.mrf.mxu0
  %v3066 = vadd.f32 0.0, %v3065
  %v3067 = vpop.f32.mrf.mxu0
  %3068 = vmatprep.mubr.f32.mxu0 0.0
  %3069 = vmatmul.mubr.f32.gmra.mxu0 %v2994
  %v3070 = vpop.f32.mrf.mxu0
  %v3071 = vadd.f32 0.0, %v3070
  %v3072 = vpop.f32.mrf.mxu0
  %3073 = vmatprep.mubr.f32.mxu0 0.0
  %3074 = vmatmul.mubr.f32.gmra.mxu0 %v2997
  %v3075 = vpop.f32.mrf.mxu0
  %v3076 = vadd.f32 0.0, %v3075
  %v3077 = vpop.f32.mrf.mxu0
  %3078 = vdwg.mxu0
  %v3080 = vlaneseq
  %v3081 = vshrl.u32 %v3080, 7
  %v3082 = vsub.s32 0, %v3081
  %v3083 = vrot.slane %v134, %v3082
  %v3084 = vlaneseq
  %v3085 = vshrl.u32 %v3084, 7
  %v3086 = vsub.s32 1, %v3085
  %v3087 = vrot.slane %v134, %v3086
  %v3088 = vlaneseq
  %v3089 = vshrl.u32 %v3088, 7
  %v3090 = vsub.s32 2, %v3089
  %v3091 = vrot.slane %v134, %v3090
  %vm3095 = vcmask 523264
  %v3097 = vsel %vm3095, %v3066, 0
  %v3100 = vsel %vm3095, %v3071, 0
  %v3103 = vsel %vm3095, %v3076, 0
  %3105 = vmatprep.subr.mxu0 0.0
  %3106 = vmatpush1.msra.mxu0 0.0
  %3107 = vmatprep.subr.mxu0 0.0
  %3108 = vmatpush1.msra.mxu0 0.0
  %3109 = vmatprep.subr.mxu0 0.0
  %3110 = vmatpush1.msra.mxu0 0.0
  %3111 = vmatprep.subr.mxu0 0.0
  %3112 = vmatpush1.msra.mxu0 0.0
  %3113 = vmatprep.subr.mxu0 0.0
  %3114 = vmatpush1.msra.mxu0 0.0
  %3115 = vmatprep.subr.mxu0 0.0
  %3116 = vmatpush1.msra.mxu0 0.0
  %3117 = vmatprep.subr.mxu0 0.0
  %3118 = vmatpush1.msra.mxu0 0.0
  %3119 = vmatprep.subr.mxu0 0.0
  %3120 = vmatpush1.msra.mxu0 0.0
  %3121 = vmatprep.subr.mxu0 %v126
  %3122 = vmatpush1.msra.mxu0 %v125
  %3123 = vmatprep.subr.mxu0 %v123
  %3124 = vmatpush1.msra.mxu0 %v122
  %3125 = vmatprep.subr.mxu0 %v120
  %3126 = vmatpush1.msra.mxu0 %v119
  %3127 = vmatprep.subr.mxu0 %v117
  %3128 = vmatpush1.msra.mxu0 %v116
  %3129 = vmatprep.subr.mxu0 %v114
  %3130 = vmatpush1.msra.mxu0 %v113
  %3131 = vmatprep.subr.mxu0 %v111
  %3132 = vmatpush1.msra.mxu0 %v110
  %3133 = vmatprep.subr.mxu0 %v108
  %3134 = vmatpush1.msra.mxu0 %v107
  %3135 = vmatprep.subr.mxu0 %v105
  %3136 = vmatpush1.msra.mxu0 %v104
  %3137 = vmatprep.subr.mxu0 0.0
  %3138 = vmatpush2.msra.mxu0 0.0
  %3139 = vmatprep.subr.mxu0 0.0
  %3140 = vmatpush2.msra.mxu0 0.0
  %3141 = vmatprep.subr.mxu0 0.0
  %3142 = vmatpush2.msra.mxu0 0.0
  %3143 = vmatprep.subr.mxu0 0.0
  %3144 = vmatpush2.msra.mxu0 0.0
  %3145 = vmatprep.subr.mxu0 0.0
  %3146 = vmatpush2.msra.mxu0 0.0
  %3147 = vmatprep.subr.mxu0 0.0
  %3148 = vmatpush2.msra.mxu0 0.0
  %3149 = vmatprep.subr.mxu0 0.0
  %3150 = vmatpush2.msra.mxu0 0.0
  %3151 = vmatprep.subr.mxu0 0.0
  %3152 = vmatpush2.msra.mxu0 0.0
  %3153 = vmatprep.subr.mxu0 0.0
  %3154 = vmatpush2.msra.mxu0 0.0
  %3155 = vmatprep.subr.mxu0 0.0
  %3156 = vmatpush2.msra.mxu0 0.0
  %3157 = vmatprep.subr.mxu0 0.0
  %3158 = vmatpush2.msra.mxu0 0.0
  %3159 = vmatprep.subr.mxu0 0.0
  %3160 = vmatpush2.msra.mxu0 0.0
  %3161 = vmatprep.subr.mxu0 0.0
  %3162 = vmatpush2.msra.mxu0 0.0
  %3163 = vmatprep.subr.mxu0 0.0
  %3164 = vmatpush2.msra.mxu0 0.0
  %3165 = vmatprep.subr.mxu0 0.0
  %3166 = vmatpush2.msra.mxu0 0.0
  %3167 = vmatprep.subr.mxu0 0.0
  %3168 = vmatpush2.msra.mxu0 0.0
  %3169 = vmatprep.mubr.f32.mxu0 0.0
  %3170 = vmatmul.mubr.f32.gmra.mxu0 %v3097
  %v3171 = vpop.f32.mrf.mxu0
  %v3172 = vadd.f32 %v3083, %v3171
  %v3173 = vpop.f32.mrf.mxu0
  %v3174 = vadd.f32 %v3087, %v3173
  %3175 = vmatprep.mubr.f32.mxu0 0.0
  %3176 = vmatmul.mubr.f32.gmra.mxu0 %v3100
  %v3177 = vpop.f32.mrf.mxu0
  %v3178 = vadd.f32 %v3083, %v3177
  %v3179 = vpop.f32.mrf.mxu0
  %v3180 = vadd.f32 %v3087, %v3179
  %3181 = vmatprep.mubr.f32.mxu0 0.0
  %3182 = vmatmul.mubr.f32.gmra.mxu0 %v3103
  %v3183 = vpop.f32.mrf.mxu0
  %v3184 = vadd.f32 %v3083, %v3183
  %v3185 = vpop.f32.mrf.mxu0
  %v3186 = vadd.f32 %v3087, %v3185
  %3187 = vdwg.mxu0
  %3188 = vmatprep.subr.mxu0 0.0
  %3189 = vmatpush1.msra.mxu0 0.0
  %3190 = vmatprep.subr.mxu0 0.0
  %3191 = vmatpush1.msra.mxu0 0.0
  %3192 = vmatprep.subr.mxu0 0.0
  %3193 = vmatpush1.msra.mxu0 0.0
  %3194 = vmatprep.subr.mxu0 0.0
  %3195 = vmatpush1.msra.mxu0 0.0
  %3196 = vmatprep.subr.mxu0 0.0
  %3197 = vmatpush1.msra.mxu0 0.0
  %3198 = vmatprep.subr.mxu0 0.0
  %3199 = vmatpush1.msra.mxu0 0.0
  %3200 = vmatprep.subr.mxu0 0.0
  %3201 = vmatpush1.msra.mxu0 0.0
  %3202 = vmatprep.subr.mxu0 0.0
  %3203 = vmatpush1.msra.mxu0 0.0
  %3204 = vmatprep.subr.mxu0 0.0
  %3205 = vmatpush1.msra.mxu0 %v127
  %3206 = vmatprep.subr.mxu0 0.0
  %3207 = vmatpush1.msra.mxu0 %v124
  %3208 = vmatprep.subr.mxu0 0.0
  %3209 = vmatpush1.msra.mxu0 %v121
  %3210 = vmatprep.subr.mxu0 0.0
  %3211 = vmatpush1.msra.mxu0 %v118
  %3212 = vmatprep.subr.mxu0 0.0
  %3213 = vmatpush1.msra.mxu0 %v115
  %3214 = vmatprep.subr.mxu0 0.0
  %3215 = vmatpush1.msra.mxu0 %v112
  %3216 = vmatprep.subr.mxu0 0.0
  %3217 = vmatpush1.msra.mxu0 %v109
  %3218 = vmatprep.subr.mxu0 0.0
  %3219 = vmatpush1.msra.mxu0 %v106
  %3220 = vmatprep.subr.mxu0 0.0
  %3221 = vmatpush2.msra.mxu0 0.0
  %3222 = vmatprep.subr.mxu0 0.0
  %3223 = vmatpush2.msra.mxu0 0.0
  %3224 = vmatprep.subr.mxu0 0.0
  %3225 = vmatpush2.msra.mxu0 0.0
  %3226 = vmatprep.subr.mxu0 0.0
  %3227 = vmatpush2.msra.mxu0 0.0
  %3228 = vmatprep.subr.mxu0 0.0
  %3229 = vmatpush2.msra.mxu0 0.0
  %3230 = vmatprep.subr.mxu0 0.0
  %3231 = vmatpush2.msra.mxu0 0.0
  %3232 = vmatprep.subr.mxu0 0.0
  %3233 = vmatpush2.msra.mxu0 0.0
  %3234 = vmatprep.subr.mxu0 0.0
  %3235 = vmatpush2.msra.mxu0 0.0
  %3236 = vmatprep.subr.mxu0 0.0
  %3237 = vmatpush2.msra.mxu0 0.0
  %3238 = vmatprep.subr.mxu0 0.0
  %3239 = vmatpush2.msra.mxu0 0.0
  %3240 = vmatprep.subr.mxu0 0.0
  %3241 = vmatpush2.msra.mxu0 0.0
  %3242 = vmatprep.subr.mxu0 0.0
  %3243 = vmatpush2.msra.mxu0 0.0
  %3244 = vmatprep.subr.mxu0 0.0
  %3245 = vmatpush2.msra.mxu0 0.0
  %3246 = vmatprep.subr.mxu0 0.0
  %3247 = vmatpush2.msra.mxu0 0.0
  %3248 = vmatprep.subr.mxu0 0.0
  %3249 = vmatpush2.msra.mxu0 0.0
  %3250 = vmatprep.subr.mxu0 0.0
  %3251 = vmatpush2.msra.mxu0 0.0
  %3252 = vmatprep.mubr.f32.mxu0 0.0
  %3253 = vmatmul.mubr.f32.gmra.mxu0 %v3097
  %v3254 = vpop.f32.mrf.mxu0
  %v3255 = vadd.f32 %v3091, %v3254
  %v3256 = vpop.f32.mrf.mxu0
  %3257 = vmatprep.mubr.f32.mxu0 0.0
  %3258 = vmatmul.mubr.f32.gmra.mxu0 %v3100
  %v3259 = vpop.f32.mrf.mxu0
  %v3260 = vadd.f32 %v3091, %v3259
  %v3261 = vpop.f32.mrf.mxu0
  %3262 = vmatprep.mubr.f32.mxu0 0.0
  %3263 = vmatmul.mubr.f32.gmra.mxu0 %v3103
  %v3264 = vpop.f32.mrf.mxu0
  %v3265 = vadd.f32 %v3091, %v3264
  %v3266 = vpop.f32.mrf.mxu0
  %3267 = vdwg.mxu0
  %v3268 = vmax.f32 %v3172, 0.0
  %v3269 = vmax.f32 %v3174, 0.0
  %v3270 = vmax.f32 %v3255, 0.0
  %v3271 = vmax.f32 %v3178, 0.0
  %v3272 = vmax.f32 %v3180, 0.0
  %v3273 = vmax.f32 %v3260, 0.0
  %v3274 = vmax.f32 %v3184, 0.0
  %v3275 = vmax.f32 %v3186, 0.0
  %v3276 = vmax.f32 %v3265, 0.0
  %v3278 = vlaneseq
  %v3279 = vshrl.u32 %v3278, 7
  %v3280 = vsub.s32 0, %v3279
  %v3281 = vrot.slane %v136, %v3280
  %v3282 = vlaneseq
  %v3283 = vshrl.u32 %v3282, 7
  %v3284 = vsub.s32 1, %v3283
  %v3285 = vrot.slane %v136, %v3284
  %v3286 = vlaneseq
  %v3287 = vshrl.u32 %v3286, 7
  %v3288 = vsub.s32 2, %v3287
  %v3289 = vrot.slane %v136, %v3288
  %v3293 = vmul.f32 %v3268, %v3281
  %v3294 = vmul.f32 %v3269, %v3285
  %v3295 = vmul.f32 %v3270, %v3289
  %v3296 = vmul.f32 %v3271, %v3281
  %v3297 = vmul.f32 %v3272, %v3285
  %v3298 = vmul.f32 %v3273, %v3289
  %v3299 = vmul.f32 %v3274, %v3281
  %v3300 = vmul.f32 %v3275, %v3285
  %v3301 = vmul.f32 %v3276, %v3289
  %v3302 = vadd.f32 %v3293, %v3294
  %vm3303 = vcmask 359424
  %v3304 = vsel %vm3303, %v3295, 0.0
  %v3305 = vadd.f32 %v3302, %v3304
  %3306 = vadd.xlane.f32.xlu0 %v3305
  %v3307 = vpop.xlane.xlu0 %3306
  %v3308 = vadd.f32 %v3296, %v3297
  %v3309 = vsel %vm3303, %v3298, 0.0
  %v3310 = vadd.f32 %v3308, %v3309
  %3311 = vadd.xlane.f32.xlu0 %v3310
  %v3312 = vpop.xlane.xlu0 %3311
  %v3313 = vadd.f32 %v3299, %v3300
  %v3314 = vsel %vm3303, %v3301, 0.0
  %v3315 = vadd.f32 %v3313, %v3314
  %3316 = vadd.xlane.f32.xlu0 %v3315
  %v3317 = vpop.xlane.xlu0 %3316
  %v3318 = vadd.f32 %v3307, %v137
  %v3319 = vadd.f32 %v3312, %v137
  %v3320 = vadd.f32 %v3317, %v137
  %v3321 = vxor.u32 %v3318, 2147483648
  %v3322 = vxor.u32 %v3319, 2147483648
  %v3323 = vxor.u32 %v3320, 2147483648
  %v3324 = vmul.f32 %v3321, 1.442695
  %v3325 = vpow.pop %v3324
  %v3326 = vmul.f32 %v3322, 1.442695
  %v3327 = vpow.pop %v3326
  %v3328 = vmul.f32 %v3323, 1.442695
  %v3329 = vpow.pop %v3328
  %v3330 = vadd.f32 %v3325, 1.0
  %v3331 = vadd.f32 %v3327, 1.0
  %v3332 = vadd.f32 %v3329, 1.0
  %v3333 = vrcp.pop %v3330
  %v3334 = vmul.f32 1.0, %v3333
  %v3335 = vrcp.pop %v3331
  %v3336 = vmul.f32 1.0, %v3335
  %v3337 = vrcp.pop %v3332
  %v3338 = vmul.f32 1.0, %v3337
  %3340 = vset.pattern.permute.xlu0 0
  %3341 = vperm.xlu0 %3340, %v3334
  %v3342 = vpop.permute.xlu0 %3341
  %3345 = vset.pattern.permute.xlu0 0
  %3346 = vperm.xlu0 %3345, %v3336
  %v3347 = vpop.permute.xlu0 %3346
  %3350 = vset.pattern.permute.xlu0 0
  %3351 = vperm.xlu0 %3350, %v3338
  %v3352 = vpop.permute.xlu0 %3351
  %v3354 = vmul.f32 %v3342, %v3066
  %v3355 = vmul.f32 %v3347, %v3071
  %v3356 = vmul.f32 %v3352, %v3076
  %v3357 = vsub.f32 1.0, %v3334
  %v3358 = vsub.f32 1.0, %v3336
  %v3359 = vsub.f32 1.0, %v3338
  %3361 = vset.pattern.permute.xlu0 0
  %3362 = vperm.xlu0 %3361, %v3357
  %v3363 = vpop.permute.xlu0 %3362
  %3366 = vset.pattern.permute.xlu0 0
  %3367 = vperm.xlu0 %3366, %v3358
  %v3368 = vpop.permute.xlu0 %3367
  %3371 = vset.pattern.permute.xlu0 0
  %3372 = vperm.xlu0 %3371, %v3359
  %v3373 = vpop.permute.xlu0 %3372
  %v3375 = vmul.f32 %v3363, %v3066
  %v3376 = vmul.f32 %v3368, %v3071
  %v3377 = vmul.f32 %v3373, %v3076
  %3381 = vrot.lane.b32.xlu0 %v3375, 96
  %v3382 = vpop.permute.xlu0 %3381
  %3383 = vrot.lane.b32.xlu0 %v3376, 96
  %v3384 = vpop.permute.xlu0 %3383
  %3385 = vrot.lane.b32.xlu0 %v3377, 96
  %v3386 = vpop.permute.xlu0 %3385
  %v3390 = vadd.f32 %v3354, %v3382
  %v3391 = vadd.f32 %v3355, %v3384
  %v3392 = vadd.f32 %v3356, %v3386
  %3393 = vst.msk [vmem:[%s4] sm:$0xff] %vm138, %v3390
  %3394 = vst.msk [vmem:[%s4 + $0x8] sm:$0xff] %vm138, %v3391
  %3395 = vst.msk [vmem:[%s4 + $0x10] sm:$0xff] %vm138, %v3392
  %3397 = vset.pattern.permute.xlu0 0
  %3398 = vperm.xlu0 %3397, %v1439
  %v3399 = vpop.permute.xlu0 %3398
  %3401 = vst.msk [vmem:[%s4 + $0x18] sm:$0xff] %vm138, %v3399
  // Predicated region
  $region18: #{_forward.1} parent=0 // pred_check
    _
  $region19: #{_forward.1} parent=0 // pred_check_branch
    %3403 = sbr.rel (0) target = $region21
  $region20: #{_forward.1} parent=0 // pred_region
    _
  $region21: #{_forward.1} parent=0 // pred_fallthru
    _
  // Predicated region
  $region22: #{_forward.1} parent=0 // pred_check
    _
  $region23: #{_forward.1} parent=0 // pred_check_branch
    %3405 = sbr.rel (0) target = $region25
  $region24: #{_forward.1} parent=0 // pred_region
    _
  $region25: #{_forward.1} parent=0 // pred_fallthru
    _

</llo_original>
